<compile_context>
chip_gen: v6e
topology: v6e:2x2x1
jax: 0.10.0
libtpu: 0.0.40
codegen_flags: <defaults>
</compile_context>

<pallas_src>
import functools
import numpy as np

import jax
import jax.numpy as jnp
from jax.experimental import pallas as pl
from jax.experimental.pallas import tpu as pltpu


# ----------------------------------------------------------------------------
# sincos positional embedding (parameter init, plain numpy — matches reference)
# ----------------------------------------------------------------------------
def _get_1d_sincos_pos_embed_from_grid(embed_dim, pos):
    omega = np.arange(embed_dim // 2, dtype=np.float64) / (embed_dim / 2.0)
    omega = 1.0 / 10000 ** omega
    pos = pos.reshape(-1)
    out = np.einsum("m,d->md", pos, omega)
    return np.concatenate([np.sin(out), np.cos(out)], axis=1)


def get_2d_sincos_pos_embed(embed_dim, grid_size, cls_token=False):
    grid_h = np.arange(grid_size, dtype=np.float64)
    grid_w = np.arange(grid_size, dtype=np.float64)
    grid = np.meshgrid(grid_w, grid_h)          # w first, then h (reference convention)
    grid = np.stack(grid, axis=0).reshape([2, 1, grid_size, grid_size])
    emb_h = _get_1d_sincos_pos_embed_from_grid(embed_dim // 2, grid[0])
    emb_w = _get_1d_sincos_pos_embed_from_grid(embed_dim // 2, grid[1])
    pos_embed = np.concatenate([emb_h, emb_w], axis=1)
    if cls_token:
        pos_embed = np.concatenate([np.zeros([1, embed_dim]), pos_embed], axis=0)
    return pos_embed.astype(np.float32)


# ----------------------------------------------------------------------------
# in-kernel helpers
# ----------------------------------------------------------------------------
def _layernorm(x, gamma, beta, eps=1e-6):
    mu = jnp.mean(x, axis=-1, keepdims=True)
    xc = x - mu
    var = jnp.mean(xc * xc, axis=-1, keepdims=True)
    return xc * jax.lax.rsqrt(var + eps) * gamma + beta


# ----------------------------------------------------------------------------
# fused encoder kernel: patch-embed + L transformer blocks + final LN
#   grid = (B, L); x (tokens) resident in VMEM scratch across the layer sweep.
# ----------------------------------------------------------------------------
def encoder_kernel(
    patches_ref, pew_ref, peb_ref, cls_ref, pos_ref,
    ln1g_ref, ln1b_ref, qkvw_ref, qkvb_ref, projw_ref, projb_ref,
    ln2g_ref, ln2b_ref, fc1w_ref, fc1b_ref, fc2w_ref, fc2b_ref,
    ng_ref, nb_ref,
    o_ref, x_scr,
    *, num_heads,
):
    l = pl.program_id(1)
    n_layers = pl.num_programs(1)

    # --- prologue on the first layer step: patch embed + pos embed + cls ----
    @pl.when(l == 0)
    def _():
        tokens = (
            jnp.dot(patches_ref[0], pew_ref[...], preferred_element_type=jnp.float32)
            + peb_ref[...]
            + pos_ref[...]
        )                                               # (N, D) f32
        x_scr[0:1, :] = cls_ref[...]                    # cls token (+ its pos embed)
        x_scr[1:, :] = tokens

    x = x_scr[...]                                      # (S, D) f32, VMEM-resident
    S, D = x.shape
    H = num_heads
    hd = D // H
    scale = 1.0 / float(np.sqrt(hd))

    # --- attention branch ----------------------------------------------------
    h = _layernorm(x, ln1g_ref[0], ln1b_ref[0])
    qkv = (
        jnp.dot(h.astype(jnp.bfloat16), qkvw_ref[0], preferred_element_type=jnp.float32)
        + qkvb_ref[0]
    )                                                   # (S, 3D) f32

    # gather heads onto a leading batch axis -> (H, S, hd)
    q = jnp.stack([qkv[:, i * hd:(i + 1) * hd] for i in range(H)], axis=0)
    k = jnp.stack([qkv[:, D + i * hd:D + (i + 1) * hd] for i in range(H)], axis=0)
    v = jnp.stack([qkv[:, 2 * D + i * hd:2 * D + (i + 1) * hd] for i in range(H)], axis=0)

    # one batched contraction for all heads; contract last dims (no k.T)
    s = jnp.einsum(
        "hqd,hkd->hqk", q.astype(jnp.bfloat16), k.astype(jnp.bfloat16),
        preferred_element_type=jnp.float32,
    ) * scale                                           # (H, S, S)
    s = s - jnp.max(s, axis=-1, keepdims=True)
    p = jnp.exp(s)
    p = p * pl.reciprocal(jnp.sum(p, axis=-1, keepdims=True), approx=True)
    o = jnp.einsum(
        "hqk,hkd->hqd", p.astype(jnp.bfloat16), v.astype(jnp.bfloat16),
        preferred_element_type=jnp.float32,
    )                                                   # (H, S, hd)
    attn = jnp.concatenate([o[i] for i in range(H)], axis=-1)       # (S, D)
    attn = (
        jnp.dot(attn.astype(jnp.bfloat16), projw_ref[0], preferred_element_type=jnp.float32)
        + projb_ref[0]
    )
    # drop_path / dropout are identity in eval mode.
    x = x + attn

    # --- MLP branch ----------------------------------------------------------
    h2 = _layernorm(x, ln2g_ref[0], ln2b_ref[0])
    m = (
        jnp.dot(h2.astype(jnp.bfloat16), fc1w_ref[0], preferred_element_type=jnp.float32)
        + fc1b_ref[0]
    )
    # TODO(synk): PyTorch nn.GELU uses the exact erf form; tanh approximation used here.
    m = jax.nn.gelu(m, approximate=True)
    m = (
        jnp.dot(m.astype(jnp.bfloat16), fc2w_ref[0], preferred_element_type=jnp.float32)
        + fc2b_ref[0]
    )
    x = x + m

    x_scr[...] = x

    # --- final LayerNorm + single HBM writeback on the last layer ------------
    @pl.when(l == n_layers - 1)
    def _():
        o_ref[0] = _layernorm(x, ng_ref[...], nb_ref[...]).astype(o_ref.dtype)


# ----------------------------------------------------------------------------
# wrapper
# ----------------------------------------------------------------------------
def rgb_encoder_fused(patches, cls_row, pos_patch, params, *, num_heads):
    B, N, K = patches.shape
    L = params["qkv_w"].shape[0]
    D = params["pe_w"].shape[1]
    Hd = params["fc1_w"].shape[2]
    S = N + 1

    def const(shape):
        return pl.BlockSpec(shape, lambda b, l: (0,) * len(shape))

    def per_layer(shape):
        return pl.BlockSpec((1,) + shape, lambda b, l: (l, 0, 0))

    return pl.pallas_call(
        functools.partial(encoder_kernel, num_heads=num_heads),
        out_shape=jax.ShapeDtypeStruct((B, S, D), jnp.float32),
        grid=(B, L),
        in_specs=[
            pl.BlockSpec((1, N, K), lambda b, l: (b, 0, 0)),   # patches (DMA'd once per b)
            const((K, D)), const((1, D)),                      # pe_w, pe_b
            const((1, D)), const((N, D)),                      # cls(+pos0), pos[1:]
            per_layer((1, D)), per_layer((1, D)),              # ln1 g, b
            per_layer((D, 3 * D)), per_layer((1, 3 * D)),      # qkv w, b
            per_layer((D, D)), per_layer((1, D)),              # proj w, b
            per_layer((1, D)), per_layer((1, D)),              # ln2 g, b
            per_layer((D, Hd)), per_layer((1, Hd)),            # fc1 w, b
            per_layer((Hd, D)), per_layer((1, D)),             # fc2 w, b
            const((1, D)), const((1, D)),                      # final norm g, b
        ],
        out_specs=pl.BlockSpec((1, S, D), lambda b, l: (b, 0, 0)),  # constant over l
        scratch_shapes=[pltpu.VMEM((S, D), jnp.float32)],
        compiler_params=pltpu.CompilerParams(
            dimension_semantics=("parallel", "arbitrary")),
    )(
        patches,
        params["pe_w"], params["pe_b"], cls_row, pos_patch,
        params["ln1_g"], params["ln1_b"],
        params["qkv_w"], params["qkv_b"],
        params["proj_w"], params["proj_b"],
        params["ln2_g"], params["ln2_b"],
        params["fc1_w"], params["fc1_b"],
        params["fc2_w"], params["fc2_b"],
        params["norm_g"], params["norm_b"],
    )


# ----------------------------------------------------------------------------
# parameter construction (deterministic, matches module __init__ shapes/inits)
# ----------------------------------------------------------------------------
def _xavier(key, shape, fan_in, fan_out, dtype=jnp.float32):
    bound = float(np.sqrt(6.0 / (fan_in + fan_out)))
    return jax.random.uniform(key, shape, jnp.float32, -bound, bound).astype(dtype)


def make_params(key, embed_dim, n_blocks, mlp_ratio, win_size, num_patches):
    D = embed_dim
    Hd = int(D * mlp_ratio)
    K = 3 * win_size * win_size
    L = n_blocks
    keys = jax.random.split(key, 2 + 4 * n_blocks)

    params = {
        # PatchEmbed Conv2d(3, D, k=p, stride=p) expressed as a [K, D] matmul weight.
        "pe_w": _xavier(keys[0], (K, D), K, D, jnp.bfloat16),
        "pe_b": jnp.zeros((1, D), jnp.float32),
        "cls_token": 0.02 * jax.random.normal(keys[1], (1, D), jnp.float32),
        "pos_embed": jnp.asarray(
            get_2d_sincos_pos_embed(D, int(np.sqrt(num_patches)), cls_token=True)
        ),  # (N+1, D) f32, non-trainable
    }

    def stacked(fn):
        return jnp.stack([fn(i) for i in range(L)], axis=0)

    params["ln1_g"] = jnp.ones((L, 1, D), jnp.float32)
    params["ln1_b"] = jnp.zeros((L, 1, D), jnp.float32)
    params["qkv_w"] = stacked(lambda i: _xavier(keys[2 + 4 * i], (D, 3 * D), D, 3 * D, jnp.bfloat16))
    params["qkv_b"] = jnp.zeros((L, 1, 3 * D), jnp.float32)
    params["proj_w"] = stacked(lambda i: _xavier(keys[3 + 4 * i], (D, D), D, D, jnp.bfloat16))
    params["proj_b"] = jnp.zeros((L, 1, D), jnp.float32)
    params["ln2_g"] = jnp.ones((L, 1, D), jnp.float32)
    params["ln2_b"] = jnp.zeros((L, 1, D), jnp.float32)
    params["fc1_w"] = stacked(lambda i: _xavier(keys[4 + 4 * i], (D, Hd), D, Hd, jnp.bfloat16))
    params["fc1_b"] = jnp.zeros((L, 1, Hd), jnp.float32)
    params["fc2_w"] = stacked(lambda i: _xavier(keys[5 + 4 * i], (Hd, D), Hd, D, jnp.bfloat16))
    params["fc2_b"] = jnp.zeros((L, 1, D), jnp.float32)
    params["norm_g"] = jnp.ones((1, D), jnp.float32)
    params["norm_b"] = jnp.zeros((1, D), jnp.float32)
    return params


# ----------------------------------------------------------------------------
# full forward (mirrors RGBEncAtt.forward)
# ----------------------------------------------------------------------------
def rgb_enc_att_forward(rgb_obj, params, *, win_size, num_heads):
    B, C, H, W = rgb_obj.shape
    p = win_size
    Hp, Wp = H // p, W // p
    N = Hp * Wp

    # patch extraction (glue): NCHW -> [B, N, C*p*p] with (c, ph, pw) feature order,
    # matching the flattened PyTorch Conv2d weight view.
    patches = (
        rgb_obj.reshape(B, C, Hp, p, Wp, p)
        .transpose(0, 2, 4, 1, 3, 5)
        .reshape(B, N, C * p * p)
        .astype(jnp.bfloat16)
    )

    pos = params["pos_embed"]                               # (N+1, D)
    cls_row = (params["cls_token"] + pos[:1]).astype(jnp.float32)   # (1, D)
    pos_patch = pos[1:].astype(jnp.float32)                 # (N, D)

    return rgb_encoder_fused(patches, cls_row, pos_patch, params, num_heads=num_heads)


# ----------------------------------------------------------------------------
# main
# ----------------------------------------------------------------------------
if __name__ == "__main__":
    # Small, lane-dense shapes consistent with the module (scaled-down ViT).
    B = 2
    img_size = 64
    win_size = 16
    embed_dim = 128          # multiple of 128 -> lane-dense activations/stores
    n_blocks = 2
    num_heads = 4            # head_dim = 32
    mlp_ratio = 4.0
    num_patches = (img_size // win_size) ** 2   # 16 -> seq = 17 with cls token

    key = jax.random.PRNGKey(0)
    k_param, k_input = jax.random.split(key)

    params = make_params(k_param, embed_dim, n_blocks, mlp_ratio, win_size, num_patches)
    rgb_obj = jax.random.normal(k_input, (B, 3, img_size, img_size), jnp.float32)

    @jax.jit
    def fwd(rgb, prm):
        return rgb_enc_att_forward(rgb, prm, win_size=win_size, num_heads=num_heads)

    out = jax.block_until_ready(fwd(rgb_obj, params))

    assert out.shape == (B, num_patches + 1, embed_dim)
    assert bool(jnp.all(jnp.isfinite(out)))
    print("KERNEL_OK")
</pallas_src>

<mosaic_0001>
module attributes {stable_mosaic.version = 11 : i64} {
  func.func @encoder_kernel(%arg0: i32, %arg1: i32, %arg2: memref<1x16x768xbf16, #tpu.memory_space<vmem>>, %arg3: memref<768x128xbf16, #tpu.memory_space<vmem>>, %arg4: memref<1x128xf32, #tpu.memory_space<vmem>>, %arg5: memref<1x128xf32, #tpu.memory_space<vmem>>, %arg6: memref<16x128xf32, #tpu.memory_space<vmem>>, %arg7: memref<1x1x128xf32, #tpu.memory_space<vmem>>, %arg8: memref<1x1x128xf32, #tpu.memory_space<vmem>>, %arg9: memref<1x128x384xbf16, #tpu.memory_space<vmem>>, %arg10: memref<1x1x384xf32, #tpu.memory_space<vmem>>, %arg11: memref<1x128x128xbf16, #tpu.memory_space<vmem>>, %arg12: memref<1x1x128xf32, #tpu.memory_space<vmem>>, %arg13: memref<1x1x128xf32, #tpu.memory_space<vmem>>, %arg14: memref<1x1x128xf32, #tpu.memory_space<vmem>>, %arg15: memref<1x128x512xbf16, #tpu.memory_space<vmem>>, %arg16: memref<1x1x512xf32, #tpu.memory_space<vmem>>, %arg17: memref<1x512x128xbf16, #tpu.memory_space<vmem>>, %arg18: memref<1x1x128xf32, #tpu.memory_space<vmem>>, %arg19: memref<1x128xf32, #tpu.memory_space<vmem>>, %arg20: memref<1x128xf32, #tpu.memory_space<vmem>>, %arg21: memref<1x17x128xf32, #tpu.memory_space<vmem>>, %arg22: memref<17x128xf32, #tpu.memory_space<vmem>>) attributes {dimension_semantics = [#tpu.dimension_semantics<parallel>, #tpu.dimension_semantics<arbitrary>], iteration_bounds = array<i64: 2, 2>, scalar_prefetch = 0 : i64, scratch_operands = 1 : i64, tpu.core_type = #tpu.core_type<tc>, window_params = [{transform_indices = @transform_0, window_bounds = array<i64: 1, 16, 768>}, {pipeline_mode = #tpu.pipeline_mode<synchronous>, transform_indices = @transform_1, window_bounds = array<i64: 768, 128>}, {pipeline_mode = #tpu.pipeline_mode<synchronous>, transform_indices = @transform_2, window_bounds = array<i64: 1, 128>}, {pipeline_mode = #tpu.pipeline_mode<synchronous>, transform_indices = @transform_3, window_bounds = array<i64: 1, 128>}, {pipeline_mode = #tpu.pipeline_mode<synchronous>, transform_indices = @transform_4, window_bounds = array<i64: 16, 128>}, {transform_indices = @transform_5, window_bounds = array<i64: 1, 1, 128>}, {transform_indices = @transform_6, window_bounds = array<i64: 1, 1, 128>}, {transform_indices = @transform_7, window_bounds = array<i64: 1, 128, 384>}, {transform_indices = @transform_8, window_bounds = array<i64: 1, 1, 384>}, {transform_indices = @transform_9, window_bounds = array<i64: 1, 128, 128>}, {transform_indices = @transform_10, window_bounds = array<i64: 1, 1, 128>}, {transform_indices = @transform_11, window_bounds = array<i64: 1, 1, 128>}, {transform_indices = @transform_12, window_bounds = array<i64: 1, 1, 128>}, {transform_indices = @transform_13, window_bounds = array<i64: 1, 128, 512>}, {transform_indices = @transform_14, window_bounds = array<i64: 1, 1, 512>}, {transform_indices = @transform_15, window_bounds = array<i64: 1, 512, 128>}, {transform_indices = @transform_16, window_bounds = array<i64: 1, 1, 128>}, {pipeline_mode = #tpu.pipeline_mode<synchronous>, transform_indices = @transform_17, window_bounds = array<i64: 1, 128>}, {pipeline_mode = #tpu.pipeline_mode<synchronous>, transform_indices = @transform_18, window_bounds = array<i64: 1, 128>}, {transform_indices = @transform_19, window_bounds = array<i64: 1, 17, 128>}]} {
    %c0_i32 = arith.constant 0 : i32
    %0 = arith.cmpi eq, %arg1, %c0_i32 : i32
    %1 = arith.extui %0 : i1 to i32
    %c0_i32_0 = arith.constant 0 : i32
    %2 = arith.cmpi ne, %1, %c0_i32_0 : i32
    scf.if %2 {
      %c0_63 = arith.constant 0 : index
      %c0_64 = arith.constant 0 : index
      %c0_65 = arith.constant 0 : index
      %157 = vector.load %arg2[%c0_63, %c0_64, %c0_65] : memref<1x16x768xbf16, #tpu.memory_space<vmem>>, vector<1x16x768xbf16>
      %158 = vector.shape_cast %157 : vector<1x16x768xbf16> to vector<16x768xbf16>
      %c0_66 = arith.constant 0 : index
      %c0_67 = arith.constant 0 : index
      %159 = vector.load %arg3[%c0_66, %c0_67] : memref<768x128xbf16, #tpu.memory_space<vmem>>, vector<768x128xbf16>
      %cst_68 = arith.constant dense<0.000000e+00> : vector<16x128xf32>
      %160 = tpu.matmul %158, %159, %cst_68 {dimension_numbers = #tpu.dot_dimension_numbers<[1], [0], [0], [1], [0, 0, 1, 1], [], []>} : vector<16x768xbf16>, vector<768x128xbf16>, vector<16x128xf32> -> vector<16x128xf32>
      %c0_69 = arith.constant 0 : index
      %c0_70 = arith.constant 0 : index
      %161 = vector.load %arg4[%c0_69, %c0_70] : memref<1x128xf32, #tpu.memory_space<vmem>>, vector<1x128xf32>
      %162 = vector.broadcast %161 : vector<1x128xf32> to vector<16x128xf32>
      %163 = arith.addf %160, %162 : vector<16x128xf32>
      %c0_71 = arith.constant 0 : index
      %c0_72 = arith.constant 0 : index
      %164 = vector.load %arg6[%c0_71, %c0_72] : memref<16x128xf32, #tpu.memory_space<vmem>>, vector<16x128xf32>
      %165 = arith.addf %163, %164 : vector<16x128xf32>
      %c0_73 = arith.constant 0 : index
      %c0_74 = arith.constant 0 : index
      %166 = vector.load %arg5[%c0_73, %c0_74] : memref<1x128xf32, #tpu.memory_space<vmem>>, vector<1x128xf32>
      %c0_75 = arith.constant 0 : index
      %c0_76 = arith.constant 0 : index
      %167 = vector.load %arg22[%c0_75, %c0_76] : memref<17x128xf32, #tpu.memory_space<vmem>>, vector<1x128xf32>
      tpu.vector_store %arg22[%c0_75, %c0_76], %166 {strides = array<i32>} : memref<17x128xf32, #tpu.memory_space<vmem>>, vector<1x128xf32>,
      %c1 = arith.constant 1 : index
      %c0_77 = arith.constant 0 : index
      %168 = vector.load %arg22[%c1, %c0_77] : memref<17x128xf32, #tpu.memory_space<vmem>>, vector<16x128xf32>
      tpu.vector_store %arg22[%c1, %c0_77], %165 {strides = array<i32>} : memref<17x128xf32, #tpu.memory_space<vmem>>, vector<16x128xf32>,
    } else {
    }
    %c0 = arith.constant 0 : index
    %c0_1 = arith.constant 0 : index
    %3 = vector.load %arg22[%c0, %c0_1] : memref<17x128xf32, #tpu.memory_space<vmem>>, vector<17x128xf32>
    %c0_2 = arith.constant 0 : index
    %c0_3 = arith.constant 0 : index
    %c0_4 = arith.constant 0 : index
    %4 = vector.load %arg7[%c0_2, %c0_3, %c0_4] : memref<1x1x128xf32, #tpu.memory_space<vmem>>, vector<1x1x128xf32>
    %5 = vector.shape_cast %4 : vector<1x1x128xf32> to vector<1x128xf32>
    %c0_5 = arith.constant 0 : index
    %c0_6 = arith.constant 0 : index
    %c0_7 = arith.constant 0 : index
    %6 = vector.load %arg8[%c0_5, %c0_6, %c0_7] : memref<1x1x128xf32, #tpu.memory_space<vmem>>, vector<1x1x128xf32>
    %7 = vector.shape_cast %6 : vector<1x1x128xf32> to vector<1x128xf32>
    %cst = arith.constant dense<0.000000e+00> : vector<17xf32>
    %8 = vector.multi_reduction <add>, %3, %cst [1] : vector<17x128xf32> to vector<17xf32>
    %9 = vector.shape_cast %8 : vector<17xf32> to vector<17x1xf32>
    %cst_8 = arith.constant 1.280000e+02 : f32
    %10 = vector.broadcast %cst_8 : f32 to vector<17x1xf32>
    %11 = arith.divf %9, %10 : vector<17x1xf32>
    %12 = vector.broadcast %11 : vector<17x1xf32> to vector<17x128xf32>
    %13 = arith.subf %3, %12 : vector<17x128xf32>
    %14 = arith.mulf %13, %13 : vector<17x128xf32>
    %cst_9 = arith.constant dense<0.000000e+00> : vector<17xf32>
    %15 = vector.multi_reduction <add>, %14, %cst_9 [1] : vector<17x128xf32> to vector<17xf32>
    %16 = vector.shape_cast %15 : vector<17xf32> to vector<17x1xf32>
    %cst_10 = arith.constant 1.280000e+02 : f32
    %17 = vector.broadcast %cst_10 : f32 to vector<17x1xf32>
    %18 = arith.divf %16, %17 : vector<17x1xf32>
    %cst_11 = arith.constant 9.99999997E-7 : f32
    %19 = vector.broadcast %cst_11 : f32 to vector<17x1xf32>
    %20 = arith.addf %18, %19 : vector<17x1xf32>
    %21 = math.rsqrt %20 : vector<17x1xf32>
    %22 = vector.broadcast %21 : vector<17x1xf32> to vector<17x128xf32>
    %23 = arith.mulf %13, %22 : vector<17x128xf32>
    %24 = vector.broadcast %5 : vector<1x128xf32> to vector<17x128xf32>
    %25 = arith.mulf %23, %24 : vector<17x128xf32>
    %26 = vector.broadcast %7 : vector<1x128xf32> to vector<17x128xf32>
    %27 = arith.addf %25, %26 : vector<17x128xf32>
    %28 = arith.truncf %27 : vector<17x128xf32> to vector<17x128xbf16>
    %c0_12 = arith.constant 0 : index
    %c0_13 = arith.constant 0 : index
    %c0_14 = arith.constant 0 : index
    %29 = vector.load %arg9[%c0_12, %c0_13, %c0_14] : memref<1x128x384xbf16, #tpu.memory_space<vmem>>, vector<1x128x384xbf16>
    %30 = vector.shape_cast %29 : vector<1x128x384xbf16> to vector<128x384xbf16>
    %cst_15 = arith.constant dense<0.000000e+00> : vector<17x384xf32>
    %31 = tpu.matmul %28, %30, %cst_15 {dimension_numbers = #tpu.dot_dimension_numbers<[1], [0], [0], [1], [0, 0, 1, 1], [], []>} : vector<17x128xbf16>, vector<128x384xbf16>, vector<17x384xf32> -> vector<17x384xf32>
    %c0_16 = arith.constant 0 : index
    %c0_17 = arith.constant 0 : index
    %c0_18 = arith.constant 0 : index
    %32 = vector.load %arg10[%c0_16, %c0_17, %c0_18] : memref<1x1x384xf32, #tpu.memory_space<vmem>>, vector<1x1x384xf32>
    %33 = vector.shape_cast %32 : vector<1x1x384xf32> to vector<1x384xf32>
    %34 = vector.broadcast %33 : vector<1x384xf32> to vector<17x384xf32>
    %35 = arith.addf %31, %34 : vector<17x384xf32>
    %36 = vector.extract_strided_slice %35 {offsets = [0, 0], sizes = [17, 32], strides = [1, 1]} : vector<17x384xf32> to vector<17x32xf32>
    %37 = vector.extract_strided_slice %35 {offsets = [0, 32], sizes = [17, 32], strides = [1, 1]} : vector<17x384xf32> to vector<17x32xf32>
    %38 = vector.extract_strided_slice %35 {offsets = [0, 64], sizes = [17, 32], strides = [1, 1]} : vector<17x384xf32> to vector<17x32xf32>
    %39 = vector.extract_strided_slice %35 {offsets = [0, 96], sizes = [17, 32], strides = [1, 1]} : vector<17x384xf32> to vector<17x32xf32>
    %40 = vector.shape_cast %36 : vector<17x32xf32> to vector<1x17x32xf32>
    %41 = vector.shape_cast %37 : vector<17x32xf32> to vector<1x17x32xf32>
    %42 = vector.shape_cast %38 : vector<17x32xf32> to vector<1x17x32xf32>
    %43 = vector.shape_cast %39 : vector<17x32xf32> to vector<1x17x32xf32>
    %44 = tpu.concatenate %40, %41, %42, %43 in 0 : vector<1x17x32xf32>, vector<1x17x32xf32>, vector<1x17x32xf32>, vector<1x17x32xf32> -> vector<4x17x32xf32>
    %45 = vector.extract_strided_slice %35 {offsets = [0, 128], sizes = [17, 32], strides = [1, 1]} : vector<17x384xf32> to vector<17x32xf32>
    %46 = vector.extract_strided_slice %35 {offsets = [0, 160], sizes = [17, 32], strides = [1, 1]} : vector<17x384xf32> to vector<17x32xf32>
    %47 = vector.extract_strided_slice %35 {offsets = [0, 192], sizes = [17, 32], strides = [1, 1]} : vector<17x384xf32> to vector<17x32xf32>
    %48 = vector.extract_strided_slice %35 {offsets = [0, 224], sizes = [17, 32], strides = [1, 1]} : vector<17x384xf32> to vector<17x32xf32>
    %49 = vector.shape_cast %45 : vector<17x32xf32> to vector<1x17x32xf32>
    %50 = vector.shape_cast %46 : vector<17x32xf32> to vector<1x17x32xf32>
    %51 = vector.shape_cast %47 : vector<17x32xf32> to vector<1x17x32xf32>
    %52 = vector.shape_cast %48 : vector<17x32xf32> to vector<1x17x32xf32>
    %53 = tpu.concatenate %49, %50, %51, %52 in 0 : vector<1x17x32xf32>, vector<1x17x32xf32>, vector<1x17x32xf32>, vector<1x17x32xf32> -> vector<4x17x32xf32>
    %54 = vector.extract_strided_slice %35 {offsets = [0, 256], sizes = [17, 32], strides = [1, 1]} : vector<17x384xf32> to vector<17x32xf32>
    %55 = vector.extract_strided_slice %35 {offsets = [0, 288], sizes = [17, 32], strides = [1, 1]} : vector<17x384xf32> to vector<17x32xf32>
    %56 = vector.extract_strided_slice %35 {offsets = [0, 320], sizes = [17, 32], strides = [1, 1]} : vector<17x384xf32> to vector<17x32xf32>
    %57 = vector.extract_strided_slice %35 {offsets = [0, 352], sizes = [17, 32], strides = [1, 1]} : vector<17x384xf32> to vector<17x32xf32>
    %58 = vector.shape_cast %54 : vector<17x32xf32> to vector<1x17x32xf32>
    %59 = vector.shape_cast %55 : vector<17x32xf32> to vector<1x17x32xf32>
    %60 = vector.shape_cast %56 : vector<17x32xf32> to vector<1x17x32xf32>
    %61 = vector.shape_cast %57 : vector<17x32xf32> to vector<1x17x32xf32>
    %62 = tpu.concatenate %58, %59, %60, %61 in 0 : vector<1x17x32xf32>, vector<1x17x32xf32>, vector<1x17x32xf32>, vector<1x17x32xf32> -> vector<4x17x32xf32>
    %63 = arith.truncf %44 : vector<4x17x32xf32> to vector<4x17x32xbf16>
    %64 = arith.truncf %53 : vector<4x17x32xf32> to vector<4x17x32xbf16>
    "tpu.trace_start"() <{level = 10 : i32, message = "hqd,hkd->hqk"}> : () -> ()
    %cst_19 = arith.constant dense<0.000000e+00> : vector<4x17x17xf32>
    %65 = tpu.matmul %63, %64, %cst_19 {dimension_numbers = #tpu.dot_dimension_numbers<[2], [2], [1], [1], [0, 0, 0, 1, 1, 1], [0], [0]>} : vector<4x17x32xbf16>, vector<4x17x32xbf16>, vector<4x17x17xf32> -> vector<4x17x17xf32>
    "tpu.trace_stop"() : () -> ()
    %cst_20 = arith.constant 0.176776692 : f32
    %66 = vector.broadcast %cst_20 : f32 to vector<4x17x17xf32>
    %67 = arith.mulf %65, %66 : vector<4x17x17xf32>
    %cst_21 = arith.constant dense<0xFF800000> : vector<4x17xf32>
    %68 = vector.multi_reduction <maximumf>, %67, %cst_21 [2] : vector<4x17x17xf32> to vector<4x17xf32>
    %69 = vector.shape_cast %68 : vector<4x17xf32> to vector<4x17x1xf32>
    %70 = vector.broadcast %69 : vector<4x17x1xf32> to vector<4x17x17xf32>
    %71 = arith.subf %67, %70 : vector<4x17x17xf32>
    %72 = math.exp %71 : vector<4x17x17xf32>
    %cst_22 = arith.constant dense<0.000000e+00> : vector<4x17xf32>
    %73 = vector.multi_reduction <add>, %72, %cst_22 [2] : vector<4x17x17xf32> to vector<4x17xf32>
    %74 = vector.shape_cast %73 : vector<4x17xf32> to vector<4x17x1xf32>
    %75 = tpu.reciprocal %74 {approx = true} : vector<4x17x1xf32> -> vector<4x17x1xf32>
    %76 = vector.broadcast %75 : vector<4x17x1xf32> to vector<4x17x17xf32>
    %77 = arith.mulf %72, %76 : vector<4x17x17xf32>
    %78 = arith.truncf %77 : vector<4x17x17xf32> to vector<4x17x17xbf16>
    %79 = arith.truncf %62 : vector<4x17x32xf32> to vector<4x17x32xbf16>
    "tpu.trace_start"() <{level = 10 : i32, message = "hqk,hkd->hqd"}> : () -> ()
    %cst_23 = arith.constant dense<0.000000e+00> : vector<4x17x32xf32>
    %80 = tpu.matmul %78, %79, %cst_23 {dimension_numbers = #tpu.dot_dimension_numbers<[2], [1], [1], [2], [0, 0, 0, 1, 1, 2], [0], [0]>} : vector<4x17x17xbf16>, vector<4x17x32xbf16>, vector<4x17x32xf32> -> vector<4x17x32xf32>
    "tpu.trace_stop"() : () -> ()
    %81 = vector.extract_strided_slice %80 {offsets = [0, 0, 0], sizes = [1, 17, 32], strides = [1, 1, 1]} : vector<4x17x32xf32> to vector<1x17x32xf32>
    %82 = vector.shape_cast %81 : vector<1x17x32xf32> to vector<17x32xf32>
    %83 = vector.extract_strided_slice %80 {offsets = [1, 0, 0], sizes = [1, 17, 32], strides = [1, 1, 1]} : vector<4x17x32xf32> to vector<1x17x32xf32>
    %84 = vector.shape_cast %83 : vector<1x17x32xf32> to vector<17x32xf32>
    %85 = vector.extract_strided_slice %80 {offsets = [2, 0, 0], sizes = [1, 17, 32], strides = [1, 1, 1]} : vector<4x17x32xf32> to vector<1x17x32xf32>
    %86 = vector.shape_cast %85 : vector<1x17x32xf32> to vector<17x32xf32>
    %87 = vector.extract_strided_slice %80 {offsets = [3, 0, 0], sizes = [1, 17, 32], strides = [1, 1, 1]} : vector<4x17x32xf32> to vector<1x17x32xf32>
    %88 = vector.shape_cast %87 : vector<1x17x32xf32> to vector<17x32xf32>
    %89 = tpu.concatenate %82, %84, %86, %88 in 1 : vector<17x32xf32>, vector<17x32xf32>, vector<17x32xf32>, vector<17x32xf32> -> vector<17x128xf32>
    %90 = arith.truncf %89 : vector<17x128xf32> to vector<17x128xbf16>
    %c0_24 = arith.constant 0 : index
    %c0_25 = arith.constant 0 : index
    %c0_26 = arith.constant 0 : index
    %91 = vector.load %arg11[%c0_24, %c0_25, %c0_26] : memref<1x128x128xbf16, #tpu.memory_space<vmem>>, vector<1x128x128xbf16>
    %92 = vector.shape_cast %91 : vector<1x128x128xbf16> to vector<128x128xbf16>
    %cst_27 = arith.constant dense<0.000000e+00> : vector<17x128xf32>
    %93 = tpu.matmul %90, %92, %cst_27 {dimension_numbers = #tpu.dot_dimension_numbers<[1], [0], [0], [1], [0, 0, 1, 1], [], []>} : vector<17x128xbf16>, vector<128x128xbf16>, vector<17x128xf32> -> vector<17x128xf32>
    %c0_28 = arith.constant 0 : index
    %c0_29 = arith.constant 0 : index
    %c0_30 = arith.constant 0 : index
    %94 = vector.load %arg12[%c0_28, %c0_29, %c0_30] : memref<1x1x128xf32, #tpu.memory_space<vmem>>, vector<1x1x128xf32>
    %95 = vector.shape_cast %94 : vector<1x1x128xf32> to vector<1x128xf32>
    %96 = vector.broadcast %95 : vector<1x128xf32> to vector<17x128xf32>
    %97 = arith.addf %93, %96 : vector<17x128xf32>
    %98 = arith.addf %3, %97 : vector<17x128xf32>
    %c0_31 = arith.constant 0 : index
    %c0_32 = arith.constant 0 : index
    %c0_33 = arith.constant 0 : index
    %99 = vector.load %arg13[%c0_31, %c0_32, %c0_33] : memref<1x1x128xf32, #tpu.memory_space<vmem>>, vector<1x1x128xf32>
    %100 = vector.shape_cast %99 : vector<1x1x128xf32> to vector<1x128xf32>
    %c0_34 = arith.constant 0 : index
    %c0_35 = arith.constant 0 : index
    %c0_36 = arith.constant 0 : index
    %101 = vector.load %arg14[%c0_34, %c0_35, %c0_36] : memref<1x1x128xf32, #tpu.memory_space<vmem>>, vector<1x1x128xf32>
    %102 = vector.shape_cast %101 : vector<1x1x128xf32> to vector<1x128xf32>
    %cst_37 = arith.constant dense<0.000000e+00> : vector<17xf32>
    %103 = vector.multi_reduction <add>, %98, %cst_37 [1] : vector<17x128xf32> to vector<17xf32>
    %104 = vector.shape_cast %103 : vector<17xf32> to vector<17x1xf32>
    %cst_38 = arith.constant 1.280000e+02 : f32
    %105 = vector.broadcast %cst_38 : f32 to vector<17x1xf32>
    %106 = arith.divf %104, %105 : vector<17x1xf32>
    %107 = vector.broadcast %106 : vector<17x1xf32> to vector<17x128xf32>
    %108 = arith.subf %98, %107 : vector<17x128xf32>
    %109 = arith.mulf %108, %108 : vector<17x128xf32>
    %cst_39 = arith.constant dense<0.000000e+00> : vector<17xf32>
    %110 = vector.multi_reduction <add>, %109, %cst_39 [1] : vector<17x128xf32> to vector<17xf32>
    %111 = vector.shape_cast %110 : vector<17xf32> to vector<17x1xf32>
    %cst_40 = arith.constant 1.280000e+02 : f32
    %112 = vector.broadcast %cst_40 : f32 to vector<17x1xf32>
    %113 = arith.divf %111, %112 : vector<17x1xf32>
    %cst_41 = arith.constant 9.99999997E-7 : f32
    %114 = vector.broadcast %cst_41 : f32 to vector<17x1xf32>
    %115 = arith.addf %113, %114 : vector<17x1xf32>
    %116 = math.rsqrt %115 : vector<17x1xf32>
    %117 = vector.broadcast %116 : vector<17x1xf32> to vector<17x128xf32>
    %118 = arith.mulf %108, %117 : vector<17x128xf32>
    %119 = vector.broadcast %100 : vector<1x128xf32> to vector<17x128xf32>
    %120 = arith.mulf %118, %119 : vector<17x128xf32>
    %121 = vector.broadcast %102 : vector<1x128xf32> to vector<17x128xf32>
    %122 = arith.addf %120, %121 : vector<17x128xf32>
    %123 = arith.truncf %122 : vector<17x128xf32> to vector<17x128xbf16>
    %c0_42 = arith.constant 0 : index
    %c0_43 = arith.constant 0 : index
    %c0_44 = arith.constant 0 : index
    %124 = vector.load %arg15[%c0_42, %c0_43, %c0_44] : memref<1x128x512xbf16, #tpu.memory_space<vmem>>, vector<1x128x512xbf16>
    %125 = vector.shape_cast %124 : vector<1x128x512xbf16> to vector<128x512xbf16>
    %cst_45 = arith.constant dense<0.000000e+00> : vector<17x512xf32>
    %126 = tpu.matmul %123, %125, %cst_45 {dimension_numbers = #tpu.dot_dimension_numbers<[1], [0], [0], [1], [0, 0, 1, 1], [], []>} : vector<17x128xbf16>, vector<128x512xbf16>, vector<17x512xf32> -> vector<17x512xf32>
    %c0_46 = arith.constant 0 : index
    %c0_47 = arith.constant 0 : index
    %c0_48 = arith.constant 0 : index
    %127 = vector.load %arg16[%c0_46, %c0_47, %c0_48] : memref<1x1x512xf32, #tpu.memory_space<vmem>>, vector<1x1x512xf32>
    %128 = vector.shape_cast %127 : vector<1x1x512xf32> to vector<1x512xf32>
    %129 = vector.broadcast %128 : vector<1x512xf32> to vector<17x512xf32>
    %130 = arith.addf %126, %129 : vector<17x512xf32>
    %131 = arith.mulf %130, %130 : vector<17x512xf32>
    %132 = arith.mulf %130, %131 : vector<17x512xf32>
    %cst_49 = arith.constant 4.471500e-02 : f32
    %133 = vector.broadcast %cst_49 : f32 to vector<17x512xf32>
    %134 = arith.mulf %133, %132 : vector<17x512xf32>
    %135 = arith.addf %130, %134 : vector<17x512xf32>
    %cst_50 = arith.constant 0.797884583 : f32
    %136 = vector.broadcast %cst_50 : f32 to vector<17x512xf32>
    %137 = arith.mulf %136, %135 : vector<17x512xf32>
    %138 = math.tanh %137 : vector<17x512xf32>
    %cst_51 = arith.constant 1.000000e+00 : f32
    %139 = vector.broadcast %cst_51 : f32 to vector<17x512xf32>
    %140 = arith.addf %139, %138 : vector<17x512xf32>
    %cst_52 = arith.constant 5.000000e-01 : f32
    %141 = vector.broadcast %cst_52 : f32 to vector<17x512xf32>
    %142 = arith.mulf %141, %140 : vector<17x512xf32>
    %143 = arith.mulf %130, %142 : vector<17x512xf32>
    %144 = arith.truncf %143 : vector<17x512xf32> to vector<17x512xbf16>
    %c0_53 = arith.constant 0 : index
    %c0_54 = arith.constant 0 : index
    %c0_55 = arith.constant 0 : index
    %145 = vector.load %arg17[%c0_53, %c0_54, %c0_55] : memref<1x512x128xbf16, #tpu.memory_space<vmem>>, vector<1x512x128xbf16>
    %146 = vector.shape_cast %145 : vector<1x512x128xbf16> to vector<512x128xbf16>
    %cst_56 = arith.constant dense<0.000000e+00> : vector<17x128xf32>
    %147 = tpu.matmul %144, %146, %cst_56 {dimension_numbers = #tpu.dot_dimension_numbers<[1], [0], [0], [1], [0, 0, 1, 1], [], []>} : vector<17x512xbf16>, vector<512x128xbf16>, vector<17x128xf32> -> vector<17x128xf32>
    %c0_57 = arith.constant 0 : index
    %c0_58 = arith.constant 0 : index
    %c0_59 = arith.constant 0 : index
    %148 = vector.load %arg18[%c0_57, %c0_58, %c0_59] : memref<1x1x128xf32, #tpu.memory_space<vmem>>, vector<1x1x128xf32>
    %149 = vector.shape_cast %148 : vector<1x1x128xf32> to vector<1x128xf32>
    %150 = vector.broadcast %149 : vector<1x128xf32> to vector<17x128xf32>
    %151 = arith.addf %147, %150 : vector<17x128xf32>
    %152 = arith.addf %98, %151 : vector<17x128xf32>
    %c0_60 = arith.constant 0 : index
    %c0_61 = arith.constant 0 : index
    %153 = vector.load %arg22[%c0_60, %c0_61] : memref<17x128xf32, #tpu.memory_space<vmem>>, vector<17x128xf32>
    tpu.vector_store %arg22[%c0_60, %c0_61], %152 {strides = array<i32>} : memref<17x128xf32, #tpu.memory_space<vmem>>, vector<17x128xf32>,
    %c1_i32 = arith.constant 1 : i32
    %154 = arith.cmpi eq, %arg1, %c1_i32 : i32
    %155 = arith.extui %154 : i1 to i32
    %c0_i32_62 = arith.constant 0 : i32
    %156 = arith.cmpi ne, %155, %c0_i32_62 : i32
    scf.if %156 {
      %c0_63 = arith.constant 0 : index
      %c0_64 = arith.constant 0 : index
      %157 = vector.load %arg19[%c0_63, %c0_64] : memref<1x128xf32, #tpu.memory_space<vmem>>, vector<1x128xf32>
      %c0_65 = arith.constant 0 : index
      %c0_66 = arith.constant 0 : index
      %158 = vector.load %arg20[%c0_65, %c0_66] : memref<1x128xf32, #tpu.memory_space<vmem>>, vector<1x128xf32>
      %cst_67 = arith.constant dense<0.000000e+00> : vector<17xf32>
      %159 = vector.multi_reduction <add>, %152, %cst_67 [1] : vector<17x128xf32> to vector<17xf32>
      %160 = vector.shape_cast %159 : vector<17xf32> to vector<17x1xf32>
      %cst_68 = arith.constant 1.280000e+02 : f32
      %161 = vector.broadcast %cst_68 : f32 to vector<17x1xf32>
      %162 = arith.divf %160, %161 : vector<17x1xf32>
      %163 = vector.broadcast %162 : vector<17x1xf32> to vector<17x128xf32>
      %164 = arith.subf %152, %163 : vector<17x128xf32>
      %165 = arith.mulf %164, %164 : vector<17x128xf32>
      %cst_69 = arith.constant dense<0.000000e+00> : vector<17xf32>
      %166 = vector.multi_reduction <add>, %165, %cst_69 [1] : vector<17x128xf32> to vector<17xf32>
      %167 = vector.shape_cast %166 : vector<17xf32> to vector<17x1xf32>
      %cst_70 = arith.constant 1.280000e+02 : f32
      %168 = vector.broadcast %cst_70 : f32 to vector<17x1xf32>
      %169 = arith.divf %167, %168 : vector<17x1xf32>
      %cst_71 = arith.constant 9.99999997E-7 : f32
      %170 = vector.broadcast %cst_71 : f32 to vector<17x1xf32>
      %171 = arith.addf %169, %170 : vector<17x1xf32>
      %172 = math.rsqrt %171 : vector<17x1xf32>
      %173 = vector.broadcast %172 : vector<17x1xf32> to vector<17x128xf32>
      %174 = arith.mulf %164, %173 : vector<17x128xf32>
      %175 = vector.broadcast %157 : vector<1x128xf32> to vector<17x128xf32>
      %176 = arith.mulf %174, %175 : vector<17x128xf32>
      %177 = vector.broadcast %158 : vector<1x128xf32> to vector<17x128xf32>
      %178 = arith.addf %176, %177 : vector<17x128xf32>
      %c0_72 = arith.constant 0 : index
      %c0_73 = arith.constant 0 : index
      %c0_74 = arith.constant 0 : index
      %179 = vector.load %arg21[%c0_72, %c0_73, %c0_74] : memref<1x17x128xf32, #tpu.memory_space<vmem>>, vector<1x17x128xf32>
      %180 = vector.shape_cast %179 : vector<1x17x128xf32> to vector<17x128xf32>
      %181 = vector.shape_cast %178 : vector<17x128xf32> to vector<1x17x128xf32>
      tpu.vector_store %arg21[%c0_72, %c0_73, %c0_74], %181 {strides = array<i32>} : memref<1x17x128xf32, #tpu.memory_space<vmem>>, vector<1x17x128xf32>,
    } else {
    }
    return
  }
  func.func @transform_0(%arg0: i32, %arg1: i32) -> (i32, i32, i32) {
    %c0_i32 = arith.constant 0 : i32
    %c0_i32_0 = arith.constant 0 : i32
    %c0_i32_1 = arith.constant 0 : i32
    return %arg0, %c0_i32, %c0_i32_0 : i32, i32, i32
  }
  func.func @transform_1(%arg0: i32, %arg1: i32) -> (i32, i32) {
    %c0_i32 = arith.constant 0 : i32
    %c0_i32_0 = arith.constant 0 : i32
    %c0_i32_1 = arith.constant 0 : i32
    return %c0_i32, %c0_i32_0 : i32, i32
  }
  func.func @transform_2(%arg0: i32, %arg1: i32) -> (i32, i32) {
    %c0_i32 = arith.constant 0 : i32
    %c0_i32_0 = arith.constant 0 : i32
    %c0_i32_1 = arith.constant 0 : i32
    return %c0_i32, %c0_i32_0 : i32, i32
  }
  func.func @transform_3(%arg0: i32, %arg1: i32) -> (i32, i32) {
    %c0_i32 = arith.constant 0 : i32
    %c0_i32_0 = arith.constant 0 : i32
    %c0_i32_1 = arith.constant 0 : i32
    return %c0_i32, %c0_i32_0 : i32, i32
  }
  func.func @transform_4(%arg0: i32, %arg1: i32) -> (i32, i32) {
    %c0_i32 = arith.constant 0 : i32
    %c0_i32_0 = arith.constant 0 : i32
    %c0_i32_1 = arith.constant 0 : i32
    return %c0_i32, %c0_i32_0 : i32, i32
  }
  func.func @transform_5(%arg0: i32, %arg1: i32) -> (i32, i32, i32) {
    %c0_i32 = arith.constant 0 : i32
    %c0_i32_0 = arith.constant 0 : i32
    %c0_i32_1 = arith.constant 0 : i32
    return %arg1, %c0_i32, %c0_i32_0 : i32, i32, i32
  }
  func.func @transform_6(%arg0: i32, %arg1: i32) -> (i32, i32, i32) {
    %c0_i32 = arith.constant 0 : i32
    %c0_i32_0 = arith.constant 0 : i32
    %c0_i32_1 = arith.constant 0 : i32
    return %arg1, %c0_i32, %c0_i32_0 : i32, i32, i32
  }
  func.func @transform_7(%arg0: i32, %arg1: i32) -> (i32, i32, i32) {
    %c0_i32 = arith.constant 0 : i32
    %c0_i32_0 = arith.constant 0 : i32
    %c0_i32_1 = arith.constant 0 : i32
    return %arg1, %c0_i32, %c0_i32_0 : i32, i32, i32
  }
  func.func @transform_8(%arg0: i32, %arg1: i32) -> (i32, i32, i32) {
    %c0_i32 = arith.constant 0 : i32
    %c0_i32_0 = arith.constant 0 : i32
    %c0_i32_1 = arith.constant 0 : i32
    return %arg1, %c0_i32, %c0_i32_0 : i32, i32, i32
  }
  func.func @transform_9(%arg0: i32, %arg1: i32) -> (i32, i32, i32) {
    %c0_i32 = arith.constant 0 : i32
    %c0_i32_0 = arith.constant 0 : i32
    %c0_i32_1 = arith.constant 0 : i32
    return %arg1, %c0_i32, %c0_i32_0 : i32, i32, i32
  }
  func.func @transform_10(%arg0: i32, %arg1: i32) -> (i32, i32, i32) {
    %c0_i32 = arith.constant 0 : i32
    %c0_i32_0 = arith.constant 0 : i32
    %c0_i32_1 = arith.constant 0 : i32
    return %arg1, %c0_i32, %c0_i32_0 : i32, i32, i32
  }
  func.func @transform_11(%arg0: i32, %arg1: i32) -> (i32, i32, i32) {
    %c0_i32 = arith.constant 0 : i32
    %c0_i32_0 = arith.constant 0 : i32
    %c0_i32_1 = arith.constant 0 : i32
    return %arg1, %c0_i32, %c0_i32_0 : i32, i32, i32
  }
  func.func @transform_12(%arg0: i32, %arg1: i32) -> (i32, i32, i32) {
    %c0_i32 = arith.constant 0 : i32
    %c0_i32_0 = arith.constant 0 : i32
    %c0_i32_1 = arith.constant 0 : i32
    return %arg1, %c0_i32, %c0_i32_0 : i32, i32, i32
  }
  func.func @transform_13(%arg0: i32, %arg1: i32) -> (i32, i32, i32) {
    %c0_i32 = arith.constant 0 : i32
    %c0_i32_0 = arith.constant 0 : i32
    %c0_i32_1 = arith.constant 0 : i32
    return %arg1, %c0_i32, %c0_i32_0 : i32, i32, i32
  }
  func.func @transform_14(%arg0: i32, %arg1: i32) -> (i32, i32, i32) {
    %c0_i32 = arith.constant 0 : i32
    %c0_i32_0 = arith.constant 0 : i32
    %c0_i32_1 = arith.constant 0 : i32
    return %arg1, %c0_i32, %c0_i32_0 : i32, i32, i32
  }
  func.func @transform_15(%arg0: i32, %arg1: i32) -> (i32, i32, i32) {
    %c0_i32 = arith.constant 0 : i32
    %c0_i32_0 = arith.constant 0 : i32
    %c0_i32_1 = arith.constant 0 : i32
    return %arg1, %c0_i32, %c0_i32_0 : i32, i32, i32
  }
  func.func @transform_16(%arg0: i32, %arg1: i32) -> (i32, i32, i32) {
    %c0_i32 = arith.constant 0 : i32
    %c0_i32_0 = arith.constant 0 : i32
    %c0_i32_1 = arith.constant 0 : i32
    return %arg1, %c0_i32, %c0_i32_0 : i32, i32, i32
  }
  func.func @transform_17(%arg0: i32, %arg1: i32) -> (i32, i32) {
    %c0_i32 = arith.constant 0 : i32
    %c0_i32_0 = arith.constant 0 : i32
    %c0_i32_1 = arith.constant 0 : i32
    return %c0_i32, %c0_i32_0 : i32, i32
  }
  func.func @transform_18(%arg0: i32, %arg1: i32) -> (i32, i32) {
    %c0_i32 = arith.constant 0 : i32
    %c0_i32_0 = arith.constant 0 : i32
    %c0_i32_1 = arith.constant 0 : i32
    return %c0_i32, %c0_i32_0 : i32, i32
  }
  func.func @transform_19(%arg0: i32, %arg1: i32) -> (i32, i32, i32) {
    %c0_i32 = arith.constant 0 : i32
    %c0_i32_0 = arith.constant 0 : i32
    %c0_i32_1 = arith.constant 0 : i32
    return %arg0, %c0_i32, %c0_i32_0 : i32, i32, i32
  }
}

</mosaic_0001>

<llo_original>
// kernel: fwd.1
$region0: #{fwd.1}
  #allocation0 [shape = 'u32[]', space=smem, size = 0x4, offset = 0x4, fixed_abs, tag = 'smem constant byte address 0x4 - core index']
  #allocation1 [shape = 'u32[144,128]{1,0:T(1,128)}', space=vmem, size = 0x12000, scoped, tag = 'internal scratch']
  #allocation2 [shape = 'f32[17,128]{1,0:T(8,128)}', space=vmem, size = 0x3000, scoped, tag = 'scratch operand']
  %s0 = inlined_call_operand.vmem [shape: bf16[2,16,768], index: 0, kind: input, shape index: {}]
  %s1 = inlined_call_operand.vmem [shape: bf16[768,128], index: 1, kind: input, shape index: {}]
  %s2 = inlined_call_operand.vmem [shape: f32[1,128], index: 2, kind: input, shape index: {}]
  %s3 = inlined_call_operand.vmem [shape: f32[1,128], index: 3, kind: input, shape index: {}]
  %s4 = inlined_call_operand.vmem [shape: f32[16,128], index: 4, kind: input, shape index: {}]
  %s5 = inlined_call_operand.vmem [shape: f32[2,1,128], index: 5, kind: input, shape index: {}]
  %s6 = inlined_call_operand.vmem [shape: f32[2,1,128], index: 6, kind: input, shape index: {}]
  %s7 = inlined_call_operand.vmem [shape: bf16[2,128,384], index: 7, kind: input, shape index: {}]
  %s8 = inlined_call_operand.vmem [shape: f32[2,1,384], index: 8, kind: input, shape index: {}]
  %s9 = inlined_call_operand.vmem [shape: bf16[2,128,128], index: 9, kind: input, shape index: {}]
  %s10 = inlined_call_operand.vmem [shape: f32[2,1,128], index: 10, kind: input, shape index: {}]
  %s11 = inlined_call_operand.vmem [shape: f32[2,1,128], index: 11, kind: input, shape index: {}]
  %s12 = inlined_call_operand.vmem [shape: f32[2,1,128], index: 12, kind: input, shape index: {}]
  %s13 = inlined_call_operand.vmem [shape: bf16[2,128,512], index: 13, kind: input, shape index: {}]
  %s14 = inlined_call_operand.vmem [shape: f32[2,1,512], index: 14, kind: input, shape index: {}]
  %s15 = inlined_call_operand.vmem [shape: bf16[2,512,128], index: 15, kind: input, shape index: {}]
  %s16 = inlined_call_operand.vmem [shape: f32[2,1,128], index: 16, kind: input, shape index: {}]
  %s17 = inlined_call_operand.vmem [shape: f32[1,128], index: 17, kind: input, shape index: {}]
  %s18 = inlined_call_operand.vmem [shape: f32[1,128], index: 18, kind: input, shape index: {}]
  %s19 = inlined_call_operand.vmem [shape: f32[2,17,128], index: 19, kind: output, shape index: {}]
  %s20 = sld [smem:[#allocation0]]
  $region117: #{fwd.1} parent=0
    _
  %s22 = ssub.s32 1, %s20
  %s23 = scalar_select 0, %s22, %s20
  loop: start=0, step=1, limit=6
  $region2: #{fwd.1} parent=0 // loop_pre_header
    _
  $region3: #{fwd.1} parent=0 // loop_header
    %s25 = sphi 0, %s29
    %p26 = scmp.ge.s32.totalorder %s25, 6
    %s32 = sphi 0, %s44
    %s33 = sphi 0, %s40
    %s34 = sphi 0, %s32
    %s35 = sphi 0, %s33
    %s36 = sphi 0, %s34
    %s37 = sphi 0, %s35
    %s47 = sphi 0, %s49
    %s50 = sphi 0, %s47
    %s51 = sphi 0, %s50
    %s67 = sphi 0, %s51
    %s71 = sphi 0, %s71
    %s73 = sphi 0, %s71
    %s74 = sphi 0, %s73
    %s88 = sphi 0, %s74
    %s92 = sphi 0, %s92
    %s94 = sphi 0, %s92
    %s95 = sphi 0, %s94
    %s109 = sphi 0, %s95
    %s113 = sphi 0, %s113
    %s115 = sphi 0, %s113
    %s116 = sphi 0, %s115
    %s130 = sphi 0, %s116
    %s134 = sphi 0, %s134
    %s136 = sphi 0, %s134
    %s137 = sphi 0, %s136
    %s151 = sphi 0, %s137
    %s157 = sphi 0, %s159
    %s160 = sphi 0, %s157
    %s161 = sphi 0, %s160
    %s177 = sphi 0, %s161
    %s183 = sphi 0, %s185
    %s186 = sphi 0, %s183
    %s187 = sphi 0, %s186
    %s203 = sphi 0, %s187
    %s209 = sphi 0, %s211
    %s212 = sphi 0, %s209
    %s213 = sphi 0, %s212
    %s229 = sphi 0, %s213
    %s235 = sphi 0, %s237
    %s238 = sphi 0, %s235
    %s239 = sphi 0, %s238
    %s255 = sphi 0, %s239
    %s261 = sphi 0, %s263
    %s264 = sphi 0, %s261
    %s265 = sphi 0, %s264
    %s281 = sphi 0, %s265
    %s287 = sphi 0, %s289
    %s290 = sphi 0, %s287
    %s291 = sphi 0, %s290
    %s307 = sphi 0, %s291
    %s313 = sphi 0, %s315
    %s316 = sphi 0, %s313
    %s317 = sphi 0, %s316
    %s333 = sphi 0, %s317
    %s339 = sphi 0, %s341
    %s342 = sphi 0, %s339
    %s343 = sphi 0, %s342
    %s359 = sphi 0, %s343
    %s365 = sphi 0, %s367
    %s368 = sphi 0, %s365
    %s369 = sphi 0, %s368
    %s385 = sphi 0, %s369
    %s391 = sphi 0, %s393
    %s394 = sphi 0, %s391
    %s395 = sphi 0, %s394
    %s411 = sphi 0, %s395
    %s417 = sphi 0, %s419
    %s420 = sphi 0, %s417
    %s421 = sphi 0, %s420
    %s437 = sphi 0, %s421
    %s443 = sphi 0, %s445
    %s446 = sphi 0, %s443
    %s447 = sphi 0, %s446
    %s463 = sphi 0, %s447
    %s467 = sphi 0, %s467
    %s469 = sphi 0, %s467
    %s470 = sphi 0, %s469
    %s484 = sphi 0, %s470
    %s488 = sphi 0, %s488
    %s490 = sphi 0, %s488
    %s491 = sphi 0, %s490
    %s505 = sphi 0, %s491
    %s511 = sphi 0, %s513
    %s514 = sphi 0, %s511
    %s515 = sphi 0, %s514
    %s531 = sphi 0, %s515
  $region4: #{fwd.1} parent=0 // loop_header_branch
    %28 = sbr.rel (%p26) target = $region8
  $region5: #{fwd.1} parent=0 // loop_body
    %s30 = ssub.s32 %s25, 1
    %s31 = ssub.s32 %s25, 2
    %s38 = sadd.s32 1, %s33
    %p39 = scmp.ge.s32.totalorder %s38, 2
    %s40 = scalar_select %p39, 0, %s38
    %s41 = sadd.s32 1, %s32
    %s42 = scalar_select %p39, %s41, %s32
    %p43 = scmp.ge.s32.totalorder %s42, 2
    %s44 = scalar_select %p43, 0, %s42
    %s45 = ssub.s32 %s32, %s44
    %p46 = scmp.eq.s32.totalorder %s45, 0
    %s48 = sadd.s32 %s47, 1
    %s49 = scalar_select %p46, %s47, %s48
    %p52 = pneg %p46
    %p53 = scmp.eq.s32.totalorder %s25, 3
    %p54 = por %p52, %p53
    %p55 = scmp.ne.s32.totalorder %s47, %s50
    %p56 = scmp.eq.s32.totalorder %s25, 0
    %p57 = por %p55, %p56
    %p58 = scmp.ne.s32.totalorder %s47, %s50
    %p59 = scmp.eq.s32.totalorder %s30, 3
    %p60 = por %p58, %p59
    %p61 = scmp.ne.s32.totalorder %s50, %s51
    %p62 = scmp.eq.s32.totalorder %s30, 0
    %p63 = por %p61, %p62
    %p64 = scmp.ne.s32.totalorder %s50, %s51
    %p65 = scmp.eq.s32.totalorder %s31, 3
    %p66 = por %p64, %p65
    %p68 = scmp.ne.s32.totalorder %s51, %s67
    %p69 = scmp.eq.s32.totalorder %s31, 0
    %p70 = por %p68, %p69
    %s72 = sadd.s32 %s71, 1
    %p75 = scmp.eq.s32.totalorder %s25, 3
    %p76 = scmp.ne.s32.totalorder %s71, %s73
    %p77 = scmp.eq.s32.totalorder %s25, 0
    %p78 = por %p76, %p77
    %p79 = scmp.ne.s32.totalorder %s71, %s73
    %p80 = scmp.eq.s32.totalorder %s30, 3
    %p81 = por %p79, %p80
    %p82 = scmp.ne.s32.totalorder %s73, %s74
    %p83 = scmp.eq.s32.totalorder %s30, 0
    %p84 = por %p82, %p83
    %p85 = scmp.ne.s32.totalorder %s73, %s74
    %p86 = scmp.eq.s32.totalorder %s31, 3
    %p87 = por %p85, %p86
    %p89 = scmp.ne.s32.totalorder %s74, %s88
    %p90 = scmp.eq.s32.totalorder %s31, 0
    %p91 = por %p89, %p90
    %s93 = sadd.s32 %s92, 1
    %p96 = scmp.eq.s32.totalorder %s25, 3
    %p97 = scmp.ne.s32.totalorder %s92, %s94
    %p98 = scmp.eq.s32.totalorder %s25, 0
    %p99 = por %p97, %p98
    %p100 = scmp.ne.s32.totalorder %s92, %s94
    %p101 = scmp.eq.s32.totalorder %s30, 3
    %p102 = por %p100, %p101
    %p103 = scmp.ne.s32.totalorder %s94, %s95
    %p104 = scmp.eq.s32.totalorder %s30, 0
    %p105 = por %p103, %p104
    %p106 = scmp.ne.s32.totalorder %s94, %s95
    %p107 = scmp.eq.s32.totalorder %s31, 3
    %p108 = por %p106, %p107
    %p110 = scmp.ne.s32.totalorder %s95, %s109
    %p111 = scmp.eq.s32.totalorder %s31, 0
    %p112 = por %p110, %p111
    %s114 = sadd.s32 %s113, 1
    %p117 = scmp.eq.s32.totalorder %s25, 3
    %p118 = scmp.ne.s32.totalorder %s113, %s115
    %p119 = scmp.eq.s32.totalorder %s25, 0
    %p120 = por %p118, %p119
    %p121 = scmp.ne.s32.totalorder %s113, %s115
    %p122 = scmp.eq.s32.totalorder %s30, 3
    %p123 = por %p121, %p122
    %p124 = scmp.ne.s32.totalorder %s115, %s116
    %p125 = scmp.eq.s32.totalorder %s30, 0
    %p126 = por %p124, %p125
    %p127 = scmp.ne.s32.totalorder %s115, %s116
    %p128 = scmp.eq.s32.totalorder %s31, 3
    %p129 = por %p127, %p128
    %p131 = scmp.ne.s32.totalorder %s116, %s130
    %p132 = scmp.eq.s32.totalorder %s31, 0
    %p133 = por %p131, %p132
    %s135 = sadd.s32 %s134, 1
    %p138 = scmp.eq.s32.totalorder %s25, 3
    %p139 = scmp.ne.s32.totalorder %s134, %s136
    %p140 = scmp.eq.s32.totalorder %s25, 0
    %p141 = por %p139, %p140
    %p142 = scmp.ne.s32.totalorder %s134, %s136
    %p143 = scmp.eq.s32.totalorder %s30, 3
    %p144 = por %p142, %p143
    %p145 = scmp.ne.s32.totalorder %s136, %s137
    %p146 = scmp.eq.s32.totalorder %s30, 0
    %p147 = por %p145, %p146
    %p148 = scmp.ne.s32.totalorder %s136, %s137
    %p149 = scmp.eq.s32.totalorder %s31, 3
    %p150 = por %p148, %p149
    %p152 = scmp.ne.s32.totalorder %s137, %s151
    %p153 = scmp.eq.s32.totalorder %s31, 0
    %p154 = por %p152, %p153
    %s155 = ssub.s32 %s33, %s40
    %p156 = scmp.eq.s32.totalorder %s155, 0
    %s158 = sadd.s32 %s157, 1
    %s159 = scalar_select %p156, %s157, %s158
    %p162 = pneg %p156
    %p163 = scmp.eq.s32.totalorder %s25, 3
    %p164 = por %p162, %p163
    %p165 = scmp.ne.s32.totalorder %s157, %s160
    %p166 = scmp.eq.s32.totalorder %s25, 0
    %p167 = por %p165, %p166
    %p168 = scmp.ne.s32.totalorder %s157, %s160
    %p169 = scmp.eq.s32.totalorder %s30, 3
    %p170 = por %p168, %p169
    %p171 = scmp.ne.s32.totalorder %s160, %s161
    %p172 = scmp.eq.s32.totalorder %s30, 0
    %p173 = por %p171, %p172
    %p174 = scmp.ne.s32.totalorder %s160, %s161
    %p175 = scmp.eq.s32.totalorder %s31, 3
    %p176 = por %p174, %p175
    %p178 = scmp.ne.s32.totalorder %s161, %s177
    %p179 = scmp.eq.s32.totalorder %s31, 0
    %p180 = por %p178, %p179
    %s181 = ssub.s32 %s33, %s40
    %p182 = scmp.eq.s32.totalorder %s181, 0
    %s184 = sadd.s32 %s183, 1
    %s185 = scalar_select %p182, %s183, %s184
    %p188 = pneg %p182
    %p189 = scmp.eq.s32.totalorder %s25, 3
    %p190 = por %p188, %p189
    %p191 = scmp.ne.s32.totalorder %s183, %s186
    %p192 = scmp.eq.s32.totalorder %s25, 0
    %p193 = por %p191, %p192
    %p194 = scmp.ne.s32.totalorder %s183, %s186
    %p195 = scmp.eq.s32.totalorder %s30, 3
    %p196 = por %p194, %p195
    %p197 = scmp.ne.s32.totalorder %s186, %s187
    %p198 = scmp.eq.s32.totalorder %s30, 0
    %p199 = por %p197, %p198
    %p200 = scmp.ne.s32.totalorder %s186, %s187
    %p201 = scmp.eq.s32.totalorder %s31, 3
    %p202 = por %p200, %p201
    %p204 = scmp.ne.s32.totalorder %s187, %s203
    %p205 = scmp.eq.s32.totalorder %s31, 0
    %p206 = por %p204, %p205
    %s207 = ssub.s32 %s33, %s40
    %p208 = scmp.eq.s32.totalorder %s207, 0
    %s210 = sadd.s32 %s209, 1
    %s211 = scalar_select %p208, %s209, %s210
    %p214 = pneg %p208
    %p215 = scmp.eq.s32.totalorder %s25, 3
    %p216 = por %p214, %p215
    %p217 = scmp.ne.s32.totalorder %s209, %s212
    %p218 = scmp.eq.s32.totalorder %s25, 0
    %p219 = por %p217, %p218
    %p220 = scmp.ne.s32.totalorder %s209, %s212
    %p221 = scmp.eq.s32.totalorder %s30, 3
    %p222 = por %p220, %p221
    %p223 = scmp.ne.s32.totalorder %s212, %s213
    %p224 = scmp.eq.s32.totalorder %s30, 0
    %p225 = por %p223, %p224
    %p226 = scmp.ne.s32.totalorder %s212, %s213
    %p227 = scmp.eq.s32.totalorder %s31, 3
    %p228 = por %p226, %p227
    %p230 = scmp.ne.s32.totalorder %s213, %s229
    %p231 = scmp.eq.s32.totalorder %s31, 0
    %p232 = por %p230, %p231
    %s233 = ssub.s32 %s33, %s40
    %p234 = scmp.eq.s32.totalorder %s233, 0
    %s236 = sadd.s32 %s235, 1
    %s237 = scalar_select %p234, %s235, %s236
    %p240 = pneg %p234
    %p241 = scmp.eq.s32.totalorder %s25, 3
    %p242 = por %p240, %p241
    %p243 = scmp.ne.s32.totalorder %s235, %s238
    %p244 = scmp.eq.s32.totalorder %s25, 0
    %p245 = por %p243, %p244
    %p246 = scmp.ne.s32.totalorder %s235, %s238
    %p247 = scmp.eq.s32.totalorder %s30, 3
    %p248 = por %p246, %p247
    %p249 = scmp.ne.s32.totalorder %s238, %s239
    %p250 = scmp.eq.s32.totalorder %s30, 0
    %p251 = por %p249, %p250
    %p252 = scmp.ne.s32.totalorder %s238, %s239
    %p253 = scmp.eq.s32.totalorder %s31, 3
    %p254 = por %p252, %p253
    %p256 = scmp.ne.s32.totalorder %s239, %s255
    %p257 = scmp.eq.s32.totalorder %s31, 0
    %p258 = por %p256, %p257
    %s259 = ssub.s32 %s33, %s40
    %p260 = scmp.eq.s32.totalorder %s259, 0
    %s262 = sadd.s32 %s261, 1
    %s263 = scalar_select %p260, %s261, %s262
    %p266 = pneg %p260
    %p267 = scmp.eq.s32.totalorder %s25, 3
    %p268 = por %p266, %p267
    %p269 = scmp.ne.s32.totalorder %s261, %s264
    %p270 = scmp.eq.s32.totalorder %s25, 0
    %p271 = por %p269, %p270
    %p272 = scmp.ne.s32.totalorder %s261, %s264
    %p273 = scmp.eq.s32.totalorder %s30, 3
    %p274 = por %p272, %p273
    %p275 = scmp.ne.s32.totalorder %s264, %s265
    %p276 = scmp.eq.s32.totalorder %s30, 0
    %p277 = por %p275, %p276
    %p278 = scmp.ne.s32.totalorder %s264, %s265
    %p279 = scmp.eq.s32.totalorder %s31, 3
    %p280 = por %p278, %p279
    %p282 = scmp.ne.s32.totalorder %s265, %s281
    %p283 = scmp.eq.s32.totalorder %s31, 0
    %p284 = por %p282, %p283
    %s285 = ssub.s32 %s33, %s40
    %p286 = scmp.eq.s32.totalorder %s285, 0
    %s288 = sadd.s32 %s287, 1
    %s289 = scalar_select %p286, %s287, %s288
    %p292 = pneg %p286
    %p293 = scmp.eq.s32.totalorder %s25, 3
    %p294 = por %p292, %p293
    %p295 = scmp.ne.s32.totalorder %s287, %s290
    %p296 = scmp.eq.s32.totalorder %s25, 0
    %p297 = por %p295, %p296
    %p298 = scmp.ne.s32.totalorder %s287, %s290
    %p299 = scmp.eq.s32.totalorder %s30, 3
    %p300 = por %p298, %p299
    %p301 = scmp.ne.s32.totalorder %s290, %s291
    %p302 = scmp.eq.s32.totalorder %s30, 0
    %p303 = por %p301, %p302
    %p304 = scmp.ne.s32.totalorder %s290, %s291
    %p305 = scmp.eq.s32.totalorder %s31, 3
    %p306 = por %p304, %p305
    %p308 = scmp.ne.s32.totalorder %s291, %s307
    %p309 = scmp.eq.s32.totalorder %s31, 0
    %p310 = por %p308, %p309
    %s311 = ssub.s32 %s33, %s40
    %p312 = scmp.eq.s32.totalorder %s311, 0
    %s314 = sadd.s32 %s313, 1
    %s315 = scalar_select %p312, %s313, %s314
    %p318 = pneg %p312
    %p319 = scmp.eq.s32.totalorder %s25, 3
    %p320 = por %p318, %p319
    %p321 = scmp.ne.s32.totalorder %s313, %s316
    %p322 = scmp.eq.s32.totalorder %s25, 0
    %p323 = por %p321, %p322
    %p324 = scmp.ne.s32.totalorder %s313, %s316
    %p325 = scmp.eq.s32.totalorder %s30, 3
    %p326 = por %p324, %p325
    %p327 = scmp.ne.s32.totalorder %s316, %s317
    %p328 = scmp.eq.s32.totalorder %s30, 0
    %p329 = por %p327, %p328
    %p330 = scmp.ne.s32.totalorder %s316, %s317
    %p331 = scmp.eq.s32.totalorder %s31, 3
    %p332 = por %p330, %p331
    %p334 = scmp.ne.s32.totalorder %s317, %s333
    %p335 = scmp.eq.s32.totalorder %s31, 0
    %p336 = por %p334, %p335
    %s337 = ssub.s32 %s33, %s40
    %p338 = scmp.eq.s32.totalorder %s337, 0
    %s340 = sadd.s32 %s339, 1
    %s341 = scalar_select %p338, %s339, %s340
    %p344 = pneg %p338
    %p345 = scmp.eq.s32.totalorder %s25, 3
    %p346 = por %p344, %p345
    %p347 = scmp.ne.s32.totalorder %s339, %s342
    %p348 = scmp.eq.s32.totalorder %s25, 0
    %p349 = por %p347, %p348
    %p350 = scmp.ne.s32.totalorder %s339, %s342
    %p351 = scmp.eq.s32.totalorder %s30, 3
    %p352 = por %p350, %p351
    %p353 = scmp.ne.s32.totalorder %s342, %s343
    %p354 = scmp.eq.s32.totalorder %s30, 0
    %p355 = por %p353, %p354
    %p356 = scmp.ne.s32.totalorder %s342, %s343
    %p357 = scmp.eq.s32.totalorder %s31, 3
    %p358 = por %p356, %p357
    %p360 = scmp.ne.s32.totalorder %s343, %s359
    %p361 = scmp.eq.s32.totalorder %s31, 0
    %p362 = por %p360, %p361
    %s363 = ssub.s32 %s33, %s40
    %p364 = scmp.eq.s32.totalorder %s363, 0
    %s366 = sadd.s32 %s365, 1
    %s367 = scalar_select %p364, %s365, %s366
    %p370 = pneg %p364
    %p371 = scmp.eq.s32.totalorder %s25, 3
    %p372 = por %p370, %p371
    %p373 = scmp.ne.s32.totalorder %s365, %s368
    %p374 = scmp.eq.s32.totalorder %s25, 0
    %p375 = por %p373, %p374
    %p376 = scmp.ne.s32.totalorder %s365, %s368
    %p377 = scmp.eq.s32.totalorder %s30, 3
    %p378 = por %p376, %p377
    %p379 = scmp.ne.s32.totalorder %s368, %s369
    %p380 = scmp.eq.s32.totalorder %s30, 0
    %p381 = por %p379, %p380
    %p382 = scmp.ne.s32.totalorder %s368, %s369
    %p383 = scmp.eq.s32.totalorder %s31, 3
    %p384 = por %p382, %p383
    %p386 = scmp.ne.s32.totalorder %s369, %s385
    %p387 = scmp.eq.s32.totalorder %s31, 0
    %p388 = por %p386, %p387
    %s389 = ssub.s32 %s33, %s40
    %p390 = scmp.eq.s32.totalorder %s389, 0
    %s392 = sadd.s32 %s391, 1
    %s393 = scalar_select %p390, %s391, %s392
    %p396 = pneg %p390
    %p397 = scmp.eq.s32.totalorder %s25, 3
    %p398 = por %p396, %p397
    %p399 = scmp.ne.s32.totalorder %s391, %s394
    %p400 = scmp.eq.s32.totalorder %s25, 0
    %p401 = por %p399, %p400
    %p402 = scmp.ne.s32.totalorder %s391, %s394
    %p403 = scmp.eq.s32.totalorder %s30, 3
    %p404 = por %p402, %p403
    %p405 = scmp.ne.s32.totalorder %s394, %s395
    %p406 = scmp.eq.s32.totalorder %s30, 0
    %p407 = por %p405, %p406
    %p408 = scmp.ne.s32.totalorder %s394, %s395
    %p409 = scmp.eq.s32.totalorder %s31, 3
    %p410 = por %p408, %p409
    %p412 = scmp.ne.s32.totalorder %s395, %s411
    %p413 = scmp.eq.s32.totalorder %s31, 0
    %p414 = por %p412, %p413
    %s415 = ssub.s32 %s33, %s40
    %p416 = scmp.eq.s32.totalorder %s415, 0
    %s418 = sadd.s32 %s417, 1
    %s419 = scalar_select %p416, %s417, %s418
    %p422 = pneg %p416
    %p423 = scmp.eq.s32.totalorder %s25, 3
    %p424 = por %p422, %p423
    %p425 = scmp.ne.s32.totalorder %s417, %s420
    %p426 = scmp.eq.s32.totalorder %s25, 0
    %p427 = por %p425, %p426
    %p428 = scmp.ne.s32.totalorder %s417, %s420
    %p429 = scmp.eq.s32.totalorder %s30, 3
    %p430 = por %p428, %p429
    %p431 = scmp.ne.s32.totalorder %s420, %s421
    %p432 = scmp.eq.s32.totalorder %s30, 0
    %p433 = por %p431, %p432
    %p434 = scmp.ne.s32.totalorder %s420, %s421
    %p435 = scmp.eq.s32.totalorder %s31, 3
    %p436 = por %p434, %p435
    %p438 = scmp.ne.s32.totalorder %s421, %s437
    %p439 = scmp.eq.s32.totalorder %s31, 0
    %p440 = por %p438, %p439
    %s441 = ssub.s32 %s33, %s40
    %p442 = scmp.eq.s32.totalorder %s441, 0
    %s444 = sadd.s32 %s443, 1
    %s445 = scalar_select %p442, %s443, %s444
    %p448 = pneg %p442
    %p449 = scmp.eq.s32.totalorder %s25, 3
    %p450 = por %p448, %p449
    %p451 = scmp.ne.s32.totalorder %s443, %s446
    %p452 = scmp.eq.s32.totalorder %s25, 0
    %p453 = por %p451, %p452
    %p454 = scmp.ne.s32.totalorder %s443, %s446
    %p455 = scmp.eq.s32.totalorder %s30, 3
    %p456 = por %p454, %p455
    %p457 = scmp.ne.s32.totalorder %s446, %s447
    %p458 = scmp.eq.s32.totalorder %s30, 0
    %p459 = por %p457, %p458
    %p460 = scmp.ne.s32.totalorder %s446, %s447
    %p461 = scmp.eq.s32.totalorder %s31, 3
    %p462 = por %p460, %p461
    %p464 = scmp.ne.s32.totalorder %s447, %s463
    %p465 = scmp.eq.s32.totalorder %s31, 0
    %p466 = por %p464, %p465
    %s468 = sadd.s32 %s467, 1
    %p471 = scmp.eq.s32.totalorder %s25, 3
    %p472 = scmp.ne.s32.totalorder %s467, %s469
    %p473 = scmp.eq.s32.totalorder %s25, 0
    %p474 = por %p472, %p473
    %p475 = scmp.ne.s32.totalorder %s467, %s469
    %p476 = scmp.eq.s32.totalorder %s30, 3
    %p477 = por %p475, %p476
    %p478 = scmp.ne.s32.totalorder %s469, %s470
    %p479 = scmp.eq.s32.totalorder %s30, 0
    %p480 = por %p478, %p479
    %p481 = scmp.ne.s32.totalorder %s469, %s470
    %p482 = scmp.eq.s32.totalorder %s31, 3
    %p483 = por %p481, %p482
    %p485 = scmp.ne.s32.totalorder %s470, %s484
    %p486 = scmp.eq.s32.totalorder %s31, 0
    %p487 = por %p485, %p486
    %s489 = sadd.s32 %s488, 1
    %p492 = scmp.eq.s32.totalorder %s25, 3
    %p493 = scmp.ne.s32.totalorder %s488, %s490
    %p494 = scmp.eq.s32.totalorder %s25, 0
    %p495 = por %p493, %p494
    %p496 = scmp.ne.s32.totalorder %s488, %s490
    %p497 = scmp.eq.s32.totalorder %s30, 3
    %p498 = por %p496, %p497
    %p499 = scmp.ne.s32.totalorder %s490, %s491
    %p500 = scmp.eq.s32.totalorder %s30, 0
    %p501 = por %p499, %p500
    %p502 = scmp.ne.s32.totalorder %s490, %s491
    %p503 = scmp.eq.s32.totalorder %s31, 3
    %p504 = por %p502, %p503
    %p506 = scmp.ne.s32.totalorder %s491, %s505
    %p507 = scmp.eq.s32.totalorder %s31, 0
    %p508 = por %p506, %p507
    %s509 = ssub.s32 %s32, %s44
    %p510 = scmp.eq.s32.totalorder %s509, 0
    %s512 = sadd.s32 %s511, 1
    %s513 = scalar_select %p510, %s511, %s512
    %p516 = pneg %p510
    %p517 = scmp.eq.s32.totalorder %s25, 3
    %p518 = por %p516, %p517
    %p519 = scmp.ne.s32.totalorder %s511, %s514
    %p520 = scmp.eq.s32.totalorder %s25, 0
    %p521 = por %p519, %p520
    %p522 = scmp.ne.s32.totalorder %s511, %s514
    %p523 = scmp.eq.s32.totalorder %s30, 3
    %p524 = por %p522, %p523
    %p525 = scmp.ne.s32.totalorder %s514, %s515
    %p526 = scmp.eq.s32.totalorder %s30, 0
    %p527 = por %p525, %p526
    %p528 = scmp.ne.s32.totalorder %s514, %s515
    %p529 = scmp.eq.s32.totalorder %s31, 3
    %p530 = por %p528, %p529
    %p532 = scmp.ne.s32.totalorder %s515, %s531
    %p533 = scmp.eq.s32.totalorder %s31, 0
    %p534 = por %p532, %p533
    %p535 = scmp.le.s32.totalorder 1, %s25
    %p536 = scmp.lt.s32.totalorder %s25, 5
    %p537 = pnand %p535, %p536
    %p538 = pneg %p537
    // Predicated region
    $region9: #{fwd.1} parent=5 // pred_check
      _
    $region10: #{fwd.1} parent=5 // pred_check_branch
      %540 = sbr.rel (%p537) target = $region12
    $region11: #{fwd.1} parent=5 // pred_region
      %s541 = ssub.s32 %s25, 1
      // Predicated region
      $region13: #{fwd.1} parent=11 // pred_check
        %p542 = pneg %p84
      $region14: #{fwd.1} parent=11 // pred_check_branch
        %544 = sbr.rel (%p542) target = $region16
      $region15: #{fwd.1} parent=11 // pred_region
        _
      $region16: #{fwd.1} parent=11 // pred_fallthru
        _
      // Predicated region
      $region17: #{fwd.1} parent=11 // pred_check
        %p545 = pneg %p105
      $region18: #{fwd.1} parent=11 // pred_check_branch
        %547 = sbr.rel (%p545) target = $region20
      $region19: #{fwd.1} parent=11 // pred_region
        _
      $region20: #{fwd.1} parent=11 // pred_fallthru
        _
      // Predicated region
      $region21: #{fwd.1} parent=11 // pred_check
        %p548 = pneg %p126
      $region22: #{fwd.1} parent=11 // pred_check_branch
        %550 = sbr.rel (%p548) target = $region24
      $region23: #{fwd.1} parent=11 // pred_region
        _
      $region24: #{fwd.1} parent=11 // pred_fallthru
        _
      // Predicated region
      $region25: #{fwd.1} parent=11 // pred_check
        %p551 = pneg %p147
      $region26: #{fwd.1} parent=11 // pred_check_branch
        %553 = sbr.rel (%p551) target = $region28
      $region27: #{fwd.1} parent=11 // pred_region
        _
      $region28: #{fwd.1} parent=11 // pred_fallthru
        _
      // Predicated region
      $region29: #{fwd.1} parent=11 // pred_check
        %p554 = pneg %p480
      $region30: #{fwd.1} parent=11 // pred_check_branch
        %556 = sbr.rel (%p554) target = $region32
      $region31: #{fwd.1} parent=11 // pred_region
        _
      $region32: #{fwd.1} parent=11 // pred_fallthru
        _
      // Predicated region
      $region33: #{fwd.1} parent=11 // pred_check
        %p557 = pneg %p501
      $region34: #{fwd.1} parent=11 // pred_check_branch
        %559 = sbr.rel (%p557) target = $region36
      $region35: #{fwd.1} parent=11 // pred_region
        _
      $region36: #{fwd.1} parent=11 // pred_fallthru
        _
    $region12: #{fwd.1} parent=5 // pred_fallthru
      _
    %p560 = scmp.lt.s32.totalorder %s25, 4
    // Predicated region
    $region37: #{fwd.1} parent=5 // pred_check
      %p561 = pneg %p560
    $region38: #{fwd.1} parent=5 // pred_check_branch
      %563 = sbr.rel (%p561) target = $region40
    $region39: #{fwd.1} parent=5 // pred_region
      // Predicated region
      $region41: #{fwd.1} parent=39 // pred_check
        %p564 = pneg %p57
      $region42: #{fwd.1} parent=39 // pred_check_branch
        %566 = sbr.rel (%p564) target = $region44
      $region43: #{fwd.1} parent=39 // pred_region
        %p567 = scmp.lt.s32.totalorder %s32, 1
        %s568 = scalar_select %p567, %s32, 1
        %s569 = smul.addr %s568, 12
        %s570 = smul.addr %s569, 4
        %s571 = scalar_lea.vmem %s0, %s570
      $region44: #{fwd.1} parent=39 // pred_fallthru
        _
      // Predicated region
      $region45: #{fwd.1} parent=39 // pred_check
        %p572 = pneg %p167
      $region46: #{fwd.1} parent=39 // pred_check_branch
        %574 = sbr.rel (%p572) target = $region48
      $region47: #{fwd.1} parent=39 // pred_region
        %p575 = scmp.lt.s32.totalorder %s33, 1
        %s576 = scalar_select %p575, %s33, 1
        %s577 = scalar_lea.vmem %s5, %s576
      $region48: #{fwd.1} parent=39 // pred_fallthru
        _
      // Predicated region
      $region49: #{fwd.1} parent=39 // pred_check
        %p578 = pneg %p193
      $region50: #{fwd.1} parent=39 // pred_check_branch
        %580 = sbr.rel (%p578) target = $region52
      $region51: #{fwd.1} parent=39 // pred_region
        %p581 = scmp.lt.s32.totalorder %s33, 1
        %s582 = scalar_select %p581, %s33, 1
        %s583 = scalar_lea.vmem %s6, %s582
      $region52: #{fwd.1} parent=39 // pred_fallthru
        _
      // Predicated region
      $region53: #{fwd.1} parent=39 // pred_check
        %p584 = pneg %p219
      $region54: #{fwd.1} parent=39 // pred_check_branch
        %586 = sbr.rel (%p584) target = $region56
      $region55: #{fwd.1} parent=39 // pred_region
        %p587 = scmp.lt.s32.totalorder %s33, 1
        %s588 = scalar_select %p587, %s33, 1
        %s589 = smul.addr %s588, 48
        %s590 = smul.addr %s589, 4
        %s591 = scalar_lea.vmem %s7, %s590
      $region56: #{fwd.1} parent=39 // pred_fallthru
        _
      // Predicated region
      $region57: #{fwd.1} parent=39 // pred_check
        %p592 = pneg %p245
      $region58: #{fwd.1} parent=39 // pred_check_branch
        %594 = sbr.rel (%p592) target = $region60
      $region59: #{fwd.1} parent=39 // pred_region
        %p595 = scmp.lt.s32.totalorder %s33, 1
        %s596 = scalar_select %p595, %s33, 1
        %s597 = smul.addr %s596, 3
        %s598 = scalar_lea.vmem %s8, %s597
      $region60: #{fwd.1} parent=39 // pred_fallthru
        _
      // Predicated region
      $region61: #{fwd.1} parent=39 // pred_check
        %p599 = pneg %p271
      $region62: #{fwd.1} parent=39 // pred_check_branch
        %601 = sbr.rel (%p599) target = $region64
      $region63: #{fwd.1} parent=39 // pred_region
        %p602 = scmp.lt.s32.totalorder %s33, 1
        %s603 = scalar_select %p602, %s33, 1
        %s604 = smul.addr %s603, 16
        %s605 = smul.addr %s604, 4
        %s606 = scalar_lea.vmem %s9, %s605
      $region64: #{fwd.1} parent=39 // pred_fallthru
        _
      // Predicated region
      $region65: #{fwd.1} parent=39 // pred_check
        %p607 = pneg %p297
      $region66: #{fwd.1} parent=39 // pred_check_branch
        %609 = sbr.rel (%p607) target = $region68
      $region67: #{fwd.1} parent=39 // pred_region
        %p610 = scmp.lt.s32.totalorder %s33, 1
        %s611 = scalar_select %p610, %s33, 1
        %s612 = scalar_lea.vmem %s10, %s611
      $region68: #{fwd.1} parent=39 // pred_fallthru
        _
      // Predicated region
      $region69: #{fwd.1} parent=39 // pred_check
        %p613 = pneg %p323
      $region70: #{fwd.1} parent=39 // pred_check_branch
        %615 = sbr.rel (%p613) target = $region72
      $region71: #{fwd.1} parent=39 // pred_region
        %p616 = scmp.lt.s32.totalorder %s33, 1
        %s617 = scalar_select %p616, %s33, 1
        %s618 = scalar_lea.vmem %s11, %s617
      $region72: #{fwd.1} parent=39 // pred_fallthru
        _
      // Predicated region
      $region73: #{fwd.1} parent=39 // pred_check
        %p619 = pneg %p349
      $region74: #{fwd.1} parent=39 // pred_check_branch
        %621 = sbr.rel (%p619) target = $region76
      $region75: #{fwd.1} parent=39 // pred_region
        %p622 = scmp.lt.s32.totalorder %s33, 1
        %s623 = scalar_select %p622, %s33, 1
        %s624 = scalar_lea.vmem %s12, %s623
      $region76: #{fwd.1} parent=39 // pred_fallthru
        _
      // Predicated region
      $region77: #{fwd.1} parent=39 // pred_check
        %p625 = pneg %p375
      $region78: #{fwd.1} parent=39 // pred_check_branch
        %627 = sbr.rel (%p625) target = $region80
      $region79: #{fwd.1} parent=39 // pred_region
        %p628 = scmp.lt.s32.totalorder %s33, 1
        %s629 = scalar_select %p628, %s33, 1
        %s630 = smul.addr %s629, 64
        %s631 = smul.addr %s630, 4
        %s632 = scalar_lea.vmem %s13, %s631
      $region80: #{fwd.1} parent=39 // pred_fallthru
        _
      // Predicated region
      $region81: #{fwd.1} parent=39 // pred_check
        %p633 = pneg %p401
      $region82: #{fwd.1} parent=39 // pred_check_branch
        %635 = sbr.rel (%p633) target = $region84
      $region83: #{fwd.1} parent=39 // pred_region
        %p636 = scmp.lt.s32.totalorder %s33, 1
        %s637 = scalar_select %p636, %s33, 1
        %s638 = smul.addr %s637, 4
        %s639 = scalar_lea.vmem %s14, %s638
      $region84: #{fwd.1} parent=39 // pred_fallthru
        _
      // Predicated region
      $region85: #{fwd.1} parent=39 // pred_check
        %p640 = pneg %p427
      $region86: #{fwd.1} parent=39 // pred_check_branch
        %642 = sbr.rel (%p640) target = $region88
      $region87: #{fwd.1} parent=39 // pred_region
        %p643 = scmp.lt.s32.totalorder %s33, 1
        %s644 = scalar_select %p643, %s33, 1
        %s645 = smul.addr %s644, 64
        %s646 = smul.addr %s645, 4
        %s647 = scalar_lea.vmem %s15, %s646
      $region88: #{fwd.1} parent=39 // pred_fallthru
        _
      // Predicated region
      $region89: #{fwd.1} parent=39 // pred_check
        %p648 = pneg %p453
      $region90: #{fwd.1} parent=39 // pred_check_branch
        %650 = sbr.rel (%p648) target = $region92
      $region91: #{fwd.1} parent=39 // pred_region
        %p651 = scmp.lt.s32.totalorder %s33, 1
        %s652 = scalar_select %p651, %s33, 1
        %s653 = scalar_lea.vmem %s16, %s652
      $region92: #{fwd.1} parent=39 // pred_fallthru
        _
    $region40: #{fwd.1} parent=5 // pred_fallthru
      _
    %p654 = scmp.le.s32.totalorder 1, %s25
    %p655 = scmp.lt.s32.totalorder %s25, 5
    %p656 = pnand %p654, %p655
    %p657 = pneg %p656
    // Predicated region
    $region93: #{fwd.1} parent=5 // pred_check
      _
    $region94: #{fwd.1} parent=5 // pred_check_branch
      %659 = sbr.rel (%p656) target = $region96
    $region95: #{fwd.1} parent=5 // pred_region
      %s660 = ssub.s32 %s25, 1
      %p661 = scmp.lt.s32.totalorder %s34, 1
      %s662 = scalar_select %p661, %s34, 1
      %s663 = smul.addr %s662, 12
      %s664 = smul.addr %s663, 4
      %s665 = scalar_lea.vmem %s0, %s664
      %p666 = pneg %p63
      %p667 = pneg %p60
      %p668 = pneg %p84
      %p669 = pneg %p81
      %p670 = pneg %p105
      %p671 = pneg %p102
      %p672 = pneg %p126
      %p673 = pneg %p123
      %p674 = pneg %p147
      %p675 = pneg %p144
      %p676 = scmp.lt.s32.totalorder %s35, 1
      %s677 = scalar_select %p676, %s35, 1
      %s678 = scalar_lea.vmem %s5, %s677
      %p679 = pneg %p173
      %p680 = pneg %p170
      %p681 = scmp.lt.s32.totalorder %s35, 1
      %s682 = scalar_select %p681, %s35, 1
      %s683 = scalar_lea.vmem %s6, %s682
      %p684 = pneg %p199
      %p685 = pneg %p196
      %p686 = scmp.lt.s32.totalorder %s35, 1
      %s687 = scalar_select %p686, %s35, 1
      %s688 = smul.addr %s687, 48
      %s689 = smul.addr %s688, 4
      %s690 = scalar_lea.vmem %s7, %s689
      %p691 = pneg %p225
      %p692 = pneg %p222
      %p693 = scmp.lt.s32.totalorder %s35, 1
      %s694 = scalar_select %p693, %s35, 1
      %s695 = smul.addr %s694, 3
      %s696 = scalar_lea.vmem %s8, %s695
      %p697 = pneg %p251
      %p698 = pneg %p248
      %p699 = scmp.lt.s32.totalorder %s35, 1
      %s700 = scalar_select %p699, %s35, 1
      %s701 = smul.addr %s700, 16
      %s702 = smul.addr %s701, 4
      %s703 = scalar_lea.vmem %s9, %s702
      %p704 = pneg %p277
      %p705 = pneg %p274
      %p706 = scmp.lt.s32.totalorder %s35, 1
      %s707 = scalar_select %p706, %s35, 1
      %s708 = scalar_lea.vmem %s10, %s707
      %p709 = pneg %p303
      %p710 = pneg %p300
      %p711 = scmp.lt.s32.totalorder %s35, 1
      %s712 = scalar_select %p711, %s35, 1
      %s713 = scalar_lea.vmem %s11, %s712
      %p714 = pneg %p329
      %p715 = pneg %p326
      %p716 = scmp.lt.s32.totalorder %s35, 1
      %s717 = scalar_select %p716, %s35, 1
      %s718 = scalar_lea.vmem %s12, %s717
      %p719 = pneg %p355
      %p720 = pneg %p352
      %p721 = scmp.lt.s32.totalorder %s35, 1
      %s722 = scalar_select %p721, %s35, 1
      %s723 = smul.addr %s722, 64
      %s724 = smul.addr %s723, 4
      %s725 = scalar_lea.vmem %s13, %s724
      %p726 = pneg %p381
      %p727 = pneg %p378
      %p728 = scmp.lt.s32.totalorder %s35, 1
      %s729 = scalar_select %p728, %s35, 1
      %s730 = smul.addr %s729, 4
      %s731 = scalar_lea.vmem %s14, %s730
      %p732 = pneg %p407
      %p733 = pneg %p404
      %p734 = scmp.lt.s32.totalorder %s35, 1
      %s735 = scalar_select %p734, %s35, 1
      %s736 = smul.addr %s735, 64
      %s737 = smul.addr %s736, 4
      %s738 = scalar_lea.vmem %s15, %s737
      %p739 = pneg %p433
      %p740 = pneg %p430
      %p741 = scmp.lt.s32.totalorder %s35, 1
      %s742 = scalar_select %p741, %s35, 1
      %s743 = scalar_lea.vmem %s16, %s742
      %p744 = pneg %p459
      %p745 = pneg %p456
      %p746 = pneg %p480
      %p747 = pneg %p477
      %p748 = pneg %p501
      %p749 = pneg %p498
      %p750 = pneg %p527
      %p751 = pneg %p524
      %p752 = scmp.lt.s32.totalorder %s34, 1
      %s753 = scalar_select %p752, %s34, 1
      %s754 = smul.addr %s753, 3
      %s755 = smul.addr %s754, 8
      %s756 = scalar_lea.vmem %s19, %s755
      %p757 = scmp.lt.s32.totalorder %s34, 1
      %s758 = scalar_select %p757, %s34, 1
      %s759 = smul.addr %s758, 12
      %s760 = smul.addr %s759, 4
      %s761 = scalar_lea.vmem %s0, %s760
      %p762 = scmp.lt.s32.totalorder %s35, 1
      %s763 = scalar_select %p762, %s35, 1
      %s764 = scalar_lea.vmem %s5, %s763
      %p765 = scmp.lt.s32.totalorder %s35, 1
      %s766 = scalar_select %p765, %s35, 1
      %s767 = scalar_lea.vmem %s6, %s766
      %p768 = scmp.lt.s32.totalorder %s35, 1
      %s769 = scalar_select %p768, %s35, 1
      %s770 = smul.addr %s769, 48
      %s771 = smul.addr %s770, 4
      %s772 = scalar_lea.vmem %s7, %s771
      %p773 = scmp.lt.s32.totalorder %s35, 1
      %s774 = scalar_select %p773, %s35, 1
      %s775 = smul.addr %s774, 3
      %s776 = scalar_lea.vmem %s8, %s775
      %p777 = scmp.lt.s32.totalorder %s35, 1
      %s778 = scalar_select %p777, %s35, 1
      %s779 = smul.addr %s778, 16
      %s780 = smul.addr %s779, 4
      %s781 = scalar_lea.vmem %s9, %s780
      %p782 = scmp.lt.s32.totalorder %s35, 1
      %s783 = scalar_select %p782, %s35, 1
      %s784 = scalar_lea.vmem %s10, %s783
      %p785 = scmp.lt.s32.totalorder %s35, 1
      %s786 = scalar_select %p785, %s35, 1
      %s787 = scalar_lea.vmem %s11, %s786
      %p788 = scmp.lt.s32.totalorder %s35, 1
      %s789 = scalar_select %p788, %s35, 1
      %s790 = scalar_lea.vmem %s12, %s789
      %p791 = scmp.lt.s32.totalorder %s35, 1
      %s792 = scalar_select %p791, %s35, 1
      %s793 = smul.addr %s792, 64
      %s794 = smul.addr %s793, 4
      %s795 = scalar_lea.vmem %s13, %s794
      %p796 = scmp.lt.s32.totalorder %s35, 1
      %s797 = scalar_select %p796, %s35, 1
      %s798 = smul.addr %s797, 4
      %s799 = scalar_lea.vmem %s14, %s798
      %p800 = scmp.lt.s32.totalorder %s35, 1
      %s801 = scalar_select %p800, %s35, 1
      %s802 = smul.addr %s801, 64
      %s803 = smul.addr %s802, 4
      %s804 = scalar_lea.vmem %s15, %s803
      %p805 = scmp.lt.s32.totalorder %s35, 1
      %s806 = scalar_select %p805, %s35, 1
      %s807 = scalar_lea.vmem %s16, %s806
      %p808 = scmp.lt.s32.totalorder %s34, 1
      %s809 = scalar_select %p808, %s34, 1
      %s810 = smul.addr %s809, 3
      %s811 = smul.addr %s810, 8
      %s812 = scalar_lea.vmem %s19, %s811
      %p814 = scmp.eq.s32.totalorder %s35, 0
      // Predicated region
      $region97: #{fwd.1} parent=95 // pred_check
        %p815 = pneg %p814
      $region98: #{fwd.1} parent=95 // pred_check_branch
        %817 = sbr.rel (%p815) target = $region100
      $region99: #{fwd.1} parent=95 // pred_region
        %v818 = vld [vmem:[%s761] sm:$0xff]
        %v819 = vld [vmem:[%s761 + $0x8] sm:$0xff]
        %v820 = vld [vmem:[%s761 + $0x10] sm:$0xff]
        %v821 = vld [vmem:[%s761 + $0x18] sm:$0xff]
        %v822 = vld [vmem:[%s761 + $0x20] sm:$0xff]
        %v823 = vld [vmem:[%s761 + $0x28] sm:$0xff]
        %v824 = vld [vmem:[%s1] sm:$0xf]
        %v825 = vld [vmem:[%s1 + $0x4] sm:$0xf]
        %v826 = vld [vmem:[%s1 + $0x8] sm:$0xf]
        %v827 = vld [vmem:[%s1 + $0xc] sm:$0xf]
        %v828 = vld [vmem:[%s1 + $0x10] sm:$0xf]
        %v829 = vld [vmem:[%s1 + $0x14] sm:$0xf]
        %v830 = vld [vmem:[%s1 + $0x18] sm:$0xf]
        %v831 = vld [vmem:[%s1 + $0x1c] sm:$0xf]
        %v832 = vld [vmem:[%s1 + $0x20] sm:$0xf]
        %v833 = vld [vmem:[%s1 + $0x24] sm:$0xf]
        %v834 = vld [vmem:[%s1 + $0x28] sm:$0xf]
        %v835 = vld [vmem:[%s1 + $0x2c] sm:$0xf]
        %v836 = vld [vmem:[%s1 + $0x30] sm:$0xf]
        %v837 = vld [vmem:[%s1 + $0x34] sm:$0xf]
        %v838 = vld [vmem:[%s1 + $0x38] sm:$0xf]
        %v839 = vld [vmem:[%s1 + $0x3c] sm:$0xf]
        %v840 = vld [vmem:[%s1 + $0x40] sm:$0xf]
        %v841 = vld [vmem:[%s1 + $0x44] sm:$0xf]
        %v842 = vld [vmem:[%s1 + $0x48] sm:$0xf]
        %v843 = vld [vmem:[%s1 + $0x4c] sm:$0xf]
        %v844 = vld [vmem:[%s1 + $0x50] sm:$0xf]
        %v845 = vld [vmem:[%s1 + $0x54] sm:$0xf]
        %v846 = vld [vmem:[%s1 + $0x58] sm:$0xf]
        %v847 = vld [vmem:[%s1 + $0x5c] sm:$0xf]
        %v848 = vld [vmem:[%s1 + $0x60] sm:$0xf]
        %v849 = vld [vmem:[%s1 + $0x64] sm:$0xf]
        %v850 = vld [vmem:[%s1 + $0x68] sm:$0xf]
        %v851 = vld [vmem:[%s1 + $0x6c] sm:$0xf]
        %v852 = vld [vmem:[%s1 + $0x70] sm:$0xf]
        %v853 = vld [vmem:[%s1 + $0x74] sm:$0xf]
        %v854 = vld [vmem:[%s1 + $0x78] sm:$0xf]
        %v855 = vld [vmem:[%s1 + $0x7c] sm:$0xf]
        %v856 = vld [vmem:[%s1 + $0x80] sm:$0xf]
        %v857 = vld [vmem:[%s1 + $0x84] sm:$0xf]
        %v858 = vld [vmem:[%s1 + $0x88] sm:$0xf]
        %v859 = vld [vmem:[%s1 + $0x8c] sm:$0xf]
        %v860 = vld [vmem:[%s1 + $0x90] sm:$0xf]
        %v861 = vld [vmem:[%s1 + $0x94] sm:$0xf]
        %v862 = vld [vmem:[%s1 + $0x98] sm:$0xf]
        %v863 = vld [vmem:[%s1 + $0x9c] sm:$0xf]
        %v864 = vld [vmem:[%s1 + $0xa0] sm:$0xf]
        %v865 = vld [vmem:[%s1 + $0xa4] sm:$0xf]
        %v866 = vld [vmem:[%s1 + $0xa8] sm:$0xf]
        %v867 = vld [vmem:[%s1 + $0xac] sm:$0xf]
        %v868 = vld [vmem:[%s1 + $0xb0] sm:$0xf]
        %v869 = vld [vmem:[%s1 + $0xb4] sm:$0xf]
        %v870 = vld [vmem:[%s1 + $0xb8] sm:$0xf]
        %v871 = vld [vmem:[%s1 + $0xbc] sm:$0xf]
        %v872 = vld [vmem:[%s1 + $0xc0] sm:$0xf]
        %v873 = vld [vmem:[%s1 + $0xc4] sm:$0xf]
        %v874 = vld [vmem:[%s1 + $0xc8] sm:$0xf]
        %v875 = vld [vmem:[%s1 + $0xcc] sm:$0xf]
        %v876 = vld [vmem:[%s1 + $0xd0] sm:$0xf]
        %v877 = vld [vmem:[%s1 + $0xd4] sm:$0xf]
        %v878 = vld [vmem:[%s1 + $0xd8] sm:$0xf]
        %v879 = vld [vmem:[%s1 + $0xdc] sm:$0xf]
        %v880 = vld [vmem:[%s1 + $0xe0] sm:$0xf]
        %v881 = vld [vmem:[%s1 + $0xe4] sm:$0xf]
        %v882 = vld [vmem:[%s1 + $0xe8] sm:$0xf]
        %v883 = vld [vmem:[%s1 + $0xec] sm:$0xf]
        %v884 = vld [vmem:[%s1 + $0xf0] sm:$0xf]
        %v885 = vld [vmem:[%s1 + $0xf4] sm:$0xf]
        %v886 = vld [vmem:[%s1 + $0xf8] sm:$0xf]
        %v887 = vld [vmem:[%s1 + $0xfc] sm:$0xf]
        %v888 = vld [vmem:[%s1 + $0x100] sm:$0xf]
        %v889 = vld [vmem:[%s1 + $0x104] sm:$0xf]
        %v890 = vld [vmem:[%s1 + $0x108] sm:$0xf]
        %v891 = vld [vmem:[%s1 + $0x10c] sm:$0xf]
        %v892 = vld [vmem:[%s1 + $0x110] sm:$0xf]
        %v893 = vld [vmem:[%s1 + $0x114] sm:$0xf]
        %v894 = vld [vmem:[%s1 + $0x118] sm:$0xf]
        %v895 = vld [vmem:[%s1 + $0x11c] sm:$0xf]
        %v896 = vld [vmem:[%s1 + $0x120] sm:$0xf]
        %v897 = vld [vmem:[%s1 + $0x124] sm:$0xf]
        %v898 = vld [vmem:[%s1 + $0x128] sm:$0xf]
        %v899 = vld [vmem:[%s1 + $0x12c] sm:$0xf]
        %v900 = vld [vmem:[%s1 + $0x130] sm:$0xf]
        %v901 = vld [vmem:[%s1 + $0x134] sm:$0xf]
        %v902 = vld [vmem:[%s1 + $0x138] sm:$0xf]
        %v903 = vld [vmem:[%s1 + $0x13c] sm:$0xf]
        %v904 = vld [vmem:[%s1 + $0x140] sm:$0xf]
        %v905 = vld [vmem:[%s1 + $0x144] sm:$0xf]
        %v906 = vld [vmem:[%s1 + $0x148] sm:$0xf]
        %v907 = vld [vmem:[%s1 + $0x14c] sm:$0xf]
        %v908 = vld [vmem:[%s1 + $0x150] sm:$0xf]
        %v909 = vld [vmem:[%s1 + $0x154] sm:$0xf]
        %v910 = vld [vmem:[%s1 + $0x158] sm:$0xf]
        %v911 = vld [vmem:[%s1 + $0x15c] sm:$0xf]
        %v912 = vld [vmem:[%s1 + $0x160] sm:$0xf]
        %v913 = vld [vmem:[%s1 + $0x164] sm:$0xf]
        %v914 = vld [vmem:[%s1 + $0x168] sm:$0xf]
        %v915 = vld [vmem:[%s1 + $0x16c] sm:$0xf]
        %v916 = vld [vmem:[%s1 + $0x170] sm:$0xf]
        %v917 = vld [vmem:[%s1 + $0x174] sm:$0xf]
        %v918 = vld [vmem:[%s1 + $0x178] sm:$0xf]
        %v919 = vld [vmem:[%s1 + $0x17c] sm:$0xf]
        %v920 = vld [vmem:[%s2] sm:$0x1]
        %v922 = vlaneseq
        %v923 = vshrl.u32 %v922, 7
        %v924 = vsub.s32 0, %v923
        %v925 = vrot.slane %v920, %v924
        %v933 = vunpack.c.l.b16 %v818
        %v934 = vunpack.c.h.b16 %v818
        %v935 = vunpack.c.l.b16 %v819
        %v936 = vunpack.c.h.b16 %v819
        %v937 = vunpack.c.l.b16 %v820
        %v938 = vunpack.c.h.b16 %v820
        %v939 = vunpack.c.l.b16 %v821
        %v940 = vunpack.c.h.b16 %v821
        %v941 = vunpack.c.l.b16 %v822
        %v942 = vunpack.c.h.b16 %v822
        %v943 = vunpack.c.l.b16 %v823
        %v944 = vunpack.c.h.b16 %v823
        %v945 = vpack.c.b16 %v939, %v933
        %v946 = vpack.c.b16 %v940, %v934
        %v947 = vpack.c.b16 %v941, %v935
        %v948 = vpack.c.b16 %v942, %v936
        %v949 = vpack.c.b16 %v943, %v937
        %v950 = vpack.c.b16 %v944, %v938
        %v1053 = vunpack.c.l.b16 %v824
        %v1054 = vunpack.c.l.b16 %v825
        %v1055 = vunpack.c.l.b16 %v826
        %v1056 = vunpack.c.l.b16 %v827
        %v1057 = vunpack.c.l.b16 %v828
        %v1058 = vunpack.c.l.b16 %v829
        %v1059 = vunpack.c.l.b16 %v830
        %v1060 = vunpack.c.l.b16 %v831
        %v1061 = vunpack.c.l.b16 %v832
        %v1062 = vunpack.c.l.b16 %v833
        %v1063 = vunpack.c.l.b16 %v834
        %v1064 = vunpack.c.l.b16 %v835
        %v1065 = vunpack.c.l.b16 %v836
        %v1066 = vunpack.c.l.b16 %v837
        %v1067 = vunpack.c.l.b16 %v838
        %v1068 = vunpack.c.l.b16 %v839
        %v1069 = vunpack.c.l.b16 %v840
        %v1070 = vunpack.c.l.b16 %v841
        %v1071 = vunpack.c.l.b16 %v842
        %v1072 = vunpack.c.l.b16 %v843
        %v1073 = vunpack.c.l.b16 %v844
        %v1074 = vunpack.c.l.b16 %v845
        %v1075 = vunpack.c.l.b16 %v846
        %v1076 = vunpack.c.l.b16 %v847
        %v1077 = vunpack.c.l.b16 %v848
        %v1078 = vunpack.c.l.b16 %v849
        %v1079 = vunpack.c.l.b16 %v850
        %v1080 = vunpack.c.l.b16 %v851
        %v1081 = vunpack.c.l.b16 %v852
        %v1082 = vunpack.c.l.b16 %v853
        %v1083 = vunpack.c.l.b16 %v854
        %v1084 = vunpack.c.l.b16 %v855
        %v1085 = vunpack.c.l.b16 %v856
        %v1086 = vunpack.c.l.b16 %v857
        %v1087 = vunpack.c.l.b16 %v858
        %v1088 = vunpack.c.l.b16 %v859
        %v1089 = vunpack.c.l.b16 %v860
        %v1090 = vunpack.c.l.b16 %v861
        %v1091 = vunpack.c.l.b16 %v862
        %v1092 = vunpack.c.l.b16 %v863
        %v1093 = vunpack.c.l.b16 %v864
        %v1094 = vunpack.c.l.b16 %v865
        %v1095 = vunpack.c.l.b16 %v866
        %v1096 = vunpack.c.l.b16 %v867
        %v1097 = vunpack.c.l.b16 %v868
        %v1098 = vunpack.c.l.b16 %v869
        %v1099 = vunpack.c.l.b16 %v870
        %v1100 = vunpack.c.l.b16 %v871
        %v1101 = vunpack.c.l.b16 %v872
        %v1102 = vunpack.c.l.b16 %v873
        %v1103 = vunpack.c.l.b16 %v874
        %v1104 = vunpack.c.l.b16 %v875
        %v1105 = vunpack.c.l.b16 %v876
        %v1106 = vunpack.c.l.b16 %v877
        %v1107 = vunpack.c.l.b16 %v878
        %v1108 = vunpack.c.l.b16 %v879
        %v1109 = vunpack.c.l.b16 %v880
        %v1110 = vunpack.c.l.b16 %v881
        %v1111 = vunpack.c.l.b16 %v882
        %v1112 = vunpack.c.l.b16 %v883
        %v1113 = vunpack.c.l.b16 %v884
        %v1114 = vunpack.c.l.b16 %v885
        %v1115 = vunpack.c.l.b16 %v886
        %v1116 = vunpack.c.l.b16 %v887
        %v1117 = vunpack.c.l.b16 %v888
        %v1118 = vunpack.c.l.b16 %v889
        %v1119 = vunpack.c.l.b16 %v890
        %v1120 = vunpack.c.l.b16 %v891
        %v1121 = vunpack.c.l.b16 %v892
        %v1122 = vunpack.c.l.b16 %v893
        %v1123 = vunpack.c.l.b16 %v894
        %v1124 = vunpack.c.l.b16 %v895
        %v1125 = vunpack.c.l.b16 %v896
        %v1126 = vunpack.c.l.b16 %v897
        %v1127 = vunpack.c.l.b16 %v898
        %v1128 = vunpack.c.l.b16 %v899
        %v1129 = vunpack.c.l.b16 %v900
        %v1130 = vunpack.c.l.b16 %v901
        %v1131 = vunpack.c.l.b16 %v902
        %v1132 = vunpack.c.l.b16 %v903
        %v1133 = vunpack.c.l.b16 %v904
        %v1134 = vunpack.c.l.b16 %v905
        %v1135 = vunpack.c.l.b16 %v906
        %v1136 = vunpack.c.l.b16 %v907
        %v1137 = vunpack.c.l.b16 %v908
        %v1138 = vunpack.c.l.b16 %v909
        %v1139 = vunpack.c.l.b16 %v910
        %v1140 = vunpack.c.l.b16 %v911
        %v1141 = vunpack.c.l.b16 %v912
        %v1142 = vunpack.c.l.b16 %v913
        %v1143 = vunpack.c.l.b16 %v914
        %v1144 = vunpack.c.l.b16 %v915
        %v1145 = vunpack.c.l.b16 %v916
        %v1146 = vunpack.c.l.b16 %v917
        %v1147 = vunpack.c.l.b16 %v918
        %v1148 = vunpack.c.l.b16 %v919
        %v1149 = vpack.c.b16 %v1054, %v1053
        %v1150 = vpack.c.b16 %v1056, %v1055
        %v1151 = vpack.c.b16 %v1058, %v1057
        %v1152 = vpack.c.b16 %v1060, %v1059
        %v1153 = vpack.c.b16 %v1062, %v1061
        %v1154 = vpack.c.b16 %v1064, %v1063
        %v1155 = vpack.c.b16 %v1066, %v1065
        %v1156 = vpack.c.b16 %v1068, %v1067
        %v1157 = vpack.c.b16 %v1070, %v1069
        %v1158 = vpack.c.b16 %v1072, %v1071
        %v1159 = vpack.c.b16 %v1074, %v1073
        %v1160 = vpack.c.b16 %v1076, %v1075
        %v1161 = vpack.c.b16 %v1078, %v1077
        %v1162 = vpack.c.b16 %v1080, %v1079
        %v1163 = vpack.c.b16 %v1082, %v1081
        %v1164 = vpack.c.b16 %v1084, %v1083
        %v1165 = vpack.c.b16 %v1086, %v1085
        %v1166 = vpack.c.b16 %v1088, %v1087
        %v1167 = vpack.c.b16 %v1090, %v1089
        %v1168 = vpack.c.b16 %v1092, %v1091
        %v1169 = vpack.c.b16 %v1094, %v1093
        %v1170 = vpack.c.b16 %v1096, %v1095
        %v1171 = vpack.c.b16 %v1098, %v1097
        %v1172 = vpack.c.b16 %v1100, %v1099
        %v1173 = vpack.c.b16 %v1102, %v1101
        %v1174 = vpack.c.b16 %v1104, %v1103
        %v1175 = vpack.c.b16 %v1106, %v1105
        %v1176 = vpack.c.b16 %v1108, %v1107
        %v1177 = vpack.c.b16 %v1110, %v1109
        %v1178 = vpack.c.b16 %v1112, %v1111
        %v1179 = vpack.c.b16 %v1114, %v1113
        %v1180 = vpack.c.b16 %v1116, %v1115
        %v1181 = vpack.c.b16 %v1118, %v1117
        %v1182 = vpack.c.b16 %v1120, %v1119
        %v1183 = vpack.c.b16 %v1122, %v1121
        %v1184 = vpack.c.b16 %v1124, %v1123
        %v1185 = vpack.c.b16 %v1126, %v1125
        %v1186 = vpack.c.b16 %v1128, %v1127
        %v1187 = vpack.c.b16 %v1130, %v1129
        %v1188 = vpack.c.b16 %v1132, %v1131
        %v1189 = vpack.c.b16 %v1134, %v1133
        %v1190 = vpack.c.b16 %v1136, %v1135
        %v1191 = vpack.c.b16 %v1138, %v1137
        %v1192 = vpack.c.b16 %v1140, %v1139
        %v1193 = vpack.c.b16 %v1142, %v1141
        %v1194 = vpack.c.b16 %v1144, %v1143
        %v1195 = vpack.c.b16 %v1146, %v1145
        %v1196 = vpack.c.b16 %v1148, %v1147
        %1245 = vmatprep.subr.bf16.mxu0 0
        %1246 = vmatpush1.bf16.msra.mxu0 %v1156
        %1247 = vmatprep.subr.bf16.mxu0 0
        %1248 = vmatpush1.bf16.msra.mxu0 %v1155
        %1249 = vmatprep.subr.bf16.mxu0 0
        %1250 = vmatpush1.bf16.msra.mxu0 %v1154
        %1251 = vmatprep.subr.bf16.mxu0 0
        %1252 = vmatpush1.bf16.msra.mxu0 %v1153
        %1253 = vmatprep.subr.bf16.mxu0 0
        %1254 = vmatpush1.bf16.msra.mxu0 %v1152
        %1255 = vmatprep.subr.bf16.mxu0 0
        %1256 = vmatpush1.bf16.msra.mxu0 %v1151
        %1257 = vmatprep.subr.bf16.mxu0 0
        %1258 = vmatpush1.bf16.msra.mxu0 %v1150
        %1259 = vmatprep.subr.bf16.mxu0 0
        %1260 = vmatpush1.bf16.msra.mxu0 %v1149
        %1261 = vmatprep.subr.bf16.mxu0 0
        %1262 = vmatpush2.bf16.msra.mxu0 %v1164
        %1263 = vmatprep.subr.bf16.mxu0 0
        %1264 = vmatpush2.bf16.msra.mxu0 %v1163
        %1265 = vmatprep.subr.bf16.mxu0 0
        %1266 = vmatpush2.bf16.msra.mxu0 %v1162
        %1267 = vmatprep.subr.bf16.mxu0 0
        %1268 = vmatpush2.bf16.msra.mxu0 %v1161
        %1269 = vmatprep.subr.bf16.mxu0 0
        %1270 = vmatpush2.bf16.msra.mxu0 %v1160
        %1271 = vmatprep.subr.bf16.mxu0 0
        %1272 = vmatpush2.bf16.msra.mxu0 %v1159
        %1273 = vmatprep.subr.bf16.mxu0 0
        %1274 = vmatpush2.bf16.msra.mxu0 %v1158
        %1275 = vmatprep.subr.bf16.mxu0 0
        %1276 = vmatpush2.bf16.msra.mxu0 %v1157
        %1277 = vmatprep.mubr.bf16.mxu0 %v946
        %1278 = vmatmul.mubr.bf16.gmra.mxu0 %v945
        %v1279 = vpop.f32.mrf.mxu0
        %v1280 = vadd.f32 %v925, %v1279
        %v1281 = vpop.f32.mrf.mxu0
        %v1282 = vpop.f32.mrf.mxu0
        %v1283 = vadd.f32 %v925, %v1282
        %v1284 = vpop.f32.mrf.mxu0
        %1285 = vdwg.mxu0
        %1286 = vmatprep.subr.bf16.mxu0 0
        %1287 = vmatpush1.bf16.msra.mxu0 %v1172
        %1288 = vmatprep.subr.bf16.mxu0 0
        %1289 = vmatpush1.bf16.msra.mxu0 %v1171
        %1290 = vmatprep.subr.bf16.mxu0 0
        %1291 = vmatpush1.bf16.msra.mxu0 %v1170
        %1292 = vmatprep.subr.bf16.mxu0 0
        %1293 = vmatpush1.bf16.msra.mxu0 %v1169
        %1294 = vmatprep.subr.bf16.mxu0 0
        %1295 = vmatpush1.bf16.msra.mxu0 %v1168
        %1296 = vmatprep.subr.bf16.mxu0 0
        %1297 = vmatpush1.bf16.msra.mxu0 %v1167
        %1298 = vmatprep.subr.bf16.mxu0 0
        %1299 = vmatpush1.bf16.msra.mxu0 %v1166
        %1300 = vmatprep.subr.bf16.mxu0 0
        %1301 = vmatpush1.bf16.msra.mxu0 %v1165
        %1302 = vmatprep.subr.bf16.mxu0 0
        %1303 = vmatpush2.bf16.msra.mxu0 %v1180
        %1304 = vmatprep.subr.bf16.mxu0 0
        %1305 = vmatpush2.bf16.msra.mxu0 %v1179
        %1306 = vmatprep.subr.bf16.mxu0 0
        %1307 = vmatpush2.bf16.msra.mxu0 %v1178
        %1308 = vmatprep.subr.bf16.mxu0 0
        %1309 = vmatpush2.bf16.msra.mxu0 %v1177
        %1310 = vmatprep.subr.bf16.mxu0 0
        %1311 = vmatpush2.bf16.msra.mxu0 %v1176
        %1312 = vmatprep.subr.bf16.mxu0 0
        %1313 = vmatpush2.bf16.msra.mxu0 %v1175
        %1314 = vmatprep.subr.bf16.mxu0 0
        %1315 = vmatpush2.bf16.msra.mxu0 %v1174
        %1316 = vmatprep.subr.bf16.mxu0 0
        %1317 = vmatpush2.bf16.msra.mxu0 %v1173
        %1318 = vmatprep.mubr.bf16.mxu0 %v948
        %1319 = vmatmul.mubr.bf16.gmra.mxu0 %v947
        %v1320 = vpop.f32.mrf.mxu0
        %v1321 = vadd.f32 %v1280, %v1320
        %v1322 = vpop.f32.mrf.mxu0
        %v1323 = vpop.f32.mrf.mxu0
        %v1324 = vadd.f32 %v1283, %v1323
        %v1325 = vpop.f32.mrf.mxu0
        %1326 = vdwg.mxu0
        %1327 = vmatprep.subr.bf16.mxu0 0
        %1328 = vmatpush1.bf16.msra.mxu0 %v1188
        %1329 = vmatprep.subr.bf16.mxu0 0
        %1330 = vmatpush1.bf16.msra.mxu0 %v1187
        %1331 = vmatprep.subr.bf16.mxu0 0
        %1332 = vmatpush1.bf16.msra.mxu0 %v1186
        %1333 = vmatprep.subr.bf16.mxu0 0
        %1334 = vmatpush1.bf16.msra.mxu0 %v1185
        %1335 = vmatprep.subr.bf16.mxu0 0
        %1336 = vmatpush1.bf16.msra.mxu0 %v1184
        %1337 = vmatprep.subr.bf16.mxu0 0
        %1338 = vmatpush1.bf16.msra.mxu0 %v1183
        %1339 = vmatprep.subr.bf16.mxu0 0
        %1340 = vmatpush1.bf16.msra.mxu0 %v1182
        %1341 = vmatprep.subr.bf16.mxu0 0
        %1342 = vmatpush1.bf16.msra.mxu0 %v1181
        %1343 = vmatprep.subr.bf16.mxu0 0
        %1344 = vmatpush2.bf16.msra.mxu0 %v1196
        %1345 = vmatprep.subr.bf16.mxu0 0
        %1346 = vmatpush2.bf16.msra.mxu0 %v1195
        %1347 = vmatprep.subr.bf16.mxu0 0
        %1348 = vmatpush2.bf16.msra.mxu0 %v1194
        %1349 = vmatprep.subr.bf16.mxu0 0
        %1350 = vmatpush2.bf16.msra.mxu0 %v1193
        %1351 = vmatprep.subr.bf16.mxu0 0
        %1352 = vmatpush2.bf16.msra.mxu0 %v1192
        %1353 = vmatprep.subr.bf16.mxu0 0
        %1354 = vmatpush2.bf16.msra.mxu0 %v1191
        %1355 = vmatprep.subr.bf16.mxu0 0
        %1356 = vmatpush2.bf16.msra.mxu0 %v1190
        %1357 = vmatprep.subr.bf16.mxu0 0
        %1358 = vmatpush2.bf16.msra.mxu0 %v1189
        %1359 = vmatprep.mubr.bf16.mxu0 %v950
        %1360 = vmatmul.mubr.bf16.gmra.mxu0 %v949
        %v1361 = vpop.f32.mrf.mxu0
        %v1362 = vadd.f32 %v1321, %v1361
        %v1363 = vpop.f32.mrf.mxu0
        %v1364 = vpop.f32.mrf.mxu0
        %v1365 = vadd.f32 %v1324, %v1364
        %v1366 = vpop.f32.mrf.mxu0
        %1367 = vdwg.mxu0
        %v1368 = vld [vmem:[%s4] sm:$0xff]
        %v1369 = vld [vmem:[%s4 + $0x8] sm:$0xff]
        %v1370 = vadd.f32 %v1362, %v1368
        %v1371 = vadd.f32 %v1365, %v1369
        %v1372 = vld [vmem:[%s3] sm:$0x1]
        %1373 = vst [vmem:[#allocation2] sm:$0x1] %v1372
        %1374 = vst [vmem:[#allocation2 + $0x1] sm:$0xff] %v1370
        %1375 = vst [vmem:[#allocation2 + $0x9] sm:$0xff] %v1371
      $region100: #{fwd.1} parent=95 // pred_fallthru
        _
      %v1376 = vld [vmem:[#allocation2] sm:$0xff]
      %v1377 = vld [vmem:[#allocation2 + $0x8] sm:$0xff]
      %v1378 = vld [vmem:[#allocation2 + $0x10] sm:$0x1]
      %v1379 = vld [vmem:[%s764] sm:$0x1]
      %v1380 = vld [vmem:[%s767] sm:$0x1]
      %1381 = vadd.xlane.f32.xlu0 %v1376
      %v1382 = vpop.xlane.xlu0 %1381
      %1383 = vadd.xlane.f32.xlu0 %v1377
      %v1384 = vpop.xlane.xlu0 %1383
      %vm1385 = vcmask 1040384
      %v1386 = vsel %vm1385, %v1378, 0.0
      %1387 = vadd.xlane.f32.xlu0 %v1386
      %v1388 = vpop.xlane.xlu0 %1387
      %v1389 = vrcp.pop 128.0
      %v1390 = vmul.f32 %v1382, %v1389
      %v1391 = vmul.f32 %v1384, %v1389
      %v1392 = vmul.f32 %v1388, %v1389
      %v1393 = vsub.f32 %v1376, %v1390
      %v1394 = vsub.f32 %v1377, %v1391
      %v1395 = vsub.f32 %v1378, %v1392
      %v1396 = vmul.f32 %v1393, %v1393
      %v1397 = vmul.f32 %v1394, %v1394
      %v1398 = vmul.f32 %v1395, %v1395
      %1399 = vadd.xlane.f32.xlu0 %v1396
      %v1400 = vpop.xlane.xlu0 %1399
      %1401 = vadd.xlane.f32.xlu0 %v1397
      %v1402 = vpop.xlane.xlu0 %1401
      %v1403 = vsel %vm1385, %v1398, 0.0
      %1404 = vadd.xlane.f32.xlu0 %v1403
      %v1405 = vpop.xlane.xlu0 %1404
      %v1406 = vmul.f32 %v1400, %v1389
      %v1407 = vmul.f32 %v1402, %v1389
      %v1408 = vmul.f32 %v1405, %v1389
      %v1409 = vadd.f32 %v1406, 1e-06
      %v1410 = vadd.f32 %v1407, 1e-06
      %v1411 = vadd.f32 %v1408, 1e-06
      %v1412 = vrsqrt.pop %v1409
      %v1413 = vrsqrt.pop %v1410
      %v1414 = vrsqrt.pop %v1411
      %v1415 = vmul.f32 %v1393, %v1412
      %v1416 = vmul.f32 %v1394, %v1413
      %v1417 = vmul.f32 %v1395, %v1414
      %v1419 = vlaneseq
      %v1420 = vshrl.u32 %v1419, 7
      %v1421 = vsub.s32 0, %v1420
      %v1422 = vrot.slane %v1379, %v1421
      %v1424 = vmul.f32 %v1415, %v1422
      %v1425 = vmul.f32 %v1416, %v1422
      %v1426 = vmul.f32 %v1417, %v1422
      %v1428 = vlaneseq
      %v1429 = vshrl.u32 %v1428, 7
      %v1430 = vsub.s32 0, %v1429
      %v1431 = vrot.slane %v1380, %v1430
      %v1433 = vadd.f32 %v1424, %v1431
      %v1434 = vadd.f32 %v1425, %v1431
      %v1435 = vadd.f32 %v1426, %v1431
      %v1436 = vpack.c.bf16 %v1434, %v1433
      %v1437 = vpack.c.bf16 %v1435, %v1435
      %v1438 = vld [vmem:[%s772] sm:$0xff]
      %v1439 = vld [vmem:[%s772 + $0x8] sm:$0xf]
      %v1440 = vld [vmem:[%s772 + $0xc] sm:$0xff]
      %v1441 = vld [vmem:[%s772 + $0x14] sm:$0xf]
      %v1442 = vld [vmem:[%s772 + $0x18] sm:$0xff]
      %v1443 = vld [vmem:[%s772 + $0x20] sm:$0xf]
      %v1444 = vld [vmem:[%s772 + $0x24] sm:$0xff]
      %v1445 = vld [vmem:[%s772 + $0x2c] sm:$0xf]
      %v1446 = vld [vmem:[%s772 + $0x30] sm:$0xff]
      %v1447 = vld [vmem:[%s772 + $0x38] sm:$0xf]
      %v1448 = vld [vmem:[%s772 + $0x3c] sm:$0xff]
      %v1449 = vld [vmem:[%s772 + $0x44] sm:$0xf]
      %v1450 = vld [vmem:[%s772 + $0x48] sm:$0xff]
      %v1451 = vld [vmem:[%s772 + $0x50] sm:$0xf]
      %v1452 = vld [vmem:[%s772 + $0x54] sm:$0xff]
      %v1453 = vld [vmem:[%s772 + $0x5c] sm:$0xf]
      %v1454 = vld [vmem:[%s772 + $0x60] sm:$0xff]
      %v1455 = vld [vmem:[%s772 + $0x68] sm:$0xf]
      %v1456 = vld [vmem:[%s772 + $0x6c] sm:$0xff]
      %v1457 = vld [vmem:[%s772 + $0x74] sm:$0xf]
      %v1458 = vld [vmem:[%s772 + $0x78] sm:$0xff]
      %v1459 = vld [vmem:[%s772 + $0x80] sm:$0xf]
      %v1460 = vld [vmem:[%s772 + $0x84] sm:$0xff]
      %v1461 = vld [vmem:[%s772 + $0x8c] sm:$0xf]
      %v1462 = vld [vmem:[%s772 + $0x90] sm:$0xff]
      %v1463 = vld [vmem:[%s772 + $0x98] sm:$0xf]
      %v1464 = vld [vmem:[%s772 + $0x9c] sm:$0xff]
      %v1465 = vld [vmem:[%s772 + $0xa4] sm:$0xf]
      %v1466 = vld [vmem:[%s772 + $0xa8] sm:$0xff]
      %v1467 = vld [vmem:[%s772 + $0xb0] sm:$0xf]
      %v1468 = vld [vmem:[%s772 + $0xb4] sm:$0xff]
      %v1469 = vld [vmem:[%s772 + $0xbc] sm:$0xf]
      %v1470 = vld [vmem:[%s776] sm:$0x7]
      %v1472 = vlaneseq
      %v1473 = vshrl.u32 %v1472, 7
      %v1474 = vsub.s32 0, %v1473
      %v1475 = vrot.slane %v1470, %v1474
      %v1476 = vlaneseq
      %v1477 = vshrl.u32 %v1476, 7
      %v1478 = vsub.s32 1, %v1477
      %v1479 = vrot.slane %v1470, %v1478
      %v1480 = vlaneseq
      %v1481 = vshrl.u32 %v1480, 7
      %v1482 = vsub.s32 2, %v1481
      %v1483 = vrot.slane %v1470, %v1482
      %v1519 = vunpack.c.l.b16 %v1438
      %v1520 = vunpack.c.h.b16 %v1438
      %v1521 = vunpack.c.l.b16 %v1439
      %v1522 = vunpack.c.l.b16 %v1440
      %v1523 = vunpack.c.h.b16 %v1440
      %v1524 = vunpack.c.l.b16 %v1441
      %v1525 = vunpack.c.l.b16 %v1442
      %v1526 = vunpack.c.h.b16 %v1442
      %v1527 = vunpack.c.l.b16 %v1443
      %v1528 = vunpack.c.l.b16 %v1444
      %v1529 = vunpack.c.h.b16 %v1444
      %v1530 = vunpack.c.l.b16 %v1445
      %v1531 = vunpack.c.l.b16 %v1446
      %v1532 = vunpack.c.h.b16 %v1446
      %v1533 = vunpack.c.l.b16 %v1447
      %v1534 = vunpack.c.l.b16 %v1448
      %v1535 = vunpack.c.h.b16 %v1448
      %v1536 = vunpack.c.l.b16 %v1449
      %v1537 = vunpack.c.l.b16 %v1450
      %v1538 = vunpack.c.h.b16 %v1450
      %v1539 = vunpack.c.l.b16 %v1451
      %v1540 = vunpack.c.l.b16 %v1452
      %v1541 = vunpack.c.h.b16 %v1452
      %v1542 = vunpack.c.l.b16 %v1453
      %v1543 = vunpack.c.l.b16 %v1454
      %v1544 = vunpack.c.h.b16 %v1454
      %v1545 = vunpack.c.l.b16 %v1455
      %v1546 = vunpack.c.l.b16 %v1456
      %v1547 = vunpack.c.h.b16 %v1456
      %v1548 = vunpack.c.l.b16 %v1457
      %v1549 = vunpack.c.l.b16 %v1458
      %v1550 = vunpack.c.h.b16 %v1458
      %v1551 = vunpack.c.l.b16 %v1459
      %v1552 = vunpack.c.l.b16 %v1460
      %v1553 = vunpack.c.h.b16 %v1460
      %v1554 = vunpack.c.l.b16 %v1461
      %v1555 = vunpack.c.l.b16 %v1462
      %v1556 = vunpack.c.h.b16 %v1462
      %v1557 = vunpack.c.l.b16 %v1463
      %v1558 = vunpack.c.l.b16 %v1464
      %v1559 = vunpack.c.h.b16 %v1464
      %v1560 = vunpack.c.l.b16 %v1465
      %v1561 = vunpack.c.l.b16 %v1466
      %v1562 = vunpack.c.h.b16 %v1466
      %v1563 = vunpack.c.l.b16 %v1467
      %v1564 = vunpack.c.l.b16 %v1468
      %v1565 = vunpack.c.h.b16 %v1468
      %v1566 = vunpack.c.l.b16 %v1469
      %v1567 = vpack.c.b16 %v1522, %v1519
      %v1568 = vpack.c.b16 %v1523, %v1520
      %v1569 = vpack.c.b16 %v1524, %v1521
      %v1570 = vpack.c.b16 %v1528, %v1525
      %v1571 = vpack.c.b16 %v1529, %v1526
      %v1572 = vpack.c.b16 %v1530, %v1527
      %v1573 = vpack.c.b16 %v1534, %v1531
      %v1574 = vpack.c.b16 %v1535, %v1532
      %v1575 = vpack.c.b16 %v1536, %v1533
      %v1576 = vpack.c.b16 %v1540, %v1537
      %v1577 = vpack.c.b16 %v1541, %v1538
      %v1578 = vpack.c.b16 %v1542, %v1539
      %v1579 = vpack.c.b16 %v1546, %v1543
      %v1580 = vpack.c.b16 %v1547, %v1544
      %v1581 = vpack.c.b16 %v1548, %v1545
      %v1582 = vpack.c.b16 %v1552, %v1549
      %v1583 = vpack.c.b16 %v1553, %v1550
      %v1584 = vpack.c.b16 %v1554, %v1551
      %v1585 = vpack.c.b16 %v1558, %v1555
      %v1586 = vpack.c.b16 %v1559, %v1556
      %v1587 = vpack.c.b16 %v1560, %v1557
      %v1588 = vpack.c.b16 %v1564, %v1561
      %v1589 = vpack.c.b16 %v1565, %v1562
      %v1590 = vpack.c.b16 %v1566, %v1563
      %1615 = vmatprep.subr.bf16.mxu0 %v1589
      %1616 = vmatpush1.bf16.msra.mxu0 %v1588
      %1617 = vmatprep.subr.bf16.mxu0 %v1586
      %1618 = vmatpush1.bf16.msra.mxu0 %v1585
      %1619 = vmatprep.subr.bf16.mxu0 %v1583
      %1620 = vmatpush1.bf16.msra.mxu0 %v1582
      %1621 = vmatprep.subr.bf16.mxu0 %v1580
      %1622 = vmatpush1.bf16.msra.mxu0 %v1579
      %1623 = vmatprep.subr.bf16.mxu0 %v1577
      %1624 = vmatpush1.bf16.msra.mxu0 %v1576
      %1625 = vmatprep.subr.bf16.mxu0 %v1574
      %1626 = vmatpush1.bf16.msra.mxu0 %v1573
      %1627 = vmatprep.subr.bf16.mxu0 %v1571
      %1628 = vmatpush1.bf16.msra.mxu0 %v1570
      %1629 = vmatprep.subr.bf16.mxu0 %v1568
      %1630 = vmatpush1.bf16.msra.mxu0 %v1567
      %1631 = vmatprep.subr.bf16.mxu0 0
      %1632 = vmatpush2.bf16.msra.mxu0 0
      %1633 = vmatprep.subr.bf16.mxu0 0
      %1634 = vmatpush2.bf16.msra.mxu0 0
      %1635 = vmatprep.subr.bf16.mxu0 0
      %1636 = vmatpush2.bf16.msra.mxu0 0
      %1637 = vmatprep.subr.bf16.mxu0 0
      %1638 = vmatpush2.bf16.msra.mxu0 0
      %1639 = vmatprep.subr.bf16.mxu0 0
      %1640 = vmatpush2.bf16.msra.mxu0 0
      %1641 = vmatprep.subr.bf16.mxu0 0
      %1642 = vmatpush2.bf16.msra.mxu0 0
      %1643 = vmatprep.subr.bf16.mxu0 0
      %1644 = vmatpush2.bf16.msra.mxu0 0
      %1645 = vmatprep.subr.bf16.mxu0 0
      %1646 = vmatpush2.bf16.msra.mxu0 0
      %1647 = vmatprep.mubr.bf16.mxu0 0
      %1648 = vmatmul.mubr.bf16.gmra.mxu0 %v1436
      %v1649 = vpop.f32.mrf.mxu0
      %v1650 = vadd.f32 %v1475, %v1649
      %v1651 = vpop.f32.mrf.mxu0
      %v1652 = vadd.f32 %v1479, %v1651
      %v1653 = vpop.f32.mrf.mxu0
      %v1654 = vadd.f32 %v1475, %v1653
      %v1655 = vpop.f32.mrf.mxu0
      %v1656 = vadd.f32 %v1479, %v1655
      %1657 = vmatprep.mubr.bf16.mxu0 0
      %1658 = vmatmul.mubr.bf16.gmra.mxu0 %v1437
      %v1659 = vpop.f32.mrf.mxu0
      %v1660 = vadd.f32 %v1475, %v1659
      %v1661 = vpop.f32.mrf.mxu0
      %v1662 = vadd.f32 %v1479, %v1661
      %v1663 = vpop.f32.mrf.mxu0
      %v1664 = vpop.f32.mrf.mxu0
      %1665 = vdwg.mxu0
      %1666 = vmatprep.subr.bf16.mxu0 0
      %1667 = vmatpush1.bf16.msra.mxu0 %v1590
      %1668 = vmatprep.subr.bf16.mxu0 0
      %1669 = vmatpush1.bf16.msra.mxu0 %v1587
      %1670 = vmatprep.subr.bf16.mxu0 0
      %1671 = vmatpush1.bf16.msra.mxu0 %v1584
      %1672 = vmatprep.subr.bf16.mxu0 0
      %1673 = vmatpush1.bf16.msra.mxu0 %v1581
      %1674 = vmatprep.subr.bf16.mxu0 0
      %1675 = vmatpush1.bf16.msra.mxu0 %v1578
      %1676 = vmatprep.subr.bf16.mxu0 0
      %1677 = vmatpush1.bf16.msra.mxu0 %v1575
      %1678 = vmatprep.subr.bf16.mxu0 0
      %1679 = vmatpush1.bf16.msra.mxu0 %v1572
      %1680 = vmatprep.subr.bf16.mxu0 0
      %1681 = vmatpush1.bf16.msra.mxu0 %v1569
      %1682 = vmatprep.subr.bf16.mxu0 0
      %1683 = vmatpush2.bf16.msra.mxu0 0
      %1684 = vmatprep.subr.bf16.mxu0 0
      %1685 = vmatpush2.bf16.msra.mxu0 0
      %1686 = vmatprep.subr.bf16.mxu0 0
      %1687 = vmatpush2.bf16.msra.mxu0 0
      %1688 = vmatprep.subr.bf16.mxu0 0
      %1689 = vmatpush2.bf16.msra.mxu0 0
      %1690 = vmatprep.subr.bf16.mxu0 0
      %1691 = vmatpush2.bf16.msra.mxu0 0
      %1692 = vmatprep.subr.bf16.mxu0 0
      %1693 = vmatpush2.bf16.msra.mxu0 0
      %1694 = vmatprep.subr.bf16.mxu0 0
      %1695 = vmatpush2.bf16.msra.mxu0 0
      %1696 = vmatprep.subr.bf16.mxu0 0
      %1697 = vmatpush2.bf16.msra.mxu0 0
      %1698 = vmatprep.mubr.bf16.mxu0 0
      %1699 = vmatmul.mubr.bf16.gmra.mxu0 %v1436
      %v1700 = vpop.f32.mrf.mxu0
      %v1701 = vadd.f32 %v1483, %v1700
      %v1702 = vpop.f32.mrf.mxu0
      %v1703 = vpop.f32.mrf.mxu0
      %v1704 = vadd.f32 %v1483, %v1703
      %v1705 = vpop.f32.mrf.mxu0
      %1706 = vmatprep.mubr.bf16.mxu0 0
      %1707 = vmatmul.mubr.bf16.gmra.mxu0 %v1437
      %v1708 = vpop.f32.mrf.mxu0
      %v1709 = vadd.f32 %v1483, %v1708
      %v1710 = vpop.f32.mrf.mxu0
      %v1711 = vpop.f32.mrf.mxu0
      %v1712 = vpop.f32.mrf.mxu0
      %1713 = vdwg.mxu0
      %1717 = vrot.lane.b32.xlu0 %v1650, 96
      %v1718 = vpop.permute.xlu0 %1717
      %1719 = vrot.lane.b32.xlu0 %v1654, 96
      %v1720 = vpop.permute.xlu0 %1719
      %1721 = vrot.lane.b32.xlu0 %v1660, 96
      %v1722 = vpop.permute.xlu0 %1721
      %1726 = vrot.lane.b32.xlu0 %v1650, 64
      %v1727 = vpop.permute.xlu0 %1726
      %1728 = vrot.lane.b32.xlu0 %v1654, 64
      %v1729 = vpop.permute.xlu0 %1728
      %1730 = vrot.lane.b32.xlu0 %v1660, 64
      %v1731 = vpop.permute.xlu0 %1730
      %1735 = vrot.lane.b32.xlu0 %v1650, 32
      %v1736 = vpop.permute.xlu0 %1735
      %1737 = vrot.lane.b32.xlu0 %v1654, 32
      %v1738 = vpop.permute.xlu0 %1737
      %1739 = vrot.lane.b32.xlu0 %v1660, 32
      %v1740 = vpop.permute.xlu0 %1739
      %1747 = vrot.lane.b32.xlu0 %v1652, 96
      %v1748 = vpop.permute.xlu0 %1747
      %1749 = vrot.lane.b32.xlu0 %v1656, 96
      %v1750 = vpop.permute.xlu0 %1749
      %1751 = vrot.lane.b32.xlu0 %v1662, 96
      %v1752 = vpop.permute.xlu0 %1751
      %1756 = vrot.lane.b32.xlu0 %v1652, 64
      %v1757 = vpop.permute.xlu0 %1756
      %1758 = vrot.lane.b32.xlu0 %v1656, 64
      %v1759 = vpop.permute.xlu0 %1758
      %1760 = vrot.lane.b32.xlu0 %v1662, 64
      %v1761 = vpop.permute.xlu0 %1760
      %1765 = vrot.lane.b32.xlu0 %v1652, 32
      %v1766 = vpop.permute.xlu0 %1765
      %1767 = vrot.lane.b32.xlu0 %v1656, 32
      %v1768 = vpop.permute.xlu0 %1767
      %1769 = vrot.lane.b32.xlu0 %v1662, 32
      %v1770 = vpop.permute.xlu0 %1769
      %1777 = vrot.lane.b32.xlu0 %v1701, 96
      %v1778 = vpop.permute.xlu0 %1777
      %1779 = vrot.lane.b32.xlu0 %v1704, 96
      %v1780 = vpop.permute.xlu0 %1779
      %1781 = vrot.lane.b32.xlu0 %v1709, 96
      %v1782 = vpop.permute.xlu0 %1781
      %1786 = vrot.lane.b32.xlu0 %v1701, 64
      %v1787 = vpop.permute.xlu0 %1786
      %1788 = vrot.lane.b32.xlu0 %v1704, 64
      %v1789 = vpop.permute.xlu0 %1788
      %1790 = vrot.lane.b32.xlu0 %v1709, 64
      %v1791 = vpop.permute.xlu0 %1790
      %1795 = vrot.lane.b32.xlu0 %v1701, 32
      %v1796 = vpop.permute.xlu0 %1795
      %1797 = vrot.lane.b32.xlu0 %v1704, 32
      %v1798 = vpop.permute.xlu0 %1797
      %1799 = vrot.lane.b32.xlu0 %v1709, 32
      %v1800 = vpop.permute.xlu0 %1799
      %v1804 = vpack.c.bf16 %v1654, %v1650
      %v1805 = vpack.c.bf16 %v1660, %v1660
      %v1806 = vpack.c.bf16 %v1720, %v1718
      %v1807 = vpack.c.bf16 %v1722, %v1722
      %v1808 = vpack.c.bf16 %v1729, %v1727
      %v1809 = vpack.c.bf16 %v1731, %v1731
      %v1810 = vpack.c.bf16 %v1738, %v1736
      %v1811 = vpack.c.bf16 %v1740, %v1740
      %v1812 = vpack.c.bf16 %v1656, %v1652
      %v1813 = vpack.c.bf16 %v1662, %v1662
      %v1814 = vpack.c.bf16 %v1750, %v1748
      %v1815 = vpack.c.bf16 %v1752, %v1752
      %v1816 = vpack.c.bf16 %v1759, %v1757
      %v1817 = vpack.c.bf16 %v1761, %v1761
      %v1818 = vpack.c.bf16 %v1768, %v1766
      %v1819 = vpack.c.bf16 %v1770, %v1770
      %vm1820 = vcmask 261120
      %v1822 = vsel %vm1820, %v1804, 0
      %v1825 = vsel %vm1820, %v1805, 0
      %v1828 = vsel %vm1820, %v1812, 0
      %v1831 = vsel %vm1820, %v1813, 0
      %1833 = vmatprep.subr.bf16.mxu0 0
      %1834 = vmatpush1.bf16.xpose.msra.mxu0 0
      %1835 = vmatprep.subr.bf16.mxu0 0
      %1836 = vmatpush1.bf16.xpose.msra.mxu0 0
      %1837 = vmatprep.subr.bf16.mxu0 0
      %1838 = vmatpush1.bf16.xpose.msra.mxu0 0
      %1839 = vmatprep.subr.bf16.mxu0 0
      %1840 = vmatpush1.bf16.xpose.msra.mxu0 0
      %1841 = vmatprep.subr.bf16.mxu0 0
      %1842 = vmatpush1.bf16.xpose.msra.mxu0 0
      %1843 = vmatprep.subr.bf16.mxu0 0
      %1844 = vmatpush1.bf16.xpose.msra.mxu0 0
      %1845 = vmatprep.subr.bf16.mxu0 0
      %1846 = vmatpush1.bf16.xpose.msra.mxu0 %v1831
      %1847 = vmatprep.subr.bf16.mxu0 0
      %1848 = vmatpush1.bf16.xpose.msra.mxu0 %v1828
      %1849 = vmatprep.subr.bf16.mxu0 0
      %1850 = vmatpush2.bf16.xpose.msra.mxu0 0
      %1851 = vmatprep.subr.bf16.mxu0 0
      %1852 = vmatpush2.bf16.xpose.msra.mxu0 0
      %1853 = vmatprep.subr.bf16.mxu0 0
      %1854 = vmatpush2.bf16.xpose.msra.mxu0 0
      %1855 = vmatprep.subr.bf16.mxu0 0
      %1856 = vmatpush2.bf16.xpose.msra.mxu0 0
      %1857 = vmatprep.subr.bf16.mxu0 0
      %1858 = vmatpush2.bf16.xpose.msra.mxu0 0
      %1859 = vmatprep.subr.bf16.mxu0 0
      %1860 = vmatpush2.bf16.xpose.msra.mxu0 0
      %1861 = vmatprep.subr.bf16.mxu0 0
      %1862 = vmatpush2.bf16.xpose.msra.mxu0 0
      %1863 = vmatprep.subr.bf16.mxu0 0
      %1864 = vmatpush2.bf16.xpose.msra.mxu0 0
      %1865 = vmatprep.mubr.bf16.mxu0 0
      %1866 = vmatmul.mubr.bf16.gmra.mxu0 %v1822
      %v1867 = vpop.f32.mrf.mxu0
      %v1868 = vadd.f32 0.0, %v1867
      %v1869 = vpop.f32.mrf.mxu0
      %v1870 = vpop.f32.mrf.mxu0
      %v1871 = vadd.f32 0.0, %v1870
      %v1872 = vpop.f32.mrf.mxu0
      %1873 = vmatprep.mubr.bf16.mxu0 0
      %1874 = vmatmul.mubr.bf16.gmra.mxu0 %v1825
      %v1875 = vpop.f32.mrf.mxu0
      %v1876 = vadd.f32 0.0, %v1875
      %v1877 = vpop.f32.mrf.mxu0
      %v1878 = vpop.f32.mrf.mxu0
      %v1879 = vpop.f32.mrf.mxu0
      %1880 = vdwg.mxu0
      %v1882 = vsel %vm1820, %v1806, 0
      %v1885 = vsel %vm1820, %v1807, 0
      %v1888 = vsel %vm1820, %v1814, 0
      %v1891 = vsel %vm1820, %v1815, 0
      %1893 = vmatprep.subr.bf16.mxu0 0
      %1894 = vmatpush1.bf16.xpose.msra.mxu0 0
      %1895 = vmatprep.subr.bf16.mxu0 0
      %1896 = vmatpush1.bf16.xpose.msra.mxu0 0
      %1897 = vmatprep.subr.bf16.mxu0 0
      %1898 = vmatpush1.bf16.xpose.msra.mxu0 0
      %1899 = vmatprep.subr.bf16.mxu0 0
      %1900 = vmatpush1.bf16.xpose.msra.mxu0 0
      %1901 = vmatprep.subr.bf16.mxu0 0
      %1902 = vmatpush1.bf16.xpose.msra.mxu0 0
      %1903 = vmatprep.subr.bf16.mxu0 0
      %1904 = vmatpush1.bf16.xpose.msra.mxu0 0
      %1905 = vmatprep.subr.bf16.mxu0 0
      %1906 = vmatpush1.bf16.xpose.msra.mxu0 %v1891
      %1907 = vmatprep.subr.bf16.mxu0 0
      %1908 = vmatpush1.bf16.xpose.msra.mxu0 %v1888
      %1909 = vmatprep.subr.bf16.mxu0 0
      %1910 = vmatpush2.bf16.xpose.msra.mxu0 0
      %1911 = vmatprep.subr.bf16.mxu0 0
      %1912 = vmatpush2.bf16.xpose.msra.mxu0 0
      %1913 = vmatprep.subr.bf16.mxu0 0
      %1914 = vmatpush2.bf16.xpose.msra.mxu0 0
      %1915 = vmatprep.subr.bf16.mxu0 0
      %1916 = vmatpush2.bf16.xpose.msra.mxu0 0
      %1917 = vmatprep.subr.bf16.mxu0 0
      %1918 = vmatpush2.bf16.xpose.msra.mxu0 0
      %1919 = vmatprep.subr.bf16.mxu0 0
      %1920 = vmatpush2.bf16.xpose.msra.mxu0 0
      %1921 = vmatprep.subr.bf16.mxu0 0
      %1922 = vmatpush2.bf16.xpose.msra.mxu0 0
      %1923 = vmatprep.subr.bf16.mxu0 0
      %1924 = vmatpush2.bf16.xpose.msra.mxu0 0
      %1925 = vmatprep.mubr.bf16.mxu0 0
      %1926 = vmatmul.mubr.bf16.gmra.mxu0 %v1882
      %v1927 = vpop.f32.mrf.mxu0
      %v1928 = vadd.f32 0.0, %v1927
      %v1929 = vpop.f32.mrf.mxu0
      %v1930 = vpop.f32.mrf.mxu0
      %v1931 = vadd.f32 0.0, %v1930
      %v1932 = vpop.f32.mrf.mxu0
      %1933 = vmatprep.mubr.bf16.mxu0 0
      %1934 = vmatmul.mubr.bf16.gmra.mxu0 %v1885
      %v1935 = vpop.f32.mrf.mxu0
      %v1936 = vadd.f32 0.0, %v1935
      %v1937 = vpop.f32.mrf.mxu0
      %v1938 = vpop.f32.mrf.mxu0
      %v1939 = vpop.f32.mrf.mxu0
      %1940 = vdwg.mxu0
      %v1942 = vsel %vm1820, %v1808, 0
      %v1945 = vsel %vm1820, %v1809, 0
      %v1948 = vsel %vm1820, %v1816, 0
      %v1951 = vsel %vm1820, %v1817, 0
      %1953 = vmatprep.subr.bf16.mxu0 0
      %1954 = vmatpush1.bf16.xpose.msra.mxu0 0
      %1955 = vmatprep.subr.bf16.mxu0 0
      %1956 = vmatpush1.bf16.xpose.msra.mxu0 0
      %1957 = vmatprep.subr.bf16.mxu0 0
      %1958 = vmatpush1.bf16.xpose.msra.mxu0 0
      %1959 = vmatprep.subr.bf16.mxu0 0
      %1960 = vmatpush1.bf16.xpose.msra.mxu0 0
      %1961 = vmatprep.subr.bf16.mxu0 0
      %1962 = vmatpush1.bf16.xpose.msra.mxu0 0
      %1963 = vmatprep.subr.bf16.mxu0 0
      %1964 = vmatpush1.bf16.xpose.msra.mxu0 0
      %1965 = vmatprep.subr.bf16.mxu0 0
      %1966 = vmatpush1.bf16.xpose.msra.mxu0 %v1951
      %1967 = vmatprep.subr.bf16.mxu0 0
      %1968 = vmatpush1.bf16.xpose.msra.mxu0 %v1948
      %1969 = vmatprep.subr.bf16.mxu0 0
      %1970 = vmatpush2.bf16.xpose.msra.mxu0 0
      %1971 = vmatprep.subr.bf16.mxu0 0
      %1972 = vmatpush2.bf16.xpose.msra.mxu0 0
      %1973 = vmatprep.subr.bf16.mxu0 0
      %1974 = vmatpush2.bf16.xpose.msra.mxu0 0
      %1975 = vmatprep.subr.bf16.mxu0 0
      %1976 = vmatpush2.bf16.xpose.msra.mxu0 0
      %1977 = vmatprep.subr.bf16.mxu0 0
      %1978 = vmatpush2.bf16.xpose.msra.mxu0 0
      %1979 = vmatprep.subr.bf16.mxu0 0
      %1980 = vmatpush2.bf16.xpose.msra.mxu0 0
      %1981 = vmatprep.subr.bf16.mxu0 0
      %1982 = vmatpush2.bf16.xpose.msra.mxu0 0
      %1983 = vmatprep.subr.bf16.mxu0 0
      %1984 = vmatpush2.bf16.xpose.msra.mxu0 0
      %1985 = vmatprep.mubr.bf16.mxu0 0
      %1986 = vmatmul.mubr.bf16.gmra.mxu0 %v1942
      %v1987 = vpop.f32.mrf.mxu0
      %v1988 = vadd.f32 0.0, %v1987
      %v1989 = vpop.f32.mrf.mxu0
      %v1990 = vpop.f32.mrf.mxu0
      %v1991 = vadd.f32 0.0, %v1990
      %v1992 = vpop.f32.mrf.mxu0
      %1993 = vmatprep.mubr.bf16.mxu0 0
      %1994 = vmatmul.mubr.bf16.gmra.mxu0 %v1945
      %v1995 = vpop.f32.mrf.mxu0
      %v1996 = vadd.f32 0.0, %v1995
      %v1997 = vpop.f32.mrf.mxu0
      %v1998 = vpop.f32.mrf.mxu0
      %v1999 = vpop.f32.mrf.mxu0
      %2000 = vdwg.mxu0
      %v2002 = vsel %vm1820, %v1810, 0
      %v2005 = vsel %vm1820, %v1811, 0
      %v2008 = vsel %vm1820, %v1818, 0
      %v2011 = vsel %vm1820, %v1819, 0
      %2013 = vmatprep.subr.bf16.mxu0 0
      %2014 = vmatpush1.bf16.xpose.msra.mxu0 0
      %2015 = vmatprep.subr.bf16.mxu0 0
      %2016 = vmatpush1.bf16.xpose.msra.mxu0 0
      %2017 = vmatprep.subr.bf16.mxu0 0
      %2018 = vmatpush1.bf16.xpose.msra.mxu0 0
      %2019 = vmatprep.subr.bf16.mxu0 0
      %2020 = vmatpush1.bf16.xpose.msra.mxu0 0
      %2021 = vmatprep.subr.bf16.mxu0 0
      %2022 = vmatpush1.bf16.xpose.msra.mxu0 0
      %2023 = vmatprep.subr.bf16.mxu0 0
      %2024 = vmatpush1.bf16.xpose.msra.mxu0 0
      %2025 = vmatprep.subr.bf16.mxu0 0
      %2026 = vmatpush1.bf16.xpose.msra.mxu0 %v2011
      %2027 = vmatprep.subr.bf16.mxu0 0
      %2028 = vmatpush1.bf16.xpose.msra.mxu0 %v2008
      %2029 = vmatprep.subr.bf16.mxu0 0
      %2030 = vmatpush2.bf16.xpose.msra.mxu0 0
      %2031 = vmatprep.subr.bf16.mxu0 0
      %2032 = vmatpush2.bf16.xpose.msra.mxu0 0
      %2033 = vmatprep.subr.bf16.mxu0 0
      %2034 = vmatpush2.bf16.xpose.msra.mxu0 0
      %2035 = vmatprep.subr.bf16.mxu0 0
      %2036 = vmatpush2.bf16.xpose.msra.mxu0 0
      %2037 = vmatprep.subr.bf16.mxu0 0
      %2038 = vmatpush2.bf16.xpose.msra.mxu0 0
      %2039 = vmatprep.subr.bf16.mxu0 0
      %2040 = vmatpush2.bf16.xpose.msra.mxu0 0
      %2041 = vmatprep.subr.bf16.mxu0 0
      %2042 = vmatpush2.bf16.xpose.msra.mxu0 0
      %2043 = vmatprep.subr.bf16.mxu0 0
      %2044 = vmatpush2.bf16.xpose.msra.mxu0 0
      %2045 = vmatprep.mubr.bf16.mxu0 0
      %2046 = vmatmul.mubr.bf16.gmra.mxu0 %v2002
      %v2047 = vpop.f32.mrf.mxu0
      %v2048 = vadd.f32 0.0, %v2047
      %v2049 = vpop.f32.mrf.mxu0
      %v2050 = vpop.f32.mrf.mxu0
      %v2051 = vadd.f32 0.0, %v2050
      %v2052 = vpop.f32.mrf.mxu0
      %2053 = vmatprep.mubr.bf16.mxu0 0
      %2054 = vmatmul.mubr.bf16.gmra.mxu0 %v2005
      %v2055 = vpop.f32.mrf.mxu0
      %v2056 = vadd.f32 0.0, %v2055
      %v2057 = vpop.f32.mrf.mxu0
      %v2058 = vpop.f32.mrf.mxu0
      %v2059 = vpop.f32.mrf.mxu0
      %2060 = vdwg.mxu0
      %v2061 = vmul.f32 %v1868, 0.17677669
      %v2062 = vmul.f32 %v1871, 0.17677669
      %v2063 = vmul.f32 %v1876, 0.17677669
      %v2064 = vmul.f32 %v1928, 0.17677669
      %v2065 = vmul.f32 %v1931, 0.17677669
      %v2066 = vmul.f32 %v1936, 0.17677669
      %v2067 = vmul.f32 %v1988, 0.17677669
      %v2068 = vmul.f32 %v1991, 0.17677669
      %v2069 = vmul.f32 %v1996, 0.17677669
      %v2070 = vmul.f32 %v2048, 0.17677669
      %v2071 = vmul.f32 %v2051, 0.17677669
      %v2072 = vmul.f32 %v2056, 0.17677669
      %vm2073 = vcmask 138240
      %v2074 = vsel %vm2073, %v2061, -inf
      %2075 = vmax.xlane.f32.xlu0 %v2074
      %v2076 = vpop.xlane.xlu0 %2075
      %v2077 = vsel %vm2073, %v2062, -inf
      %2078 = vmax.xlane.f32.xlu0 %v2077
      %v2079 = vpop.xlane.xlu0 %2078
      %vm2080 = vcmask 131072
      %v2081 = vsel %vm2080, %v2063, -inf
      %2082 = vmax.xlane.f32.xlu0 %v2081
      %v2083 = vpop.xlane.xlu0 %2082
      %v2084 = vsel %vm2073, %v2064, -inf
      %2085 = vmax.xlane.f32.xlu0 %v2084
      %v2086 = vpop.xlane.xlu0 %2085
      %v2087 = vsel %vm2073, %v2065, -inf
      %2088 = vmax.xlane.f32.xlu0 %v2087
      %v2089 = vpop.xlane.xlu0 %2088
      %v2090 = vsel %vm2080, %v2066, -inf
      %2091 = vmax.xlane.f32.xlu0 %v2090
      %v2092 = vpop.xlane.xlu0 %2091
      %v2093 = vsel %vm2073, %v2067, -inf
      %2094 = vmax.xlane.f32.xlu0 %v2093
      %v2095 = vpop.xlane.xlu0 %2094
      %v2096 = vsel %vm2073, %v2068, -inf
      %2097 = vmax.xlane.f32.xlu0 %v2096
      %v2098 = vpop.xlane.xlu0 %2097
      %v2099 = vsel %vm2080, %v2069, -inf
      %2100 = vmax.xlane.f32.xlu0 %v2099
      %v2101 = vpop.xlane.xlu0 %2100
      %v2102 = vsel %vm2073, %v2070, -inf
      %2103 = vmax.xlane.f32.xlu0 %v2102
      %v2104 = vpop.xlane.xlu0 %2103
      %v2105 = vsel %vm2073, %v2071, -inf
      %2106 = vmax.xlane.f32.xlu0 %v2105
      %v2107 = vpop.xlane.xlu0 %2106
      %v2108 = vsel %vm2080, %v2072, -inf
      %2109 = vmax.xlane.f32.xlu0 %v2108
      %v2110 = vpop.xlane.xlu0 %2109
      %v2111 = vsub.f32 %v2061, %v2076
      %v2112 = vsub.f32 %v2062, %v2079
      %v2113 = vsub.f32 %v2063, %v2083
      %v2114 = vsub.f32 %v2064, %v2086
      %v2115 = vsub.f32 %v2065, %v2089
      %v2116 = vsub.f32 %v2066, %v2092
      %v2117 = vsub.f32 %v2067, %v2095
      %v2118 = vsub.f32 %v2068, %v2098
      %v2119 = vsub.f32 %v2069, %v2101
      %v2120 = vsub.f32 %v2070, %v2104
      %v2121 = vsub.f32 %v2071, %v2107
      %v2122 = vsub.f32 %v2072, %v2110
      %v2123 = vmul.f32 %v2111, 1.442695
      %v2124 = vpow.pop %v2123
      %v2125 = vmul.f32 %v2112, 1.442695
      %v2126 = vpow.pop %v2125
      %v2127 = vmul.f32 %v2113, 1.442695
      %v2128 = vpow.pop %v2127
      %v2129 = vmul.f32 %v2114, 1.442695
      %v2130 = vpow.pop %v2129
      %v2131 = vmul.f32 %v2115, 1.442695
      %v2132 = vpow.pop %v2131
      %v2133 = vmul.f32 %v2116, 1.442695
      %v2134 = vpow.pop %v2133
      %v2135 = vmul.f32 %v2117, 1.442695
      %v2136 = vpow.pop %v2135
      %v2137 = vmul.f32 %v2118, 1.442695
      %v2138 = vpow.pop %v2137
      %v2139 = vmul.f32 %v2119, 1.442695
      %v2140 = vpow.pop %v2139
      %v2141 = vmul.f32 %v2120, 1.442695
      %v2142 = vpow.pop %v2141
      %v2143 = vmul.f32 %v2121, 1.442695
      %v2144 = vpow.pop %v2143
      %v2145 = vmul.f32 %v2122, 1.442695
      %v2146 = vpow.pop %v2145
      %v2147 = vsel %vm2073, %v2124, 0.0
      %2148 = vadd.xlane.f32.xlu0 %v2147
      %v2149 = vpop.xlane.xlu0 %2148
      %v2150 = vsel %vm2073, %v2126, 0.0
      %2151 = vadd.xlane.f32.xlu0 %v2150
      %v2152 = vpop.xlane.xlu0 %2151
      %v2153 = vsel %vm2080, %v2128, 0.0
      %2154 = vadd.xlane.f32.xlu0 %v2153
      %v2155 = vpop.xlane.xlu0 %2154
      %v2156 = vsel %vm2073, %v2130, 0.0
      %2157 = vadd.xlane.f32.xlu0 %v2156
      %v2158 = vpop.xlane.xlu0 %2157
      %v2159 = vsel %vm2073, %v2132, 0.0
      %2160 = vadd.xlane.f32.xlu0 %v2159
      %v2161 = vpop.xlane.xlu0 %2160
      %v2162 = vsel %vm2080, %v2134, 0.0
      %2163 = vadd.xlane.f32.xlu0 %v2162
      %v2164 = vpop.xlane.xlu0 %2163
      %v2165 = vsel %vm2073, %v2136, 0.0
      %2166 = vadd.xlane.f32.xlu0 %v2165
      %v2167 = vpop.xlane.xlu0 %2166
      %v2168 = vsel %vm2073, %v2138, 0.0
      %2169 = vadd.xlane.f32.xlu0 %v2168
      %v2170 = vpop.xlane.xlu0 %2169
      %v2171 = vsel %vm2080, %v2140, 0.0
      %2172 = vadd.xlane.f32.xlu0 %v2171
      %v2173 = vpop.xlane.xlu0 %2172
      %v2174 = vsel %vm2073, %v2142, 0.0
      %2175 = vadd.xlane.f32.xlu0 %v2174
      %v2176 = vpop.xlane.xlu0 %2175
      %v2177 = vsel %vm2073, %v2144, 0.0
      %2178 = vadd.xlane.f32.xlu0 %v2177
      %v2179 = vpop.xlane.xlu0 %2178
      %v2180 = vsel %vm2080, %v2146, 0.0
      %2181 = vadd.xlane.f32.xlu0 %v2180
      %v2182 = vpop.xlane.xlu0 %2181
      %v2183 = vrcp.pop %v2149
      %v2184 = vrcp.pop %v2152
      %v2185 = vrcp.pop %v2155
      %v2186 = vrcp.pop %v2158
      %v2187 = vrcp.pop %v2161
      %v2188 = vrcp.pop %v2164
      %v2189 = vrcp.pop %v2167
      %v2190 = vrcp.pop %v2170
      %v2191 = vrcp.pop %v2173
      %v2192 = vrcp.pop %v2176
      %v2193 = vrcp.pop %v2179
      %v2194 = vrcp.pop %v2182
      %v2195 = vmul.f32 %v2124, %v2183
      %v2196 = vmul.f32 %v2126, %v2184
      %v2197 = vmul.f32 %v2128, %v2185
      %v2198 = vmul.f32 %v2130, %v2186
      %v2199 = vmul.f32 %v2132, %v2187
      %v2200 = vmul.f32 %v2134, %v2188
      %v2201 = vmul.f32 %v2136, %v2189
      %v2202 = vmul.f32 %v2138, %v2190
      %v2203 = vmul.f32 %v2140, %v2191
      %v2204 = vmul.f32 %v2142, %v2192
      %v2205 = vmul.f32 %v2144, %v2193
      %v2206 = vmul.f32 %v2146, %v2194
      %v2207 = vpack.c.bf16 %v2196, %v2195
      %v2208 = vpack.c.bf16 %v2197, %v2197
      %v2209 = vpack.c.bf16 %v2199, %v2198
      %v2210 = vpack.c.bf16 %v2200, %v2200
      %v2211 = vpack.c.bf16 %v2202, %v2201
      %v2212 = vpack.c.bf16 %v2203, %v2203
      %v2213 = vpack.c.bf16 %v2205, %v2204
      %v2214 = vpack.c.bf16 %v2206, %v2206
      %v2215 = vpack.c.bf16 %v1704, %v1701
      %v2216 = vpack.c.bf16 %v1709, %v1709
      %v2217 = vpack.c.bf16 %v1780, %v1778
      %v2218 = vpack.c.bf16 %v1782, %v1782
      %v2219 = vpack.c.bf16 %v1789, %v1787
      %v2220 = vpack.c.bf16 %v1791, %v1791
      %v2221 = vpack.c.bf16 %v1798, %v1796
      %v2222 = vpack.c.bf16 %v1800, %v1800
      %v2224 = vsel %vm2073, %v2207, 0
      %v2227 = vsel %vm2073, %v2208, 0
      %v2229 = vsel 0, 4294967295, 65535
      %v2230 = vsel %vm1385, %v2229, 0
      %v2232 = vand.u32 %v2216, %v2230
      %2234 = vmatprep.subr.bf16.mxu0 0
      %2235 = vmatpush1.bf16.msra.mxu0 0
      %2236 = vmatprep.subr.bf16.mxu0 0
      %2237 = vmatpush1.bf16.msra.mxu0 0
      %2238 = vmatprep.subr.bf16.mxu0 0
      %2239 = vmatpush1.bf16.msra.mxu0 0
      %2240 = vmatprep.subr.bf16.mxu0 0
      %2241 = vmatpush1.bf16.msra.mxu0 0
      %2242 = vmatprep.subr.bf16.mxu0 0
      %2243 = vmatpush1.bf16.msra.mxu0 0
      %2244 = vmatprep.subr.bf16.mxu0 0
      %2245 = vmatpush1.bf16.msra.mxu0 0
      %2246 = vmatprep.subr.bf16.mxu0 0
      %2247 = vmatpush1.bf16.msra.mxu0 %v2232
      %2248 = vmatprep.subr.bf16.mxu0 0
      %2249 = vmatpush1.bf16.msra.mxu0 %v2215
      %2250 = vmatprep.subr.bf16.mxu0 0
      %2251 = vmatpush2.bf16.msra.mxu0 0
      %2252 = vmatprep.subr.bf16.mxu0 0
      %2253 = vmatpush2.bf16.msra.mxu0 0
      %2254 = vmatprep.subr.bf16.mxu0 0
      %2255 = vmatpush2.bf16.msra.mxu0 0
      %2256 = vmatprep.subr.bf16.mxu0 0
      %2257 = vmatpush2.bf16.msra.mxu0 0
      %2258 = vmatprep.subr.bf16.mxu0 0
      %2259 = vmatpush2.bf16.msra.mxu0 0
      %2260 = vmatprep.subr.bf16.mxu0 0
      %2261 = vmatpush2.bf16.msra.mxu0 0
      %2262 = vmatprep.subr.bf16.mxu0 0
      %2263 = vmatpush2.bf16.msra.mxu0 0
      %2264 = vmatprep.subr.bf16.mxu0 0
      %2265 = vmatpush2.bf16.msra.mxu0 0
      %2266 = vmatprep.mubr.bf16.mxu0 0
      %2267 = vmatmul.mubr.bf16.gmra.mxu0 %v2224
      %v2268 = vpop.f32.mrf.mxu0
      %v2269 = vadd.f32 0.0, %v2268
      %v2270 = vpop.f32.mrf.mxu0
      %v2271 = vpop.f32.mrf.mxu0
      %v2272 = vadd.f32 0.0, %v2271
      %v2273 = vpop.f32.mrf.mxu0
      %2274 = vmatprep.mubr.bf16.mxu0 0
      %2275 = vmatmul.mubr.bf16.gmra.mxu0 %v2227
      %v2276 = vpop.f32.mrf.mxu0
      %v2277 = vadd.f32 0.0, %v2276
      %v2278 = vpop.f32.mrf.mxu0
      %v2279 = vpop.f32.mrf.mxu0
      %v2280 = vpop.f32.mrf.mxu0
      %2281 = vdwg.mxu0
      %v2283 = vsel %vm2073, %v2209, 0
      %v2286 = vsel %vm2073, %v2210, 0
      %v2289 = vand.u32 %v2218, %v2230
      %2291 = vmatprep.subr.bf16.mxu0 0
      %2292 = vmatpush1.bf16.msra.mxu0 0
      %2293 = vmatprep.subr.bf16.mxu0 0
      %2294 = vmatpush1.bf16.msra.mxu0 0
      %2295 = vmatprep.subr.bf16.mxu0 0
      %2296 = vmatpush1.bf16.msra.mxu0 0
      %2297 = vmatprep.subr.bf16.mxu0 0
      %2298 = vmatpush1.bf16.msra.mxu0 0
      %2299 = vmatprep.subr.bf16.mxu0 0
      %2300 = vmatpush1.bf16.msra.mxu0 0
      %2301 = vmatprep.subr.bf16.mxu0 0
      %2302 = vmatpush1.bf16.msra.mxu0 0
      %2303 = vmatprep.subr.bf16.mxu0 0
      %2304 = vmatpush1.bf16.msra.mxu0 %v2289
      %2305 = vmatprep.subr.bf16.mxu0 0
      %2306 = vmatpush1.bf16.msra.mxu0 %v2217
      %2307 = vmatprep.subr.bf16.mxu0 0
      %2308 = vmatpush2.bf16.msra.mxu0 0
      %2309 = vmatprep.subr.bf16.mxu0 0
      %2310 = vmatpush2.bf16.msra.mxu0 0
      %2311 = vmatprep.subr.bf16.mxu0 0
      %2312 = vmatpush2.bf16.msra.mxu0 0
      %2313 = vmatprep.subr.bf16.mxu0 0
      %2314 = vmatpush2.bf16.msra.mxu0 0
      %2315 = vmatprep.subr.bf16.mxu0 0
      %2316 = vmatpush2.bf16.msra.mxu0 0
      %2317 = vmatprep.subr.bf16.mxu0 0
      %2318 = vmatpush2.bf16.msra.mxu0 0
      %2319 = vmatprep.subr.bf16.mxu0 0
      %2320 = vmatpush2.bf16.msra.mxu0 0
      %2321 = vmatprep.subr.bf16.mxu0 0
      %2322 = vmatpush2.bf16.msra.mxu0 0
      %2323 = vmatprep.mubr.bf16.mxu0 0
      %2324 = vmatmul.mubr.bf16.gmra.mxu0 %v2283
      %v2325 = vpop.f32.mrf.mxu0
      %v2326 = vadd.f32 0.0, %v2325
      %v2327 = vpop.f32.mrf.mxu0
      %v2328 = vpop.f32.mrf.mxu0
      %v2329 = vadd.f32 0.0, %v2328
      %v2330 = vpop.f32.mrf.mxu0
      %2331 = vmatprep.mubr.bf16.mxu0 0
      %2332 = vmatmul.mubr.bf16.gmra.mxu0 %v2286
      %v2333 = vpop.f32.mrf.mxu0
      %v2334 = vadd.f32 0.0, %v2333
      %v2335 = vpop.f32.mrf.mxu0
      %v2336 = vpop.f32.mrf.mxu0
      %v2337 = vpop.f32.mrf.mxu0
      %2338 = vdwg.mxu0
      %v2340 = vsel %vm2073, %v2211, 0
      %v2343 = vsel %vm2073, %v2212, 0
      %v2346 = vand.u32 %v2220, %v2230
      %2348 = vmatprep.subr.bf16.mxu0 0
      %2349 = vmatpush1.bf16.msra.mxu0 0
      %2350 = vmatprep.subr.bf16.mxu0 0
      %2351 = vmatpush1.bf16.msra.mxu0 0
      %2352 = vmatprep.subr.bf16.mxu0 0
      %2353 = vmatpush1.bf16.msra.mxu0 0
      %2354 = vmatprep.subr.bf16.mxu0 0
      %2355 = vmatpush1.bf16.msra.mxu0 0
      %2356 = vmatprep.subr.bf16.mxu0 0
      %2357 = vmatpush1.bf16.msra.mxu0 0
      %2358 = vmatprep.subr.bf16.mxu0 0
      %2359 = vmatpush1.bf16.msra.mxu0 0
      %2360 = vmatprep.subr.bf16.mxu0 0
      %2361 = vmatpush1.bf16.msra.mxu0 %v2346
      %2362 = vmatprep.subr.bf16.mxu0 0
      %2363 = vmatpush1.bf16.msra.mxu0 %v2219
      %2364 = vmatprep.subr.bf16.mxu0 0
      %2365 = vmatpush2.bf16.msra.mxu0 0
      %2366 = vmatprep.subr.bf16.mxu0 0
      %2367 = vmatpush2.bf16.msra.mxu0 0
      %2368 = vmatprep.subr.bf16.mxu0 0
      %2369 = vmatpush2.bf16.msra.mxu0 0
      %2370 = vmatprep.subr.bf16.mxu0 0
      %2371 = vmatpush2.bf16.msra.mxu0 0
      %2372 = vmatprep.subr.bf16.mxu0 0
      %2373 = vmatpush2.bf16.msra.mxu0 0
      %2374 = vmatprep.subr.bf16.mxu0 0
      %2375 = vmatpush2.bf16.msra.mxu0 0
      %2376 = vmatprep.subr.bf16.mxu0 0
      %2377 = vmatpush2.bf16.msra.mxu0 0
      %2378 = vmatprep.subr.bf16.mxu0 0
      %2379 = vmatpush2.bf16.msra.mxu0 0
      %2380 = vmatprep.mubr.bf16.mxu0 0
      %2381 = vmatmul.mubr.bf16.gmra.mxu0 %v2340
      %v2382 = vpop.f32.mrf.mxu0
      %v2383 = vadd.f32 0.0, %v2382
      %v2384 = vpop.f32.mrf.mxu0
      %v2385 = vpop.f32.mrf.mxu0
      %v2386 = vadd.f32 0.0, %v2385
      %v2387 = vpop.f32.mrf.mxu0
      %2388 = vmatprep.mubr.bf16.mxu0 0
      %2389 = vmatmul.mubr.bf16.gmra.mxu0 %v2343
      %v2390 = vpop.f32.mrf.mxu0
      %v2391 = vadd.f32 0.0, %v2390
      %v2392 = vpop.f32.mrf.mxu0
      %v2393 = vpop.f32.mrf.mxu0
      %v2394 = vpop.f32.mrf.mxu0
      %2395 = vdwg.mxu0
      %v2397 = vsel %vm2073, %v2213, 0
      %v2400 = vsel %vm2073, %v2214, 0
      %v2403 = vand.u32 %v2222, %v2230
      %2405 = vmatprep.subr.bf16.mxu0 0
      %2406 = vmatpush1.bf16.msra.mxu0 0
      %2407 = vmatprep.subr.bf16.mxu0 0
      %2408 = vmatpush1.bf16.msra.mxu0 0
      %2409 = vmatprep.subr.bf16.mxu0 0
      %2410 = vmatpush1.bf16.msra.mxu0 0
      %2411 = vmatprep.subr.bf16.mxu0 0
      %2412 = vmatpush1.bf16.msra.mxu0 0
      %2413 = vmatprep.subr.bf16.mxu0 0
      %2414 = vmatpush1.bf16.msra.mxu0 0
      %2415 = vmatprep.subr.bf16.mxu0 0
      %2416 = vmatpush1.bf16.msra.mxu0 0
      %2417 = vmatprep.subr.bf16.mxu0 0
      %2418 = vmatpush1.bf16.msra.mxu0 %v2403
      %2419 = vmatprep.subr.bf16.mxu0 0
      %2420 = vmatpush1.bf16.msra.mxu0 %v2221
      %2421 = vmatprep.subr.bf16.mxu0 0
      %2422 = vmatpush2.bf16.msra.mxu0 0
      %2423 = vmatprep.subr.bf16.mxu0 0
      %2424 = vmatpush2.bf16.msra.mxu0 0
      %2425 = vmatprep.subr.bf16.mxu0 0
      %2426 = vmatpush2.bf16.msra.mxu0 0
      %2427 = vmatprep.subr.bf16.mxu0 0
      %2428 = vmatpush2.bf16.msra.mxu0 0
      %2429 = vmatprep.subr.bf16.mxu0 0
      %2430 = vmatpush2.bf16.msra.mxu0 0
      %2431 = vmatprep.subr.bf16.mxu0 0
      %2432 = vmatpush2.bf16.msra.mxu0 0
      %2433 = vmatprep.subr.bf16.mxu0 0
      %2434 = vmatpush2.bf16.msra.mxu0 0
      %2435 = vmatprep.subr.bf16.mxu0 0
      %2436 = vmatpush2.bf16.msra.mxu0 0
      %2437 = vmatprep.mubr.bf16.mxu0 0
      %2438 = vmatmul.mubr.bf16.gmra.mxu0 %v2397
      %v2439 = vpop.f32.mrf.mxu0
      %v2440 = vadd.f32 0.0, %v2439
      %v2441 = vpop.f32.mrf.mxu0
      %v2442 = vpop.f32.mrf.mxu0
      %v2443 = vadd.f32 0.0, %v2442
      %v2444 = vpop.f32.mrf.mxu0
      %2445 = vmatprep.mubr.bf16.mxu0 0
      %2446 = vmatmul.mubr.bf16.gmra.mxu0 %v2400
      %v2447 = vpop.f32.mrf.mxu0
      %v2448 = vadd.f32 0.0, %v2447
      %v2449 = vpop.f32.mrf.mxu0
      %v2450 = vpop.f32.mrf.mxu0
      %v2451 = vpop.f32.mrf.mxu0
      %2452 = vdwg.mxu0
      %2456 = vrot.lane.b32.xlu0 %v2326, 32
      %v2457 = vpop.permute.xlu0 %2456
      %2458 = vrot.lane.b32.xlu0 %v2329, 32
      %v2459 = vpop.permute.xlu0 %2458
      %2460 = vrot.lane.b32.xlu0 %v2334, 32
      %v2461 = vpop.permute.xlu0 %2460
      %2468 = vrot.lane.b32.xlu0 %v2383, 64
      %v2469 = vpop.permute.xlu0 %2468
      %2470 = vrot.lane.b32.xlu0 %v2386, 64
      %v2471 = vpop.permute.xlu0 %2470
      %2472 = vrot.lane.b32.xlu0 %v2391, 64
      %v2473 = vpop.permute.xlu0 %2472
      %2480 = vrot.lane.b32.xlu0 %v2440, 96
      %v2481 = vpop.permute.xlu0 %2480
      %2482 = vrot.lane.b32.xlu0 %v2443, 96
      %v2483 = vpop.permute.xlu0 %2482
      %2484 = vrot.lane.b32.xlu0 %v2448, 96
      %v2485 = vpop.permute.xlu0 %2484
      %v2489 = vsel %vm1820, %v2269, %v2457
      %v2490 = vsel %vm1820, %v2272, %v2459
      %v2491 = vsel %vm1820, %v2277, %v2461
      %vm2492 = vcmask 523264
      %v2493 = vsel %vm2492, %v2489, %v2469
      %v2494 = vsel %vm2492, %v2490, %v2471
      %v2495 = vsel %vm2492, %v2491, %v2473
      %vm2496 = vcmask 785408
      %v2497 = vsel %vm2496, %v2493, %v2481
      %v2498 = vsel %vm2496, %v2494, %v2483
      %v2499 = vsel %vm2496, %v2495, %v2485
      %v2500 = vpack.c.bf16 %v2498, %v2497
      %v2501 = vpack.c.bf16 %v2499, %v2499
      %v2502 = vld [vmem:[%s781] sm:$0xf]
      %v2503 = vld [vmem:[%s781 + $0x4] sm:$0xf]
      %v2504 = vld [vmem:[%s781 + $0x8] sm:$0xf]
      %v2505 = vld [vmem:[%s781 + $0xc] sm:$0xf]
      %v2506 = vld [vmem:[%s781 + $0x10] sm:$0xf]
      %v2507 = vld [vmem:[%s781 + $0x14] sm:$0xf]
      %v2508 = vld [vmem:[%s781 + $0x18] sm:$0xf]
      %v2509 = vld [vmem:[%s781 + $0x1c] sm:$0xf]
      %v2510 = vld [vmem:[%s781 + $0x20] sm:$0xf]
      %v2511 = vld [vmem:[%s781 + $0x24] sm:$0xf]
      %v2512 = vld [vmem:[%s781 + $0x28] sm:$0xf]
      %v2513 = vld [vmem:[%s781 + $0x2c] sm:$0xf]
      %v2514 = vld [vmem:[%s781 + $0x30] sm:$0xf]
      %v2515 = vld [vmem:[%s781 + $0x34] sm:$0xf]
      %v2516 = vld [vmem:[%s781 + $0x38] sm:$0xf]
      %v2517 = vld [vmem:[%s781 + $0x3c] sm:$0xf]
      %v2518 = vld [vmem:[%s784] sm:$0x1]
      %v2520 = vlaneseq
      %v2521 = vshrl.u32 %v2520, 7
      %v2522 = vsub.s32 0, %v2521
      %v2523 = vrot.slane %v2518, %v2522
      %v2541 = vunpack.c.l.b16 %v2502
      %v2542 = vunpack.c.l.b16 %v2503
      %v2543 = vunpack.c.l.b16 %v2504
      %v2544 = vunpack.c.l.b16 %v2505
      %v2545 = vunpack.c.l.b16 %v2506
      %v2546 = vunpack.c.l.b16 %v2507
      %v2547 = vunpack.c.l.b16 %v2508
      %v2548 = vunpack.c.l.b16 %v2509
      %v2549 = vunpack.c.l.b16 %v2510
      %v2550 = vunpack.c.l.b16 %v2511
      %v2551 = vunpack.c.l.b16 %v2512
      %v2552 = vunpack.c.l.b16 %v2513
      %v2553 = vunpack.c.l.b16 %v2514
      %v2554 = vunpack.c.l.b16 %v2515
      %v2555 = vunpack.c.l.b16 %v2516
      %v2556 = vunpack.c.l.b16 %v2517
      %v2557 = vpack.c.b16 %v2542, %v2541
      %v2558 = vpack.c.b16 %v2544, %v2543
      %v2559 = vpack.c.b16 %v2546, %v2545
      %v2560 = vpack.c.b16 %v2548, %v2547
      %v2561 = vpack.c.b16 %v2550, %v2549
      %v2562 = vpack.c.b16 %v2552, %v2551
      %v2563 = vpack.c.b16 %v2554, %v2553
      %v2564 = vpack.c.b16 %v2556, %v2555
      %2573 = vmatprep.subr.bf16.mxu0 0
      %2574 = vmatpush1.bf16.msra.mxu0 %v2564
      %2575 = vmatprep.subr.bf16.mxu0 0
      %2576 = vmatpush1.bf16.msra.mxu0 %v2563
      %2577 = vmatprep.subr.bf16.mxu0 0
      %2578 = vmatpush1.bf16.msra.mxu0 %v2562
      %2579 = vmatprep.subr.bf16.mxu0 0
      %2580 = vmatpush1.bf16.msra.mxu0 %v2561
      %2581 = vmatprep.subr.bf16.mxu0 0
      %2582 = vmatpush1.bf16.msra.mxu0 %v2560
      %2583 = vmatprep.subr.bf16.mxu0 0
      %2584 = vmatpush1.bf16.msra.mxu0 %v2559
      %2585 = vmatprep.subr.bf16.mxu0 0
      %2586 = vmatpush1.bf16.msra.mxu0 %v2558
      %2587 = vmatprep.subr.bf16.mxu0 0
      %2588 = vmatpush1.bf16.msra.mxu0 %v2557
      %2589 = vmatprep.subr.bf16.mxu0 0
      %2590 = vmatpush2.bf16.msra.mxu0 0
      %2591 = vmatprep.subr.bf16.mxu0 0
      %2592 = vmatpush2.bf16.msra.mxu0 0
      %2593 = vmatprep.subr.bf16.mxu0 0
      %2594 = vmatpush2.bf16.msra.mxu0 0
      %2595 = vmatprep.subr.bf16.mxu0 0
      %2596 = vmatpush2.bf16.msra.mxu0 0
      %2597 = vmatprep.subr.bf16.mxu0 0
      %2598 = vmatpush2.bf16.msra.mxu0 0
      %2599 = vmatprep.subr.bf16.mxu0 0
      %2600 = vmatpush2.bf16.msra.mxu0 0
      %2601 = vmatprep.subr.bf16.mxu0 0
      %2602 = vmatpush2.bf16.msra.mxu0 0
      %2603 = vmatprep.subr.bf16.mxu0 0
      %2604 = vmatpush2.bf16.msra.mxu0 0
      %2605 = vmatprep.mubr.bf16.mxu0 0
      %2606 = vmatmul.mubr.bf16.gmra.mxu0 %v2500
      %v2607 = vpop.f32.mrf.mxu0
      %v2608 = vadd.f32 %v2523, %v2607
      %v2609 = vpop.f32.mrf.mxu0
      %v2610 = vpop.f32.mrf.mxu0
      %v2611 = vadd.f32 %v2523, %v2610
      %v2612 = vpop.f32.mrf.mxu0
      %2613 = vmatprep.mubr.bf16.mxu0 0
      %2614 = vmatmul.mubr.bf16.gmra.mxu0 %v2501
      %v2615 = vpop.f32.mrf.mxu0
      %v2616 = vadd.f32 %v2523, %v2615
      %v2617 = vpop.f32.mrf.mxu0
      %v2618 = vpop.f32.mrf.mxu0
      %v2619 = vpop.f32.mrf.mxu0
      %2620 = vdwg.mxu0
      %v2621 = vadd.f32 %v1376, %v2608
      %v2622 = vadd.f32 %v1377, %v2611
      %v2623 = vadd.f32 %v1378, %v2616
      %v2624 = vld [vmem:[%s787] sm:$0x1]
      %v2625 = vld [vmem:[%s790] sm:$0x1]
      %2626 = vadd.xlane.f32.xlu0 %v2621
      %v2627 = vpop.xlane.xlu0 %2626
      %2628 = vadd.xlane.f32.xlu0 %v2622
      %v2629 = vpop.xlane.xlu0 %2628
      %v2630 = vsel %vm1385, %v2623, 0.0
      %2631 = vadd.xlane.f32.xlu0 %v2630
      %v2632 = vpop.xlane.xlu0 %2631
      %v2633 = vmul.f32 %v2627, %v1389
      %v2634 = vmul.f32 %v2629, %v1389
      %v2635 = vmul.f32 %v2632, %v1389
      %v2636 = vsub.f32 %v2621, %v2633
      %v2637 = vsub.f32 %v2622, %v2634
      %v2638 = vsub.f32 %v2623, %v2635
      %v2639 = vmul.f32 %v2636, %v2636
      %v2640 = vmul.f32 %v2637, %v2637
      %v2641 = vmul.f32 %v2638, %v2638
      %2642 = vadd.xlane.f32.xlu0 %v2639
      %v2643 = vpop.xlane.xlu0 %2642
      %2644 = vadd.xlane.f32.xlu0 %v2640
      %v2645 = vpop.xlane.xlu0 %2644
      %v2646 = vsel %vm1385, %v2641, 0.0
      %2647 = vadd.xlane.f32.xlu0 %v2646
      %v2648 = vpop.xlane.xlu0 %2647
      %v2649 = vmul.f32 %v2643, %v1389
      %v2650 = vmul.f32 %v2645, %v1389
      %v2651 = vmul.f32 %v2648, %v1389
      %v2652 = vadd.f32 %v2649, 1e-06
      %v2653 = vadd.f32 %v2650, 1e-06
      %v2654 = vadd.f32 %v2651, 1e-06
      %v2655 = vrsqrt.pop %v2652
      %v2656 = vrsqrt.pop %v2653
      %v2657 = vrsqrt.pop %v2654
      %v2658 = vmul.f32 %v2636, %v2655
      %v2659 = vmul.f32 %v2637, %v2656
      %v2660 = vmul.f32 %v2638, %v2657
      %v2662 = vlaneseq
      %v2663 = vshrl.u32 %v2662, 7
      %v2664 = vsub.s32 0, %v2663
      %v2665 = vrot.slane %v2624, %v2664
      %v2667 = vmul.f32 %v2658, %v2665
      %v2668 = vmul.f32 %v2659, %v2665
      %v2669 = vmul.f32 %v2660, %v2665
      %v2671 = vlaneseq
      %v2672 = vshrl.u32 %v2671, 7
      %v2673 = vsub.s32 0, %v2672
      %v2674 = vrot.slane %v2625, %v2673
      %v2676 = vadd.f32 %v2667, %v2674
      %v2677 = vadd.f32 %v2668, %v2674
      %v2678 = vadd.f32 %v2669, %v2674
      %v2679 = vpack.c.bf16 %v2677, %v2676
      %v2680 = vpack.c.bf16 %v2678, %v2678
      %v2681 = vld [vmem:[%s795] sm:$0xff]
      %v2682 = vld [vmem:[%s795 + $0x8] sm:$0xff]
      %v2683 = vld [vmem:[%s795 + $0x10] sm:$0xff]
      %v2684 = vld [vmem:[%s795 + $0x18] sm:$0xff]
      %v2685 = vld [vmem:[%s795 + $0x20] sm:$0xff]
      %v2686 = vld [vmem:[%s795 + $0x28] sm:$0xff]
      %v2687 = vld [vmem:[%s795 + $0x30] sm:$0xff]
      %v2688 = vld [vmem:[%s795 + $0x38] sm:$0xff]
      %v2689 = vld [vmem:[%s795 + $0x40] sm:$0xff]
      %v2690 = vld [vmem:[%s795 + $0x48] sm:$0xff]
      %v2691 = vld [vmem:[%s795 + $0x50] sm:$0xff]
      %v2692 = vld [vmem:[%s795 + $0x58] sm:$0xff]
      %v2693 = vld [vmem:[%s795 + $0x60] sm:$0xff]
      %v2694 = vld [vmem:[%s795 + $0x68] sm:$0xff]
      %v2695 = vld [vmem:[%s795 + $0x70] sm:$0xff]
      %v2696 = vld [vmem:[%s795 + $0x78] sm:$0xff]
      %v2697 = vld [vmem:[%s795 + $0x80] sm:$0xff]
      %v2698 = vld [vmem:[%s795 + $0x88] sm:$0xff]
      %v2699 = vld [vmem:[%s795 + $0x90] sm:$0xff]
      %v2700 = vld [vmem:[%s795 + $0x98] sm:$0xff]
      %v2701 = vld [vmem:[%s795 + $0xa0] sm:$0xff]
      %v2702 = vld [vmem:[%s795 + $0xa8] sm:$0xff]
      %v2703 = vld [vmem:[%s795 + $0xb0] sm:$0xff]
      %v2704 = vld [vmem:[%s795 + $0xb8] sm:$0xff]
      %v2705 = vld [vmem:[%s795 + $0xc0] sm:$0xff]
      %v2706 = vld [vmem:[%s795 + $0xc8] sm:$0xff]
      %v2707 = vld [vmem:[%s795 + $0xd0] sm:$0xff]
      %v2708 = vld [vmem:[%s795 + $0xd8] sm:$0xff]
      %v2709 = vld [vmem:[%s795 + $0xe0] sm:$0xff]
      %v2710 = vld [vmem:[%s795 + $0xe8] sm:$0xff]
      %v2711 = vld [vmem:[%s795 + $0xf0] sm:$0xff]
      %v2712 = vld [vmem:[%s795 + $0xf8] sm:$0xff]
      %v2713 = vld [vmem:[%s799] sm:$0xf]
      %v2715 = vlaneseq
      %v2716 = vshrl.u32 %v2715, 7
      %v2717 = vsub.s32 0, %v2716
      %v2718 = vrot.slane %v2713, %v2717
      %v2719 = vlaneseq
      %v2720 = vshrl.u32 %v2719, 7
      %v2721 = vsub.s32 1, %v2720
      %v2722 = vrot.slane %v2713, %v2721
      %v2723 = vlaneseq
      %v2724 = vshrl.u32 %v2723, 7
      %v2725 = vsub.s32 2, %v2724
      %v2726 = vrot.slane %v2713, %v2725
      %v2727 = vlaneseq
      %v2728 = vshrl.u32 %v2727, 7
      %v2729 = vsub.s32 3, %v2728
      %v2730 = vrot.slane %v2713, %v2729
      %v2767 = vunpack.c.l.b16 %v2681
      %v2768 = vunpack.c.h.b16 %v2681
      %v2769 = vunpack.c.l.b16 %v2682
      %v2770 = vunpack.c.h.b16 %v2682
      %v2771 = vunpack.c.l.b16 %v2683
      %v2772 = vunpack.c.h.b16 %v2683
      %v2773 = vunpack.c.l.b16 %v2684
      %v2774 = vunpack.c.h.b16 %v2684
      %v2775 = vunpack.c.l.b16 %v2685
      %v2776 = vunpack.c.h.b16 %v2685
      %v2777 = vunpack.c.l.b16 %v2686
      %v2778 = vunpack.c.h.b16 %v2686
      %v2779 = vunpack.c.l.b16 %v2687
      %v2780 = vunpack.c.h.b16 %v2687
      %v2781 = vunpack.c.l.b16 %v2688
      %v2782 = vunpack.c.h.b16 %v2688
      %v2783 = vunpack.c.l.b16 %v2689
      %v2784 = vunpack.c.h.b16 %v2689
      %v2785 = vunpack.c.l.b16 %v2690
      %v2786 = vunpack.c.h.b16 %v2690
      %v2787 = vunpack.c.l.b16 %v2691
      %v2788 = vunpack.c.h.b16 %v2691
      %v2789 = vunpack.c.l.b16 %v2692
      %v2790 = vunpack.c.h.b16 %v2692
      %v2791 = vunpack.c.l.b16 %v2693
      %v2792 = vunpack.c.h.b16 %v2693
      %v2793 = vunpack.c.l.b16 %v2694
      %v2794 = vunpack.c.h.b16 %v2694
      %v2795 = vunpack.c.l.b16 %v2695
      %v2796 = vunpack.c.h.b16 %v2695
      %v2797 = vunpack.c.l.b16 %v2696
      %v2798 = vunpack.c.h.b16 %v2696
      %v2799 = vunpack.c.l.b16 %v2697
      %v2800 = vunpack.c.h.b16 %v2697
      %v2801 = vunpack.c.l.b16 %v2698
      %v2802 = vunpack.c.h.b16 %v2698
      %v2803 = vunpack.c.l.b16 %v2699
      %v2804 = vunpack.c.h.b16 %v2699
      %v2805 = vunpack.c.l.b16 %v2700
      %v2806 = vunpack.c.h.b16 %v2700
      %v2807 = vunpack.c.l.b16 %v2701
      %v2808 = vunpack.c.h.b16 %v2701
      %v2809 = vunpack.c.l.b16 %v2702
      %v2810 = vunpack.c.h.b16 %v2702
      %v2811 = vunpack.c.l.b16 %v2703
      %v2812 = vunpack.c.h.b16 %v2703
      %v2813 = vunpack.c.l.b16 %v2704
      %v2814 = vunpack.c.h.b16 %v2704
      %v2815 = vunpack.c.l.b16 %v2705
      %v2816 = vunpack.c.h.b16 %v2705
      %v2817 = vunpack.c.l.b16 %v2706
      %v2818 = vunpack.c.h.b16 %v2706
      %v2819 = vunpack.c.l.b16 %v2707
      %v2820 = vunpack.c.h.b16 %v2707
      %v2821 = vunpack.c.l.b16 %v2708
      %v2822 = vunpack.c.h.b16 %v2708
      %v2823 = vunpack.c.l.b16 %v2709
      %v2824 = vunpack.c.h.b16 %v2709
      %v2825 = vunpack.c.l.b16 %v2710
      %v2826 = vunpack.c.h.b16 %v2710
      %v2827 = vunpack.c.l.b16 %v2711
      %v2828 = vunpack.c.h.b16 %v2711
      %v2829 = vunpack.c.l.b16 %v2712
      %v2830 = vunpack.c.h.b16 %v2712
      %v2831 = vpack.c.b16 %v2771, %v2767
      %v2832 = vpack.c.b16 %v2772, %v2768
      %v2833 = vpack.c.b16 %v2773, %v2769
      %v2834 = vpack.c.b16 %v2774, %v2770
      %v2835 = vpack.c.b16 %v2779, %v2775
      %v2836 = vpack.c.b16 %v2780, %v2776
      %v2837 = vpack.c.b16 %v2781, %v2777
      %v2838 = vpack.c.b16 %v2782, %v2778
      %v2839 = vpack.c.b16 %v2787, %v2783
      %v2840 = vpack.c.b16 %v2788, %v2784
      %v2841 = vpack.c.b16 %v2789, %v2785
      %v2842 = vpack.c.b16 %v2790, %v2786
      %v2843 = vpack.c.b16 %v2795, %v2791
      %v2844 = vpack.c.b16 %v2796, %v2792
      %v2845 = vpack.c.b16 %v2797, %v2793
      %v2846 = vpack.c.b16 %v2798, %v2794
      %v2847 = vpack.c.b16 %v2803, %v2799
      %v2848 = vpack.c.b16 %v2804, %v2800
      %v2849 = vpack.c.b16 %v2805, %v2801
      %v2850 = vpack.c.b16 %v2806, %v2802
      %v2851 = vpack.c.b16 %v2811, %v2807
      %v2852 = vpack.c.b16 %v2812, %v2808
      %v2853 = vpack.c.b16 %v2813, %v2809
      %v2854 = vpack.c.b16 %v2814, %v2810
      %v2855 = vpack.c.b16 %v2819, %v2815
      %v2856 = vpack.c.b16 %v2820, %v2816
      %v2857 = vpack.c.b16 %v2821, %v2817
      %v2858 = vpack.c.b16 %v2822, %v2818
      %v2859 = vpack.c.b16 %v2827, %v2823
      %v2860 = vpack.c.b16 %v2828, %v2824
      %v2861 = vpack.c.b16 %v2829, %v2825
      %v2862 = vpack.c.b16 %v2830, %v2826
      %2895 = vmatprep.subr.bf16.mxu0 %v2860
      %2896 = vmatpush1.bf16.msra.mxu0 %v2859
      %2897 = vmatprep.subr.bf16.mxu0 %v2856
      %2898 = vmatpush1.bf16.msra.mxu0 %v2855
      %2899 = vmatprep.subr.bf16.mxu0 %v2852
      %2900 = vmatpush1.bf16.msra.mxu0 %v2851
      %2901 = vmatprep.subr.bf16.mxu0 %v2848
      %2902 = vmatpush1.bf16.msra.mxu0 %v2847
      %2903 = vmatprep.subr.bf16.mxu0 %v2844
      %2904 = vmatpush1.bf16.msra.mxu0 %v2843
      %2905 = vmatprep.subr.bf16.mxu0 %v2840
      %2906 = vmatpush1.bf16.msra.mxu0 %v2839
      %2907 = vmatprep.subr.bf16.mxu0 %v2836
      %2908 = vmatpush1.bf16.msra.mxu0 %v2835
      %2909 = vmatprep.subr.bf16.mxu0 %v2832
      %2910 = vmatpush1.bf16.msra.mxu0 %v2831
      %2911 = vmatprep.subr.bf16.mxu0 0
      %2912 = vmatpush2.bf16.msra.mxu0 0
      %2913 = vmatprep.subr.bf16.mxu0 0
      %2914 = vmatpush2.bf16.msra.mxu0 0
      %2915 = vmatprep.subr.bf16.mxu0 0
      %2916 = vmatpush2.bf16.msra.mxu0 0
      %2917 = vmatprep.subr.bf16.mxu0 0
      %2918 = vmatpush2.bf16.msra.mxu0 0
      %2919 = vmatprep.subr.bf16.mxu0 0
      %2920 = vmatpush2.bf16.msra.mxu0 0
      %2921 = vmatprep.subr.bf16.mxu0 0
      %2922 = vmatpush2.bf16.msra.mxu0 0
      %2923 = vmatprep.subr.bf16.mxu0 0
      %2924 = vmatpush2.bf16.msra.mxu0 0
      %2925 = vmatprep.subr.bf16.mxu0 0
      %2926 = vmatpush2.bf16.msra.mxu0 0
      %2927 = vmatprep.mubr.bf16.mxu0 0
      %2928 = vmatmul.mubr.bf16.gmra.mxu0 %v2679
      %v2929 = vpop.f32.mrf.mxu0
      %v2930 = vadd.f32 %v2718, %v2929
      %v2931 = vpop.f32.mrf.mxu0
      %v2932 = vadd.f32 %v2722, %v2931
      %v2933 = vpop.f32.mrf.mxu0
      %v2934 = vadd.f32 %v2718, %v2933
      %v2935 = vpop.f32.mrf.mxu0
      %v2936 = vadd.f32 %v2722, %v2935
      %2937 = vmatprep.mubr.bf16.mxu0 0
      %2938 = vmatmul.mubr.bf16.gmra.mxu0 %v2680
      %v2939 = vpop.f32.mrf.mxu0
      %v2940 = vadd.f32 %v2718, %v2939
      %v2941 = vpop.f32.mrf.mxu0
      %v2942 = vadd.f32 %v2722, %v2941
      %v2943 = vpop.f32.mrf.mxu0
      %v2944 = vpop.f32.mrf.mxu0
      %2945 = vdwg.mxu0
      %2946 = vmatprep.subr.bf16.mxu0 %v2862
      %2947 = vmatpush1.bf16.msra.mxu0 %v2861
      %2948 = vmatprep.subr.bf16.mxu0 %v2858
      %2949 = vmatpush1.bf16.msra.mxu0 %v2857
      %2950 = vmatprep.subr.bf16.mxu0 %v2854
      %2951 = vmatpush1.bf16.msra.mxu0 %v2853
      %2952 = vmatprep.subr.bf16.mxu0 %v2850
      %2953 = vmatpush1.bf16.msra.mxu0 %v2849
      %2954 = vmatprep.subr.bf16.mxu0 %v2846
      %2955 = vmatpush1.bf16.msra.mxu0 %v2845
      %2956 = vmatprep.subr.bf16.mxu0 %v2842
      %2957 = vmatpush1.bf16.msra.mxu0 %v2841
      %2958 = vmatprep.subr.bf16.mxu0 %v2838
      %2959 = vmatpush1.bf16.msra.mxu0 %v2837
      %2960 = vmatprep.subr.bf16.mxu0 %v2834
      %2961 = vmatpush1.bf16.msra.mxu0 %v2833
      %2962 = vmatprep.subr.bf16.mxu0 0
      %2963 = vmatpush2.bf16.msra.mxu0 0
      %2964 = vmatprep.subr.bf16.mxu0 0
      %2965 = vmatpush2.bf16.msra.mxu0 0
      %2966 = vmatprep.subr.bf16.mxu0 0
      %2967 = vmatpush2.bf16.msra.mxu0 0
      %2968 = vmatprep.subr.bf16.mxu0 0
      %2969 = vmatpush2.bf16.msra.mxu0 0
      %2970 = vmatprep.subr.bf16.mxu0 0
      %2971 = vmatpush2.bf16.msra.mxu0 0
      %2972 = vmatprep.subr.bf16.mxu0 0
      %2973 = vmatpush2.bf16.msra.mxu0 0
      %2974 = vmatprep.subr.bf16.mxu0 0
      %2975 = vmatpush2.bf16.msra.mxu0 0
      %2976 = vmatprep.subr.bf16.mxu0 0
      %2977 = vmatpush2.bf16.msra.mxu0 0
      %2978 = vmatprep.mubr.bf16.mxu0 0
      %2979 = vmatmul.mubr.bf16.gmra.mxu0 %v2679
      %v2980 = vpop.f32.mrf.mxu0
      %v2981 = vadd.f32 %v2726, %v2980
      %v2982 = vpop.f32.mrf.mxu0
      %v2983 = vadd.f32 %v2730, %v2982
      %v2984 = vpop.f32.mrf.mxu0
      %v2985 = vadd.f32 %v2726, %v2984
      %v2986 = vpop.f32.mrf.mxu0
      %v2987 = vadd.f32 %v2730, %v2986
      %2988 = vmatprep.mubr.bf16.mxu0 0
      %2989 = vmatmul.mubr.bf16.gmra.mxu0 %v2680
      %v2990 = vpop.f32.mrf.mxu0
      %v2991 = vadd.f32 %v2726, %v2990
      %v2992 = vpop.f32.mrf.mxu0
      %v2993 = vadd.f32 %v2730, %v2992
      %v2994 = vpop.f32.mrf.mxu0
      %v2995 = vpop.f32.mrf.mxu0
      %2996 = vdwg.mxu0
      %v2997 = vmul.f32 %v2930, %v2930
      %v2998 = vmul.f32 %v2932, %v2932
      %v2999 = vmul.f32 %v2981, %v2981
      %v3000 = vmul.f32 %v2983, %v2983
      %v3001 = vmul.f32 %v2934, %v2934
      %v3002 = vmul.f32 %v2936, %v2936
      %v3003 = vmul.f32 %v2985, %v2985
      %v3004 = vmul.f32 %v2987, %v2987
      %v3005 = vmul.f32 %v2940, %v2940
      %v3006 = vmul.f32 %v2942, %v2942
      %v3007 = vmul.f32 %v2991, %v2991
      %v3008 = vmul.f32 %v2993, %v2993
      %v3009 = vmul.f32 %v2930, %v2997
      %v3010 = vmul.f32 %v2932, %v2998
      %v3011 = vmul.f32 %v2981, %v2999
      %v3012 = vmul.f32 %v2983, %v3000
      %v3013 = vmul.f32 %v2934, %v3001
      %v3014 = vmul.f32 %v2936, %v3002
      %v3015 = vmul.f32 %v2985, %v3003
      %v3016 = vmul.f32 %v2987, %v3004
      %v3017 = vmul.f32 %v2940, %v3005
      %v3018 = vmul.f32 %v2942, %v3006
      %v3019 = vmul.f32 %v2991, %v3007
      %v3020 = vmul.f32 %v2993, %v3008
      %v3021 = vmul.f32 %v3009, 0.044715
      %v3022 = vmul.f32 %v3010, 0.044715
      %v3023 = vmul.f32 %v3011, 0.044715
      %v3024 = vmul.f32 %v3012, 0.044715
      %v3025 = vmul.f32 %v3013, 0.044715
      %v3026 = vmul.f32 %v3014, 0.044715
      %v3027 = vmul.f32 %v3015, 0.044715
      %v3028 = vmul.f32 %v3016, 0.044715
      %v3029 = vmul.f32 %v3017, 0.044715
      %v3030 = vmul.f32 %v3018, 0.044715
      %v3031 = vmul.f32 %v3019, 0.044715
      %v3032 = vmul.f32 %v3020, 0.044715
      %v3033 = vadd.f32 %v2930, %v3021
      %v3034 = vadd.f32 %v2932, %v3022
      %v3035 = vadd.f32 %v2981, %v3023
      %v3036 = vadd.f32 %v2983, %v3024
      %v3037 = vadd.f32 %v2934, %v3025
      %v3038 = vadd.f32 %v2936, %v3026
      %v3039 = vadd.f32 %v2985, %v3027
      %v3040 = vadd.f32 %v2987, %v3028
      %v3041 = vadd.f32 %v2940, %v3029
      %v3042 = vadd.f32 %v2942, %v3030
      %v3043 = vadd.f32 %v2991, %v3031
      %v3044 = vadd.f32 %v2993, %v3032
      %v3045 = vmul.f32 %v3033, 0.7978846
      %v3046 = vmul.f32 %v3034, 0.7978846
      %v3047 = vmul.f32 %v3035, 0.7978846
      %v3048 = vmul.f32 %v3036, 0.7978846
      %v3049 = vmul.f32 %v3037, 0.7978846
      %v3050 = vmul.f32 %v3038, 0.7978846
      %v3051 = vmul.f32 %v3039, 0.7978846
      %v3052 = vmul.f32 %v3040, 0.7978846
      %v3053 = vmul.f32 %v3041, 0.7978846
      %v3054 = vmul.f32 %v3042, 0.7978846
      %v3055 = vmul.f32 %v3043, 0.7978846
      %v3056 = vmul.f32 %v3044, 0.7978846
      %v3057 = vtanh.pop %v3045
      %v3058 = vtanh.pop %v3046
      %v3059 = vtanh.pop %v3047
      %v3060 = vtanh.pop %v3048
      %v3061 = vtanh.pop %v3049
      %v3062 = vtanh.pop %v3050
      %v3063 = vtanh.pop %v3051
      %v3064 = vtanh.pop %v3052
      %v3065 = vtanh.pop %v3053
      %v3066 = vtanh.pop %v3054
      %v3067 = vtanh.pop %v3055
      %v3068 = vtanh.pop %v3056
      %v3069 = vadd.f32 %v3057, 1.0
      %v3070 = vadd.f32 %v3058, 1.0
      %v3071 = vadd.f32 %v3059, 1.0
      %v3072 = vadd.f32 %v3060, 1.0
      %v3073 = vadd.f32 %v3061, 1.0
      %v3074 = vadd.f32 %v3062, 1.0
      %v3075 = vadd.f32 %v3063, 1.0
      %v3076 = vadd.f32 %v3064, 1.0
      %v3077 = vadd.f32 %v3065, 1.0
      %v3078 = vadd.f32 %v3066, 1.0
      %v3079 = vadd.f32 %v3067, 1.0
      %v3080 = vadd.f32 %v3068, 1.0
      %v3081 = vmul.f32 %v3069, 0.5
      %v3082 = vmul.f32 %v3070, 0.5
      %v3083 = vmul.f32 %v3071, 0.5
      %v3084 = vmul.f32 %v3072, 0.5
      %v3085 = vmul.f32 %v3073, 0.5
      %v3086 = vmul.f32 %v3074, 0.5
      %v3087 = vmul.f32 %v3075, 0.5
      %v3088 = vmul.f32 %v3076, 0.5
      %v3089 = vmul.f32 %v3077, 0.5
      %v3090 = vmul.f32 %v3078, 0.5
      %v3091 = vmul.f32 %v3079, 0.5
      %v3092 = vmul.f32 %v3080, 0.5
      %v3093 = vmul.f32 %v2930, %v3081
      %v3094 = vmul.f32 %v2932, %v3082
      %v3095 = vmul.f32 %v2981, %v3083
      %v3096 = vmul.f32 %v2983, %v3084
      %v3097 = vmul.f32 %v2934, %v3085
      %v3098 = vmul.f32 %v2936, %v3086
      %v3099 = vmul.f32 %v2985, %v3087
      %v3100 = vmul.f32 %v2987, %v3088
      %v3101 = vmul.f32 %v2940, %v3089
      %v3102 = vmul.f32 %v2942, %v3090
      %v3103 = vmul.f32 %v2991, %v3091
      %v3104 = vmul.f32 %v2993, %v3092
      %v3105 = vpack.c.bf16 %v3097, %v3093
      %v3106 = vpack.c.bf16 %v3098, %v3094
      %v3107 = vpack.c.bf16 %v3099, %v3095
      %v3108 = vpack.c.bf16 %v3100, %v3096
      %v3109 = vpack.c.bf16 %v3101, %v3101
      %v3110 = vpack.c.bf16 %v3102, %v3102
      %v3111 = vpack.c.bf16 %v3103, %v3103
      %v3112 = vpack.c.bf16 %v3104, %v3104
      %v3113 = vld [vmem:[%s804] sm:$0xf]
      %v3114 = vld [vmem:[%s804 + $0x4] sm:$0xf]
      %v3115 = vld [vmem:[%s804 + $0x8] sm:$0xf]
      %v3116 = vld [vmem:[%s804 + $0xc] sm:$0xf]
      %v3117 = vld [vmem:[%s804 + $0x10] sm:$0xf]
      %v3118 = vld [vmem:[%s804 + $0x14] sm:$0xf]
      %v3119 = vld [vmem:[%s804 + $0x18] sm:$0xf]
      %v3120 = vld [vmem:[%s804 + $0x1c] sm:$0xf]
      %v3121 = vld [vmem:[%s804 + $0x20] sm:$0xf]
      %v3122 = vld [vmem:[%s804 + $0x24] sm:$0xf]
      %v3123 = vld [vmem:[%s804 + $0x28] sm:$0xf]
      %v3124 = vld [vmem:[%s804 + $0x2c] sm:$0xf]
      %v3125 = vld [vmem:[%s804 + $0x30] sm:$0xf]
      %v3126 = vld [vmem:[%s804 + $0x34] sm:$0xf]
      %v3127 = vld [vmem:[%s804 + $0x38] sm:$0xf]
      %v3128 = vld [vmem:[%s804 + $0x3c] sm:$0xf]
      %v3129 = vld [vmem:[%s804 + $0x40] sm:$0xf]
      %v3130 = vld [vmem:[%s804 + $0x44] sm:$0xf]
      %v3131 = vld [vmem:[%s804 + $0x48] sm:$0xf]
      %v3132 = vld [vmem:[%s804 + $0x4c] sm:$0xf]
      %v3133 = vld [vmem:[%s804 + $0x50] sm:$0xf]
      %v3134 = vld [vmem:[%s804 + $0x54] sm:$0xf]
      %v3135 = vld [vmem:[%s804 + $0x58] sm:$0xf]
      %v3136 = vld [vmem:[%s804 + $0x5c] sm:$0xf]
      %v3137 = vld [vmem:[%s804 + $0x60] sm:$0xf]
      %v3138 = vld [vmem:[%s804 + $0x64] sm:$0xf]
      %v3139 = vld [vmem:[%s804 + $0x68] sm:$0xf]
      %v3140 = vld [vmem:[%s804 + $0x6c] sm:$0xf]
      %v3141 = vld [vmem:[%s804 + $0x70] sm:$0xf]
      %v3142 = vld [vmem:[%s804 + $0x74] sm:$0xf]
      %v3143 = vld [vmem:[%s804 + $0x78] sm:$0xf]
      %v3144 = vld [vmem:[%s804 + $0x7c] sm:$0xf]
      %v3145 = vld [vmem:[%s804 + $0x80] sm:$0xf]
      %v3146 = vld [vmem:[%s804 + $0x84] sm:$0xf]
      %v3147 = vld [vmem:[%s804 + $0x88] sm:$0xf]
      %v3148 = vld [vmem:[%s804 + $0x8c] sm:$0xf]
      %v3149 = vld [vmem:[%s804 + $0x90] sm:$0xf]
      %v3150 = vld [vmem:[%s804 + $0x94] sm:$0xf]
      %v3151 = vld [vmem:[%s804 + $0x98] sm:$0xf]
      %v3152 = vld [vmem:[%s804 + $0x9c] sm:$0xf]
      %v3153 = vld [vmem:[%s804 + $0xa0] sm:$0xf]
      %v3154 = vld [vmem:[%s804 + $0xa4] sm:$0xf]
      %v3155 = vld [vmem:[%s804 + $0xa8] sm:$0xf]
      %v3156 = vld [vmem:[%s804 + $0xac] sm:$0xf]
      %v3157 = vld [vmem:[%s804 + $0xb0] sm:$0xf]
      %v3158 = vld [vmem:[%s804 + $0xb4] sm:$0xf]
      %v3159 = vld [vmem:[%s804 + $0xb8] sm:$0xf]
      %v3160 = vld [vmem:[%s804 + $0xbc] sm:$0xf]
      %v3161 = vld [vmem:[%s804 + $0xc0] sm:$0xf]
      %v3162 = vld [vmem:[%s804 + $0xc4] sm:$0xf]
      %v3163 = vld [vmem:[%s804 + $0xc8] sm:$0xf]
      %v3164 = vld [vmem:[%s804 + $0xcc] sm:$0xf]
      %v3165 = vld [vmem:[%s804 + $0xd0] sm:$0xf]
      %v3166 = vld [vmem:[%s804 + $0xd4] sm:$0xf]
      %v3167 = vld [vmem:[%s804 + $0xd8] sm:$0xf]
      %v3168 = vld [vmem:[%s804 + $0xdc] sm:$0xf]
      %v3169 = vld [vmem:[%s804 + $0xe0] sm:$0xf]
      %v3170 = vld [vmem:[%s804 + $0xe4] sm:$0xf]
      %v3171 = vld [vmem:[%s804 + $0xe8] sm:$0xf]
      %v3172 = vld [vmem:[%s804 + $0xec] sm:$0xf]
      %v3173 = vld [vmem:[%s804 + $0xf0] sm:$0xf]
      %v3174 = vld [vmem:[%s804 + $0xf4] sm:$0xf]
      %v3175 = vld [vmem:[%s804 + $0xf8] sm:$0xf]
      %v3176 = vld [vmem:[%s804 + $0xfc] sm:$0xf]
      %v3177 = vld [vmem:[%s807] sm:$0x1]
      %v3179 = vlaneseq
      %v3180 = vshrl.u32 %v3179, 7
      %v3181 = vsub.s32 0, %v3180
      %v3182 = vrot.slane %v3177, %v3181
      %v3248 = vunpack.c.l.b16 %v3113
      %v3249 = vunpack.c.l.b16 %v3114
      %v3250 = vunpack.c.l.b16 %v3115
      %v3251 = vunpack.c.l.b16 %v3116
      %v3252 = vunpack.c.l.b16 %v3117
      %v3253 = vunpack.c.l.b16 %v3118
      %v3254 = vunpack.c.l.b16 %v3119
      %v3255 = vunpack.c.l.b16 %v3120
      %v3256 = vunpack.c.l.b16 %v3121
      %v3257 = vunpack.c.l.b16 %v3122
      %v3258 = vunpack.c.l.b16 %v3123
      %v3259 = vunpack.c.l.b16 %v3124
      %v3260 = vunpack.c.l.b16 %v3125
      %v3261 = vunpack.c.l.b16 %v3126
      %v3262 = vunpack.c.l.b16 %v3127
      %v3263 = vunpack.c.l.b16 %v3128
      %v3264 = vunpack.c.l.b16 %v3129
      %v3265 = vunpack.c.l.b16 %v3130
      %v3266 = vunpack.c.l.b16 %v3131
      %v3267 = vunpack.c.l.b16 %v3132
      %v3268 = vunpack.c.l.b16 %v3133
      %v3269 = vunpack.c.l.b16 %v3134
      %v3270 = vunpack.c.l.b16 %v3135
      %v3271 = vunpack.c.l.b16 %v3136
      %v3272 = vunpack.c.l.b16 %v3137
      %v3273 = vunpack.c.l.b16 %v3138
      %v3274 = vunpack.c.l.b16 %v3139
      %v3275 = vunpack.c.l.b16 %v3140
      %v3276 = vunpack.c.l.b16 %v3141
      %v3277 = vunpack.c.l.b16 %v3142
      %v3278 = vunpack.c.l.b16 %v3143
      %v3279 = vunpack.c.l.b16 %v3144
      %v3280 = vunpack.c.l.b16 %v3145
      %v3281 = vunpack.c.l.b16 %v3146
      %v3282 = vunpack.c.l.b16 %v3147
      %v3283 = vunpack.c.l.b16 %v3148
      %v3284 = vunpack.c.l.b16 %v3149
      %v3285 = vunpack.c.l.b16 %v3150
      %v3286 = vunpack.c.l.b16 %v3151
      %v3287 = vunpack.c.l.b16 %v3152
      %v3288 = vunpack.c.l.b16 %v3153
      %v3289 = vunpack.c.l.b16 %v3154
      %v3290 = vunpack.c.l.b16 %v3155
      %v3291 = vunpack.c.l.b16 %v3156
      %v3292 = vunpack.c.l.b16 %v3157
      %v3293 = vunpack.c.l.b16 %v3158
      %v3294 = vunpack.c.l.b16 %v3159
      %v3295 = vunpack.c.l.b16 %v3160
      %v3296 = vunpack.c.l.b16 %v3161
      %v3297 = vunpack.c.l.b16 %v3162
      %v3298 = vunpack.c.l.b16 %v3163
      %v3299 = vunpack.c.l.b16 %v3164
      %v3300 = vunpack.c.l.b16 %v3165
      %v3301 = vunpack.c.l.b16 %v3166
      %v3302 = vunpack.c.l.b16 %v3167
      %v3303 = vunpack.c.l.b16 %v3168
      %v3304 = vunpack.c.l.b16 %v3169
      %v3305 = vunpack.c.l.b16 %v3170
      %v3306 = vunpack.c.l.b16 %v3171
      %v3307 = vunpack.c.l.b16 %v3172
      %v3308 = vunpack.c.l.b16 %v3173
      %v3309 = vunpack.c.l.b16 %v3174
      %v3310 = vunpack.c.l.b16 %v3175
      %v3311 = vunpack.c.l.b16 %v3176
      %v3312 = vpack.c.b16 %v3249, %v3248
      %v3313 = vpack.c.b16 %v3251, %v3250
      %v3314 = vpack.c.b16 %v3253, %v3252
      %v3315 = vpack.c.b16 %v3255, %v3254
      %v3316 = vpack.c.b16 %v3257, %v3256
      %v3317 = vpack.c.b16 %v3259, %v3258
      %v3318 = vpack.c.b16 %v3261, %v3260
      %v3319 = vpack.c.b16 %v3263, %v3262
      %v3320 = vpack.c.b16 %v3265, %v3264
      %v3321 = vpack.c.b16 %v3267, %v3266
      %v3322 = vpack.c.b16 %v3269, %v3268
      %v3323 = vpack.c.b16 %v3271, %v3270
      %v3324 = vpack.c.b16 %v3273, %v3272
      %v3325 = vpack.c.b16 %v3275, %v3274
      %v3326 = vpack.c.b16 %v3277, %v3276
      %v3327 = vpack.c.b16 %v3279, %v3278
      %v3328 = vpack.c.b16 %v3281, %v3280
      %v3329 = vpack.c.b16 %v3283, %v3282
      %v3330 = vpack.c.b16 %v3285, %v3284
      %v3331 = vpack.c.b16 %v3287, %v3286
      %v3332 = vpack.c.b16 %v3289, %v3288
      %v3333 = vpack.c.b16 %v3291, %v3290
      %v3334 = vpack.c.b16 %v3293, %v3292
      %v3335 = vpack.c.b16 %v3295, %v3294
      %v3336 = vpack.c.b16 %v3297, %v3296
      %v3337 = vpack.c.b16 %v3299, %v3298
      %v3338 = vpack.c.b16 %v3301, %v3300
      %v3339 = vpack.c.b16 %v3303, %v3302
      %v3340 = vpack.c.b16 %v3305, %v3304
      %v3341 = vpack.c.b16 %v3307, %v3306
      %v3342 = vpack.c.b16 %v3309, %v3308
      %v3343 = vpack.c.b16 %v3311, %v3310
      %3376 = vmatprep.subr.bf16.mxu0 0
      %3377 = vmatpush1.bf16.msra.mxu0 %v3319
      %3378 = vmatprep.subr.bf16.mxu0 0
      %3379 = vmatpush1.bf16.msra.mxu0 %v3318
      %3380 = vmatprep.subr.bf16.mxu0 0
      %3381 = vmatpush1.bf16.msra.mxu0 %v3317
      %3382 = vmatprep.subr.bf16.mxu0 0
      %3383 = vmatpush1.bf16.msra.mxu0 %v3316
      %3384 = vmatprep.subr.bf16.mxu0 0
      %3385 = vmatpush1.bf16.msra.mxu0 %v3315
      %3386 = vmatprep.subr.bf16.mxu0 0
      %3387 = vmatpush1.bf16.msra.mxu0 %v3314
      %3388 = vmatprep.subr.bf16.mxu0 0
      %3389 = vmatpush1.bf16.msra.mxu0 %v3313
      %3390 = vmatprep.subr.bf16.mxu0 0
      %3391 = vmatpush1.bf16.msra.mxu0 %v3312
      %3392 = vmatprep.subr.bf16.mxu0 0
      %3393 = vmatpush2.bf16.msra.mxu0 %v3327
      %3394 = vmatprep.subr.bf16.mxu0 0
      %3395 = vmatpush2.bf16.msra.mxu0 %v3326
      %3396 = vmatprep.subr.bf16.mxu0 0
      %3397 = vmatpush2.bf16.msra.mxu0 %v3325
      %3398 = vmatprep.subr.bf16.mxu0 0
      %3399 = vmatpush2.bf16.msra.mxu0 %v3324
      %3400 = vmatprep.subr.bf16.mxu0 0
      %3401 = vmatpush2.bf16.msra.mxu0 %v3323
      %3402 = vmatprep.subr.bf16.mxu0 0
      %3403 = vmatpush2.bf16.msra.mxu0 %v3322
      %3404 = vmatprep.subr.bf16.mxu0 0
      %3405 = vmatpush2.bf16.msra.mxu0 %v3321
      %3406 = vmatprep.subr.bf16.mxu0 0
      %3407 = vmatpush2.bf16.msra.mxu0 %v3320
      %3408 = vmatprep.mubr.bf16.mxu0 %v3106
      %3409 = vmatmul.mubr.bf16.gmra.mxu0 %v3105
      %v3410 = vpop.f32.mrf.mxu0
      %v3411 = vadd.f32 %v3182, %v3410
      %v3412 = vpop.f32.mrf.mxu0
      %v3413 = vpop.f32.mrf.mxu0
      %v3414 = vadd.f32 %v3182, %v3413
      %v3415 = vpop.f32.mrf.mxu0
      %3416 = vmatprep.mubr.bf16.mxu0 %v3110
      %3417 = vmatmul.mubr.bf16.gmra.mxu0 %v3109
      %v3418 = vpop.f32.mrf.mxu0
      %v3419 = vadd.f32 %v3182, %v3418
      %v3420 = vpop.f32.mrf.mxu0
      %v3421 = vpop.f32.mrf.mxu0
      %v3422 = vpop.f32.mrf.mxu0
      %3423 = vdwg.mxu0
      %3424 = vmatprep.subr.bf16.mxu0 0
      %3425 = vmatpush1.bf16.msra.mxu0 %v3335
      %3426 = vmatprep.subr.bf16.mxu0 0
      %3427 = vmatpush1.bf16.msra.mxu0 %v3334
      %3428 = vmatprep.subr.bf16.mxu0 0
      %3429 = vmatpush1.bf16.msra.mxu0 %v3333
      %3430 = vmatprep.subr.bf16.mxu0 0
      %3431 = vmatpush1.bf16.msra.mxu0 %v3332
      %3432 = vmatprep.subr.bf16.mxu0 0
      %3433 = vmatpush1.bf16.msra.mxu0 %v3331
      %3434 = vmatprep.subr.bf16.mxu0 0
      %3435 = vmatpush1.bf16.msra.mxu0 %v3330
      %3436 = vmatprep.subr.bf16.mxu0 0
      %3437 = vmatpush1.bf16.msra.mxu0 %v3329
      %3438 = vmatprep.subr.bf16.mxu0 0
      %3439 = vmatpush1.bf16.msra.mxu0 %v3328
      %3440 = vmatprep.subr.bf16.mxu0 0
      %3441 = vmatpush2.bf16.msra.mxu0 %v3343
      %3442 = vmatprep.subr.bf16.mxu0 0
      %3443 = vmatpush2.bf16.msra.mxu0 %v3342
      %3444 = vmatprep.subr.bf16.mxu0 0
      %3445 = vmatpush2.bf16.msra.mxu0 %v3341
      %3446 = vmatprep.subr.bf16.mxu0 0
      %3447 = vmatpush2.bf16.msra.mxu0 %v3340
      %3448 = vmatprep.subr.bf16.mxu0 0
      %3449 = vmatpush2.bf16.msra.mxu0 %v3339
      %3450 = vmatprep.subr.bf16.mxu0 0
      %3451 = vmatpush2.bf16.msra.mxu0 %v3338
      %3452 = vmatprep.subr.bf16.mxu0 0
      %3453 = vmatpush2.bf16.msra.mxu0 %v3337
      %3454 = vmatprep.subr.bf16.mxu0 0
      %3455 = vmatpush2.bf16.msra.mxu0 %v3336
      %3456 = vmatprep.mubr.bf16.mxu0 %v3108
      %3457 = vmatmul.mubr.bf16.gmra.mxu0 %v3107
      %v3458 = vpop.f32.mrf.mxu0
      %v3459 = vadd.f32 %v3411, %v3458
      %v3460 = vpop.f32.mrf.mxu0
      %v3461 = vpop.f32.mrf.mxu0
      %v3462 = vadd.f32 %v3414, %v3461
      %v3463 = vpop.f32.mrf.mxu0
      %3464 = vmatprep.mubr.bf16.mxu0 %v3112
      %3465 = vmatmul.mubr.bf16.gmra.mxu0 %v3111
      %v3466 = vpop.f32.mrf.mxu0
      %v3467 = vadd.f32 %v3419, %v3466
      %v3468 = vpop.f32.mrf.mxu0
      %v3469 = vpop.f32.mrf.mxu0
      %v3470 = vpop.f32.mrf.mxu0
      %3471 = vdwg.mxu0
      %v3472 = vadd.f32 %v2621, %v3459
      %v3473 = vadd.f32 %v2622, %v3462
      %v3474 = vadd.f32 %v2623, %v3467
      %3475 = vst [vmem:[#allocation2] sm:$0xff] %v3472
      %3476 = vst [vmem:[#allocation2 + $0x8] sm:$0xff] %v3473
      %3477 = vst [vmem:[#allocation2 + $0x10] sm:$0x1] %v3474
      %p3478 = scmp.eq.s32.totalorder %s35, 1
      // Predicated region
      $region101: #{fwd.1} parent=95 // pred_check
        %p3479 = pneg %p3478
      $region102: #{fwd.1} parent=95 // pred_check_branch
        %3481 = sbr.rel (%p3479) target = $region104
      $region103: #{fwd.1} parent=95 // pred_region
        %v3482 = vld [vmem:[%s17] sm:$0x1]
        %v3483 = vld [vmem:[%s18] sm:$0x1]
        %3484 = vadd.xlane.f32.xlu0 %v3472
        %v3485 = vpop.xlane.xlu0 %3484
        %3486 = vadd.xlane.f32.xlu0 %v3473
        %v3487 = vpop.xlane.xlu0 %3486
        %v3488 = vsel %vm1385, %v3474, 0.0
        %3489 = vadd.xlane.f32.xlu0 %v3488
        %v3490 = vpop.xlane.xlu0 %3489
        %v3491 = vmul.f32 %v3485, %v1389
        %v3492 = vmul.f32 %v3487, %v1389
        %v3493 = vmul.f32 %v3490, %v1389
        %v3494 = vsub.f32 %v3472, %v3491
        %v3495 = vsub.f32 %v3473, %v3492
        %v3496 = vsub.f32 %v3474, %v3493
        %v3497 = vmul.f32 %v3494, %v3494
        %v3498 = vmul.f32 %v3495, %v3495
        %v3499 = vmul.f32 %v3496, %v3496
        %3500 = vadd.xlane.f32.xlu0 %v3497
        %v3501 = vpop.xlane.xlu0 %3500
        %3502 = vadd.xlane.f32.xlu0 %v3498
        %v3503 = vpop.xlane.xlu0 %3502
        %v3504 = vsel %vm1385, %v3499, 0.0
        %3505 = vadd.xlane.f32.xlu0 %v3504
        %v3506 = vpop.xlane.xlu0 %3505
        %v3507 = vmul.f32 %v3501, %v1389
        %v3508 = vmul.f32 %v3503, %v1389
        %v3509 = vmul.f32 %v3506, %v1389
        %v3510 = vadd.f32 %v3507, 1e-06
        %v3511 = vadd.f32 %v3508, 1e-06
        %v3512 = vadd.f32 %v3509, 1e-06
        %v3513 = vrsqrt.pop %v3510
        %v3514 = vrsqrt.pop %v3511
        %v3515 = vrsqrt.pop %v3512
        %v3516 = vmul.f32 %v3494, %v3513
        %v3517 = vmul.f32 %v3495, %v3514
        %v3518 = vmul.f32 %v3496, %v3515
        %v3520 = vlaneseq
        %v3521 = vshrl.u32 %v3520, 7
        %v3522 = vsub.s32 0, %v3521
        %v3523 = vrot.slane %v3482, %v3522
        %v3525 = vmul.f32 %v3516, %v3523
        %v3526 = vmul.f32 %v3517, %v3523
        %v3527 = vmul.f32 %v3518, %v3523
        %v3529 = vlaneseq
        %v3530 = vshrl.u32 %v3529, 7
        %v3531 = vsub.s32 0, %v3530
        %v3532 = vrot.slane %v3483, %v3531
        %v3534 = vadd.f32 %v3525, %v3532
        %v3535 = vadd.f32 %v3526, %v3532
        %v3536 = vadd.f32 %v3527, %v3532
        %3537 = vst [vmem:[%s812] sm:$0xff] %v3534
        %3538 = vst [vmem:[%s812 + $0x8] sm:$0xff] %v3535
        %3539 = vst [vmem:[%s812 + $0x10] sm:$0x1] %v3536
      $region104: #{fwd.1} parent=95 // pred_fallthru
        _
      %p3540 = scmp.lt.s32.totalorder %s34, 1
      %s3541 = scalar_select %p3540, %s34, 1
      %s3542 = smul.addr %s3541, 3
      %s3543 = smul.addr %s3542, 8
      %s3544 = scalar_lea.vmem %s19, %s3543
      // Predicated region
      $region105: #{fwd.1} parent=95 // pred_check
        %p3545 = pneg %p524
      $region106: #{fwd.1} parent=95 // pred_check_branch
        %3547 = sbr.rel (%p3545) target = $region108
      $region107: #{fwd.1} parent=95 // pred_region
        _
      $region108: #{fwd.1} parent=95 // pred_fallthru
        _
    $region96: #{fwd.1} parent=5 // pred_fallthru
      _
    %p3548 = scmp.le.s32.totalorder 2, %s25
    // Predicated region
    $region109: #{fwd.1} parent=5 // pred_check
      %p3549 = pneg %p3548
    $region110: #{fwd.1} parent=5 // pred_check_branch
      %3551 = sbr.rel (%p3549) target = $region112
    $region111: #{fwd.1} parent=5 // pred_region
      %s3552 = ssub.s32 %s25, 2
      // Predicated region
      $region113: #{fwd.1} parent=111 // pred_check
        %p3553 = pneg %p530
      $region114: #{fwd.1} parent=111 // pred_check_branch
        %3555 = sbr.rel (%p3553) target = $region116
      $region115: #{fwd.1} parent=111 // pred_region
        %p3556 = scmp.lt.s32.totalorder %s36, 1
        %s3557 = scalar_select %p3556, %s36, 1
        %s3558 = smul.addr %s3557, 3
        %s3559 = smul.addr %s3558, 8
        %s3560 = scalar_lea.vmem %s19, %s3559
      $region116: #{fwd.1} parent=111 // pred_fallthru
        _
    $region112: #{fwd.1} parent=5 // pred_fallthru
      _
  $region6: #{fwd.1} parent=0 // loop_footer
    %s29 = sadd.s32 1, %s25
  $region7: #{fwd.1} parent=0 // loop_footer_branch
    %24 = sbr.rel target = $region3
  $region8: #{fwd.1} parent=0 // loop_exit
    _

</llo_original>
